<compile_context>
chip_gen: v6e
topology: v6e:2x2x1
jax: 0.10.0
libtpu: 0.0.40
codegen_flags: <defaults>
</compile_context>

<pallas_src>
import functools
import math

import numpy as np
import jax
import jax.numpy as jnp
from jax.experimental import pallas as pl
from jax.experimental.pallas import tpu as pltpu


# MXU operands in bf16 (f32 accumulate): native on v6e/v7x MXU; on v5e only the MXU sees
# bf16 while VPU/EUP math stays f32.  Set to jnp.float32 for bit-faithful f32 numerics.
MXU_DTYPE = jnp.bfloat16


def _mxu_dot(a, b):
    return jnp.dot(a.astype(MXU_DTYPE), b.astype(MXU_DTYPE),
                   preferred_element_type=jnp.float32)


def _mxu_dot_kT(a, b):
    # Contract the last dims of a and b (a @ b.T) without an explicit transpose of b.
    return jax.lax.dot_general(
        a.astype(MXU_DTYPE), b.astype(MXU_DTYPE),
        dimension_numbers=(((1,), (1,)), ((), ())),
        preferred_element_type=jnp.float32)


def _ln(x, g, b, eps=1e-5):
    mu = jnp.mean(x, axis=-1, keepdims=True)
    xc = x - mu
    var = jnp.mean(xc * xc, axis=-1, keepdims=True)
    return xc * jax.lax.rsqrt(var + eps) * g + b


# ----------------------------- Pallas kernels ------------------------------

def _adaptive_posenc_kernel(x_ref, hp_ref, wp_ref, w1_ref, b1_ref, w2_ref,
                            b2_ref, o_ref, *, c):
    # Fused Adaptive2DPositionalEncoding, one batch element per grid step:
    # global avg pool -> (h|w concatenated) MLP1 + ReLU -> block-diagonal MLP2 + Sigmoid
    # -> scaled sinusoid add.  Dropout = identity (eval).
    x = x_ref[0]                                        # (T, C)
    pooled = jnp.mean(x, axis=0, keepdims=True)         # (1, C)   AdaptiveAvgPool2d(1)
    hid = jnp.maximum(_mxu_dot(pooled, w1_ref[...]) + b1_ref[...], 0.0)   # (1, 2C)
    sc = jax.nn.sigmoid(_mxu_dot(hid, w2_ref[...]) + b2_ref[...])         # (1, 2C)
    h_scale = sc[:, :c]                                 # (1, C)
    w_scale = sc[:, c:]
    o_ref[0] = x + h_scale * hp_ref[0] + w_scale * wp_ref[0]


def _corner_layer_kernel(x_ref, c_ref, ln1g_ref, ln1b_ref, wq_ref, wkv_ref,
                         wo_ref, ln2g_ref, ln2b_ref, w1_ref, b1_ref, s9_ref,
                         w9_ref, b2_ref, w2_ref, b3_ref, o_ref,
                         *, n_head, d_k, d_v, t):
    # One full CornerCrossattnLayer per grid step (one batch element), all in VMEM:
    # pre-LN cross attention + residual, then pre-LN locality-aware FFN + residual.
    x = x_ref[0]                                        # (T, C)
    corner = c_ref[0]                                   # (T, C)

    # ---------------- cross attention (1/sqrt(d_k) folded into wq) ----------------
    xn = _ln(x, ln1g_ref[...], ln1b_ref[...])
    q = _mxu_dot(xn, wq_ref[...])                       # (T, n_head*d_k)
    kv = _mxu_dot(corner, wkv_ref[...])                 # (T, n_head*(d_k+d_v))
    wo = wo_ref[...]                                    # (n_head*d_v, C)
    acc = x                                             # residual
    # TODO(synk): key mask omitted — valid_ratio == 1.0 means the mask is all ones (identity).
    for h in range(n_head):
        qh = q[:, h * d_k:(h + 1) * d_k]
        kh = kv[:, h * d_k:(h + 1) * d_k]
        vh = kv[:, n_head * d_k + h * d_v:n_head * d_k + (h + 1) * d_v]
        logits = _mxu_dot_kT(qh, kh)                    # (T, T)
        logits = logits - jnp.max(logits, axis=-1, keepdims=True)
        p = jnp.exp(logits)
        p = p * pl.reciprocal(jnp.sum(p, axis=-1, keepdims=True), approx=True)
        ctx = _mxu_dot(p, vh)                           # (T, d_v)
        acc = acc + _mxu_dot(ctx, wo[h * d_v:(h + 1) * d_v, :])   # (T, C)
    x = acc

    # ---------------- locality-aware FFN (BN folded, eval mode) ----------------
    xn = _ln(x, ln2g_ref[...], ln2b_ref[...])
    # 1x1 conv + folded BN + ReLU
    y = jnp.maximum(_mxu_dot(xn, w1_ref[...]) + b1_ref[...], 0.0)   # (T, Di)
    # 3x3 depthwise conv (padding=1) as one (9T, T) @ (T, Di) matmul against 0/1 shift
    # matrices, then per-tap channel weights (BN2 scale folded in).
    # TODO(synk): for large T switch to a roll-based stencil (shift matmul is O(T^2)).
    y9 = _mxu_dot(s9_ref[...], y).reshape(9, t, -1)     # (9, T, Di)
    w9 = w9_ref[...]                                    # (9, Di)
    dw = y9[0] * w9[0:1]
    for k in range(1, 9):
        dw = dw + y9[k] * w9[k:k + 1]
    y = jnp.maximum(dw + b2_ref[...], 0.0)
    # 1x1 conv + folded BN + ReLU
    y = jnp.maximum(_mxu_dot(y, w2_ref[...]) + b3_ref[...], 0.0)    # (T, C)
    o_ref[0] = x + y


def _layernorm_kernel(x_ref, g_ref, b_ref, o_ref, *, eps):
    o_ref[...] = _ln(x_ref[...], g_ref[...], b_ref[...], eps)


# ------------------------------ wrappers -----------------------------------

def adaptive_pos_enc(x_ntc, pe, hp_t, wp_t):
    n, t, c = x_ntc.shape
    return pl.pallas_call(
        functools.partial(_adaptive_posenc_kernel, c=c),
        grid=(n,),
        in_specs=[
            pl.BlockSpec((1, t, c), lambda i: (i, 0, 0)),
            pl.BlockSpec((1, t, c), lambda i: (0, 0, 0)),
            pl.BlockSpec((1, t, c), lambda i: (0, 0, 0)),
            pl.BlockSpec((c, 2 * c), lambda i: (0, 0)),
            pl.BlockSpec((1, 2 * c), lambda i: (0, 0)),
            pl.BlockSpec((2 * c, 2 * c), lambda i: (0, 0)),
            pl.BlockSpec((1, 2 * c), lambda i: (0, 0)),
        ],
        out_specs=pl.BlockSpec((1, t, c), lambda i: (i, 0, 0)),
        out_shape=jax.ShapeDtypeStruct((n, t, c), jnp.float32),
        compiler_params=pltpu.CompilerParams(dimension_semantics=("parallel",)),
    )(x_ntc, hp_t, wp_t, pe["w1"], pe["b1"], pe["w2"], pe["b2"])


def corner_layer(x, corner, lp, s9, *, n_head, d_k, d_v, d_inner):
    n, t, c = x.shape
    dkv = n_head * (d_k + d_v)
    return pl.pallas_call(
        functools.partial(_corner_layer_kernel,
                          n_head=n_head, d_k=d_k, d_v=d_v, t=t),
        grid=(n,),
        in_specs=[
            pl.BlockSpec((1, t, c), lambda i: (i, 0, 0)),        # x
            pl.BlockSpec((1, t, c), lambda i: (i, 0, 0)),        # corner
            pl.BlockSpec((1, c), lambda i: (0, 0)),              # ln1_g
            pl.BlockSpec((1, c), lambda i: (0, 0)),              # ln1_b
            pl.BlockSpec((c, n_head * d_k), lambda i: (0, 0)),   # wq (scaled)
            pl.BlockSpec((c, dkv), lambda i: (0, 0)),            # wkv
            pl.BlockSpec((n_head * d_v, c), lambda i: (0, 0)),   # wo
            pl.BlockSpec((1, c), lambda i: (0, 0)),              # ln2_g
            pl.BlockSpec((1, c), lambda i: (0, 0)),              # ln2_b
            pl.BlockSpec((c, d_inner), lambda i: (0, 0)),        # ffn_w1 (BN folded)
            pl.BlockSpec((1, d_inner), lambda i: (0, 0)),        # ffn_b1
            pl.BlockSpec((9 * t, t), lambda i: (0, 0)),          # shift matrices
            pl.BlockSpec((9, d_inner), lambda i: (0, 0)),        # depthwise taps
            pl.BlockSpec((1, d_inner), lambda i: (0, 0)),        # ffn_b2
            pl.BlockSpec((d_inner, c), lambda i: (0, 0)),        # ffn_w2 (BN folded)
            pl.BlockSpec((1, c), lambda i: (0, 0)),              # ffn_b3
        ],
        out_specs=pl.BlockSpec((1, t, c), lambda i: (i, 0, 0)),
        out_shape=jax.ShapeDtypeStruct((n, t, c), jnp.float32),
        compiler_params=pltpu.CompilerParams(dimension_semantics=("parallel",)),
    )(x, corner, lp["ln1_g"], lp["ln1_b"], lp["wq"], lp["wkv"], lp["wo"],
      lp["ln2_g"], lp["ln2_b"], lp["ffn_w1f"], lp["ffn_b1f"], s9,
      lp["ffn_w9f"], lp["ffn_b2f"], lp["ffn_w2f"], lp["ffn_b3f"])


def layernorm(x2d, gamma, beta, eps=1e-5):
    m, d = x2d.shape
    return pl.pallas_call(
        functools.partial(_layernorm_kernel, eps=eps),
        out_shape=jax.ShapeDtypeStruct((m, d), jnp.float32),
    )(x2d, gamma.reshape(1, d), beta.reshape(1, d))


# ------------------------------ model pieces -------------------------------

def sinusoid_table(n_position, d_hid):
    denom = np.array(
        [1.0 / np.power(10000, 2 * (j // 2) / d_hid) for j in range(d_hid)],
        dtype=np.float64)
    pos = np.arange(n_position, dtype=np.float64)[:, None]
    table = pos * denom[None, :]
    table[:, 0::2] = np.sin(table[:, 0::2])
    table[:, 1::2] = np.cos(table[:, 1::2])
    return jnp.asarray(table, jnp.float32)              # (n_position, d_hid)


def build_shift_matrices(h, w):
    # 0/1 matrices implementing the nine zero-padded 3x3 spatial shifts on the flat T axis.
    t = h * w
    s = np.zeros((9, t, t), np.float32)
    for i in range(3):
        for j in range(3):
            k = 3 * i + j
            dh, dw = i - 1, j - 1
            for r in range(h):
                for c_ in range(w):
                    rr, cc = r + dh, c_ + dw
                    if 0 <= rr < h and 0 <= cc < w:
                        s[k, r * w + c_, rr * w + cc] = 1.0
    return jnp.asarray(s.reshape(9 * t, t))


def fuse_params(params, table_h, table_w, h, w, d_inner, d_k, eps=1e-5):
    """Fold BN into conv weights, fold 1/sqrt(d_k) into Wq, concat projections."""
    c = params["ln_g"].shape[0]
    t = h * w

    def bn_fold(gamma, beta):
        # eval-mode BatchNorm with running_mean=0, running_var=1 (init values).
        # TODO(synk): with a real checkpoint fold the actual running stats here.
        return gamma / jnp.sqrt(1.0 + eps), beta

    fp = {}
    z = jnp.zeros((c, c), jnp.float32)
    for name in ("pe", "pe_corner"):
        p = params[name]
        fp[name] = dict(
            w1=jnp.concatenate([p["h_w1"], p["w_w1"]], axis=1),
            b1=jnp.concatenate([p["h_b1"], p["w_b1"]]).reshape(1, 2 * c),
            w2=jnp.concatenate(
                [jnp.concatenate([p["h_w2"], z], axis=1),
                 jnp.concatenate([z, p["w_w2"]], axis=1)], axis=0),
            b2=jnp.concatenate([p["h_b2"], p["w_b2"]]).reshape(1, 2 * c),
        )
    # Sinusoid tables broadcast over the flat T = H*W axis.
    fp["hp_t"] = jnp.broadcast_to(table_h[:h, None, :], (h, w, c)).reshape(1, t, c)
    fp["wp_t"] = jnp.broadcast_to(table_w[None, :w, :], (h, w, c)).reshape(1, t, c)
    fp["shift9"] = build_shift_matrices(h, w)

    qscale = 1.0 / math.sqrt(d_k)
    layers = []
    for lp in params["layers"]:
        s1, t1 = bn_fold(lp["ffn_bn1_g"], lp["ffn_bn1_b"])
        s2, t2 = bn_fold(lp["ffn_bn2_g"], lp["ffn_bn2_b"])
        s3, t3 = bn_fold(lp["ffn_bn3_g"], lp["ffn_bn3_b"])
        layers.append(dict(
            ln1_g=lp["ln1_g"].reshape(1, c), ln1_b=lp["ln1_b"].reshape(1, c),
            ln2_g=lp["ln2_g"].reshape(1, c), ln2_b=lp["ln2_b"].reshape(1, c),
            wq=lp["wq"] * qscale,
            wkv=jnp.concatenate([lp["wk"], lp["wv"]], axis=1),
            wo=lp["wo"],
            ffn_w1f=lp["ffn_w1"] * s1[None, :], ffn_b1f=t1.reshape(1, d_inner),
            ffn_w9f=lp["ffn_dw"].reshape(9, d_inner) * s2[None, :],
            ffn_b2f=t2.reshape(1, d_inner),
            ffn_w2f=lp["ffn_w2"] * s3[None, :], ffn_b3f=t3.reshape(1, c),
        ))
    fp["layers"] = layers
    fp["ln_g"], fp["ln_b"] = params["ln_g"], params["ln_b"]
    return fp


def corner_encoder_forward(feat_nchw, corner_nchw, fparams, *, n_head, d_k,
                           d_v, d_inner):
    n, c, h, w = feat_nchw.shape
    t = h * w
    # NCHW -> (N, T, C): model dim on TPU lanes.
    feat = jnp.transpose(feat_nchw.reshape(n, c, t), (0, 2, 1))
    corner = jnp.transpose(corner_nchw.reshape(n, c, t), (0, 2, 1))
    feat = adaptive_pos_enc(feat, fparams["pe"], fparams["hp_t"], fparams["wp_t"])
    corner = adaptive_pos_enc(corner, fparams["pe_corner"], fparams["hp_t"],
                              fparams["wp_t"])
    # TODO(synk): key mask dropped entirely — valid_ratio == 1.0 yields an all-ones mask.
    output = feat
    s9 = fparams["shift9"]
    for lp in fparams["layers"]:
        output = corner_layer(output, corner, lp, s9,
                              n_head=n_head, d_k=d_k, d_v=d_v, d_inner=d_inner)
    out2d = layernorm(output.reshape(n * t, c), fparams["ln_g"], fparams["ln_b"])
    return out2d.reshape(n, t, c)


# ----------------------------- parameter init ------------------------------

def init_params(key, d_model, d_inner, n_head, d_k, d_v, n_layers):
    keys = iter(jax.random.split(key, 16 + 32 * n_layers))

    def nrm(shape):
        return 0.02 * jax.random.normal(next(keys), shape, jnp.float32)

    params = {}
    for name in ("pe", "pe_corner"):
        params[name] = dict(
            h_w1=nrm((d_model, d_model)), h_b1=jnp.zeros((d_model,), jnp.float32),
            h_w2=nrm((d_model, d_model)), h_b2=jnp.zeros((d_model,), jnp.float32),
            w_w1=nrm((d_model, d_model)), w_b1=jnp.zeros((d_model,), jnp.float32),
            w_w2=nrm((d_model, d_model)), w_b2=jnp.zeros((d_model,), jnp.float32),
        )
    layers = []
    for _ in range(n_layers):
        layers.append(dict(
            ln1_g=jnp.ones((d_model,), jnp.float32),
            ln1_b=jnp.zeros((d_model,), jnp.float32),
            ln2_g=jnp.ones((d_model,), jnp.float32),
            ln2_b=jnp.zeros((d_model,), jnp.float32),
            wq=nrm((d_model, n_head * d_k)),
            wk=nrm((d_model, n_head * d_k)),
            wv=nrm((d_model, n_head * d_v)),
            wo=nrm((n_head * d_v, d_model)),
            ffn_w1=nrm((d_model, d_inner)),
            ffn_bn1_g=jnp.ones((d_inner,), jnp.float32),
            ffn_bn1_b=jnp.zeros((d_inner,), jnp.float32),
            ffn_dw=nrm((3, 3, d_inner)),
            ffn_bn2_g=jnp.ones((d_inner,), jnp.float32),
            ffn_bn2_b=jnp.zeros((d_inner,), jnp.float32),
            ffn_w2=nrm((d_inner, d_model)),
            ffn_bn3_g=jnp.ones((d_model,), jnp.float32),
            ffn_bn3_b=jnp.zeros((d_model,), jnp.float32),
        ))
    params["layers"] = layers
    params["ln_g"] = jnp.ones((d_model,), jnp.float32)
    params["ln_b"] = jnp.zeros((d_model,), jnp.float32)
    return params


# ----------------------------------- main -----------------------------------

if __name__ == "__main__":
    # Small, module-consistent shapes.
    N, D_MODEL, H, W = 2, 32, 8, 8
    N_LAYERS, N_HEAD, D_K, D_V = 2, 2, 8, 8
    D_INNER, N_POSITION = 64, 16

    key = jax.random.PRNGKey(0)
    k_feat, k_corner, k_param = jax.random.split(key, 3)
    feat = jax.random.normal(k_feat, (N, D_MODEL, H, W), jnp.float32)
    corner_feat = jax.random.normal(k_corner, (N, D_MODEL, H, W), jnp.float32)

    params = init_params(k_param, D_MODEL, D_INNER, N_HEAD, D_K, D_V, N_LAYERS)
    table_h = sinusoid_table(N_POSITION, D_MODEL)
    table_w = sinusoid_table(N_POSITION, D_MODEL)
    fparams = fuse_params(params, table_h, table_w, H, W, D_INNER, D_K)

    fwd = jax.jit(functools.partial(
        corner_encoder_forward, n_head=N_HEAD, d_k=D_K, d_v=D_V, d_inner=D_INNER))
    out = fwd(feat, corner_feat, fparams)
    out = jax.block_until_ready(out)

    assert out.shape == (N, H * W, D_MODEL)
    assert bool(jnp.all(jnp.isfinite(out)))
    print("KERNEL_OK")
</pallas_src>

<mosaic_0001>
module attributes {stable_mosaic.version = 11 : i64} {
  func.func @_adaptive_posenc_kernel(%arg0: i32, %arg1: memref<1x64x32xf32, #tpu.memory_space<vmem>>, %arg2: memref<1x64x32xf32, #tpu.memory_space<vmem>>, %arg3: memref<1x64x32xf32, #tpu.memory_space<vmem>>, %arg4: memref<32x64xf32, #tpu.memory_space<vmem>>, %arg5: memref<1x64xf32, #tpu.memory_space<vmem>>, %arg6: memref<64x64xf32, #tpu.memory_space<vmem>>, %arg7: memref<1x64xf32, #tpu.memory_space<vmem>>, %arg8: memref<1x64x32xf32, #tpu.memory_space<vmem>>) attributes {dimension_semantics = [#tpu.dimension_semantics<parallel>], iteration_bounds = array<i64: 2>, scalar_prefetch = 0 : i64, scratch_operands = 0 : i64, tpu.core_type = #tpu.core_type<tc>, window_params = [{transform_indices = @transform_0, window_bounds = array<i64: 1, 64, 32>}, {pipeline_mode = #tpu.pipeline_mode<synchronous>, transform_indices = @transform_1, window_bounds = array<i64: 1, 64, 32>}, {pipeline_mode = #tpu.pipeline_mode<synchronous>, transform_indices = @transform_2, window_bounds = array<i64: 1, 64, 32>}, {pipeline_mode = #tpu.pipeline_mode<synchronous>, transform_indices = @transform_3, window_bounds = array<i64: 32, 64>}, {pipeline_mode = #tpu.pipeline_mode<synchronous>, transform_indices = @transform_4, window_bounds = array<i64: 1, 64>}, {pipeline_mode = #tpu.pipeline_mode<synchronous>, transform_indices = @transform_5, window_bounds = array<i64: 64, 64>}, {pipeline_mode = #tpu.pipeline_mode<synchronous>, transform_indices = @transform_6, window_bounds = array<i64: 1, 64>}, {transform_indices = @transform_7, window_bounds = array<i64: 1, 64, 32>}]} {
    %c0 = arith.constant 0 : index
    %c0_0 = arith.constant 0 : index
    %c0_1 = arith.constant 0 : index
    %0 = vector.load %arg1[%c0, %c0_0, %c0_1] : memref<1x64x32xf32, #tpu.memory_space<vmem>>, vector<1x64x32xf32>
    %1 = vector.shape_cast %0 : vector<1x64x32xf32> to vector<64x32xf32>
    %cst = arith.constant dense<0.000000e+00> : vector<32xf32>
    %2 = vector.multi_reduction <add>, %1, %cst [0] : vector<64x32xf32> to vector<32xf32>
    %3 = vector.shape_cast %2 : vector<32xf32> to vector<1x32xf32>
    %cst_2 = arith.constant 6.400000e+01 : f32
    %4 = vector.broadcast %cst_2 : f32 to vector<1x32xf32>
    %5 = arith.divf %3, %4 : vector<1x32xf32>
    %c0_3 = arith.constant 0 : index
    %c0_4 = arith.constant 0 : index
    %6 = vector.load %arg4[%c0_3, %c0_4] : memref<32x64xf32, #tpu.memory_space<vmem>>, vector<32x64xf32>
    %7 = arith.truncf %5 : vector<1x32xf32> to vector<1x32xbf16>
    %8 = arith.truncf %6 : vector<32x64xf32> to vector<32x64xbf16>
    %cst_5 = arith.constant dense<0.000000e+00> : vector<1x64xf32>
    %9 = tpu.matmul %7, %8, %cst_5 {dimension_numbers = #tpu.dot_dimension_numbers<[1], [0], [0], [1], [0, 0, 1, 1], [], []>} : vector<1x32xbf16>, vector<32x64xbf16>, vector<1x64xf32> -> vector<1x64xf32>
    %c0_6 = arith.constant 0 : index
    %c0_7 = arith.constant 0 : index
    %10 = vector.load %arg5[%c0_6, %c0_7] : memref<1x64xf32, #tpu.memory_space<vmem>>, vector<1x64xf32>
    %11 = arith.addf %9, %10 : vector<1x64xf32>
    %cst_8 = arith.constant 0.000000e+00 : f32
    %12 = vector.broadcast %cst_8 : f32 to vector<1x64xf32>
    %13 = arith.maximumf %11, %12 : vector<1x64xf32>
    %c0_9 = arith.constant 0 : index
    %c0_10 = arith.constant 0 : index
    %14 = vector.load %arg6[%c0_9, %c0_10] : memref<64x64xf32, #tpu.memory_space<vmem>>, vector<64x64xf32>
    %15 = arith.truncf %13 : vector<1x64xf32> to vector<1x64xbf16>
    %16 = arith.truncf %14 : vector<64x64xf32> to vector<64x64xbf16>
    %cst_11 = arith.constant dense<0.000000e+00> : vector<1x64xf32>
    %17 = tpu.matmul %15, %16, %cst_11 {dimension_numbers = #tpu.dot_dimension_numbers<[1], [0], [0], [1], [0, 0, 1, 1], [], []>} : vector<1x64xbf16>, vector<64x64xbf16>, vector<1x64xf32> -> vector<1x64xf32>
    %c0_12 = arith.constant 0 : index
    %c0_13 = arith.constant 0 : index
    %18 = vector.load %arg7[%c0_12, %c0_13] : memref<1x64xf32, #tpu.memory_space<vmem>>, vector<1x64xf32>
    %19 = arith.addf %17, %18 : vector<1x64xf32>
    %20 = arith.negf %19 : vector<1x64xf32>
    %21 = math.exp %20 : vector<1x64xf32>
    %cst_14 = arith.constant 1.000000e+00 : f32
    %22 = vector.broadcast %cst_14 : f32 to vector<1x64xf32>
    %23 = arith.addf %22, %21 : vector<1x64xf32>
    %24 = arith.divf %22, %23 : vector<1x64xf32>
    %25 = vector.extract_strided_slice %24 {offsets = [0, 0], sizes = [1, 32], strides = [1, 1]} : vector<1x64xf32> to vector<1x32xf32>
    %26 = vector.extract_strided_slice %24 {offsets = [0, 32], sizes = [1, 32], strides = [1, 1]} : vector<1x64xf32> to vector<1x32xf32>
    %c0_15 = arith.constant 0 : index
    %c0_16 = arith.constant 0 : index
    %c0_17 = arith.constant 0 : index
    %27 = vector.load %arg2[%c0_15, %c0_16, %c0_17] : memref<1x64x32xf32, #tpu.memory_space<vmem>>, vector<1x64x32xf32>
    %28 = vector.shape_cast %27 : vector<1x64x32xf32> to vector<64x32xf32>
    %29 = vector.broadcast %25 : vector<1x32xf32> to vector<64x32xf32>
    %30 = arith.mulf %29, %28 : vector<64x32xf32>
    %31 = arith.addf %1, %30 : vector<64x32xf32>
    %c0_18 = arith.constant 0 : index
    %c0_19 = arith.constant 0 : index
    %c0_20 = arith.constant 0 : index
    %32 = vector.load %arg3[%c0_18, %c0_19, %c0_20] : memref<1x64x32xf32, #tpu.memory_space<vmem>>, vector<1x64x32xf32>
    %33 = vector.shape_cast %32 : vector<1x64x32xf32> to vector<64x32xf32>
    %34 = vector.broadcast %26 : vector<1x32xf32> to vector<64x32xf32>
    %35 = arith.mulf %34, %33 : vector<64x32xf32>
    %36 = arith.addf %31, %35 : vector<64x32xf32>
    %c0_21 = arith.constant 0 : index
    %c0_22 = arith.constant 0 : index
    %c0_23 = arith.constant 0 : index
    %37 = vector.load %arg8[%c0_21, %c0_22, %c0_23] : memref<1x64x32xf32, #tpu.memory_space<vmem>>, vector<1x64x32xf32>
    %38 = vector.shape_cast %37 : vector<1x64x32xf32> to vector<64x32xf32>
    %39 = vector.shape_cast %36 : vector<64x32xf32> to vector<1x64x32xf32>
    tpu.vector_store %arg8[%c0_21, %c0_22, %c0_23], %39 {strides = array<i32>} : memref<1x64x32xf32, #tpu.memory_space<vmem>>, vector<1x64x32xf32>,
    return
  }
  func.func @transform_0(%arg0: i32) -> (i32, i32, i32) {
    %c0_i32 = arith.constant 0 : i32
    %c0_i32_0 = arith.constant 0 : i32
    %c0_i32_1 = arith.constant 0 : i32
    return %arg0, %c0_i32, %c0_i32_0 : i32, i32, i32
  }
  func.func @transform_1(%arg0: i32) -> (i32, i32, i32) {
    %c0_i32 = arith.constant 0 : i32
    %c0_i32_0 = arith.constant 0 : i32
    %c0_i32_1 = arith.constant 0 : i32
    %c0_i32_2 = arith.constant 0 : i32
    return %c0_i32, %c0_i32_0, %c0_i32_1 : i32, i32, i32
  }
  func.func @transform_2(%arg0: i32) -> (i32, i32, i32) {
    %c0_i32 = arith.constant 0 : i32
    %c0_i32_0 = arith.constant 0 : i32
    %c0_i32_1 = arith.constant 0 : i32
    %c0_i32_2 = arith.constant 0 : i32
    return %c0_i32, %c0_i32_0, %c0_i32_1 : i32, i32, i32
  }
  func.func @transform_3(%arg0: i32) -> (i32, i32) {
    %c0_i32 = arith.constant 0 : i32
    %c0_i32_0 = arith.constant 0 : i32
    %c0_i32_1 = arith.constant 0 : i32
    return %c0_i32, %c0_i32_0 : i32, i32
  }
  func.func @transform_4(%arg0: i32) -> (i32, i32) {
    %c0_i32 = arith.constant 0 : i32
    %c0_i32_0 = arith.constant 0 : i32
    %c0_i32_1 = arith.constant 0 : i32
    return %c0_i32, %c0_i32_0 : i32, i32
  }
  func.func @transform_5(%arg0: i32) -> (i32, i32) {
    %c0_i32 = arith.constant 0 : i32
    %c0_i32_0 = arith.constant 0 : i32
    %c0_i32_1 = arith.constant 0 : i32
    return %c0_i32, %c0_i32_0 : i32, i32
  }
  func.func @transform_6(%arg0: i32) -> (i32, i32) {
    %c0_i32 = arith.constant 0 : i32
    %c0_i32_0 = arith.constant 0 : i32
    %c0_i32_1 = arith.constant 0 : i32
    return %c0_i32, %c0_i32_0 : i32, i32
  }
  func.func @transform_7(%arg0: i32) -> (i32, i32, i32) {
    %c0_i32 = arith.constant 0 : i32
    %c0_i32_0 = arith.constant 0 : i32
    %c0_i32_1 = arith.constant 0 : i32
    return %arg0, %c0_i32, %c0_i32_0 : i32, i32, i32
  }
}

module attributes {stable_mosaic.version = 11 : i64} {
  func.func @_adaptive_posenc_kernel(%arg0: i32, %arg1: memref<1x64x32xf32, #tpu.memory_space<vmem>>, %arg2: memref<1x64x32xf32, #tpu.memory_space<vmem>>, %arg3: memref<1x64x32xf32, #tpu.memory_space<vmem>>, %arg4: memref<32x64xf32, #tpu.memory_space<vmem>>, %arg5: memref<1x64xf32, #tpu.memory_space<vmem>>, %arg6: memref<64x64xf32, #tpu.memory_space<vmem>>, %arg7: memref<1x64xf32, #tpu.memory_space<vmem>>, %arg8: memref<1x64x32xf32, #tpu.memory_space<vmem>>) attributes {dimension_semantics = [#tpu.dimension_semantics<parallel>], iteration_bounds = array<i64: 2>, scalar_prefetch = 0 : i64, scratch_operands = 0 : i64, tpu.core_type = #tpu.core_type<tc>, window_params = [{transform_indices = @transform_0, window_bounds = array<i64: 1, 64, 32>}, {pipeline_mode = #tpu.pipeline_mode<synchronous>, transform_indices = @transform_1, window_bounds = array<i64: 1, 64, 32>}, {pipeline_mode = #tpu.pipeline_mode<synchronous>, transform_indices = @transform_2, window_bounds = array<i64: 1, 64, 32>}, {pipeline_mode = #tpu.pipeline_mode<synchronous>, transform_indices = @transform_3, window_bounds = array<i64: 32, 64>}, {pipeline_mode = #tpu.pipeline_mode<synchronous>, transform_indices = @transform_4, window_bounds = array<i64: 1, 64>}, {pipeline_mode = #tpu.pipeline_mode<synchronous>, transform_indices = @transform_5, window_bounds = array<i64: 64, 64>}, {pipeline_mode = #tpu.pipeline_mode<synchronous>, transform_indices = @transform_6, window_bounds = array<i64: 1, 64>}, {transform_indices = @transform_7, window_bounds = array<i64: 1, 64, 32>}]} {
    %c0 = arith.constant 0 : index
    %c0_0 = arith.constant 0 : index
    %c0_1 = arith.constant 0 : index
    %0 = vector.load %arg1[%c0, %c0_0, %c0_1] : memref<1x64x32xf32, #tpu.memory_space<vmem>>, vector<1x64x32xf32>
    %1 = vector.shape_cast %0 : vector<1x64x32xf32> to vector<64x32xf32>
    %cst = arith.constant dense<0.000000e+00> : vector<32xf32>
    %2 = vector.multi_reduction <add>, %1, %cst [0] : vector<64x32xf32> to vector<32xf32>
    %3 = vector.shape_cast %2 : vector<32xf32> to vector<1x32xf32>
    %cst_2 = arith.constant 6.400000e+01 : f32
    %4 = vector.broadcast %cst_2 : f32 to vector<1x32xf32>
    %5 = arith.divf %3, %4 : vector<1x32xf32>
    %c0_3 = arith.constant 0 : index
    %c0_4 = arith.constant 0 : index
    %6 = vector.load %arg4[%c0_3, %c0_4] : memref<32x64xf32, #tpu.memory_space<vmem>>, vector<32x64xf32>
    %7 = arith.truncf %5 : vector<1x32xf32> to vector<1x32xbf16>
    %8 = arith.truncf %6 : vector<32x64xf32> to vector<32x64xbf16>
    %cst_5 = arith.constant dense<0.000000e+00> : vector<1x64xf32>
    %9 = tpu.matmul %7, %8, %cst_5 {dimension_numbers = #tpu.dot_dimension_numbers<[1], [0], [0], [1], [0, 0, 1, 1], [], []>} : vector<1x32xbf16>, vector<32x64xbf16>, vector<1x64xf32> -> vector<1x64xf32>
    %c0_6 = arith.constant 0 : index
    %c0_7 = arith.constant 0 : index
    %10 = vector.load %arg5[%c0_6, %c0_7] : memref<1x64xf32, #tpu.memory_space<vmem>>, vector<1x64xf32>
    %11 = arith.addf %9, %10 : vector<1x64xf32>
    %cst_8 = arith.constant 0.000000e+00 : f32
    %12 = vector.broadcast %cst_8 : f32 to vector<1x64xf32>
    %13 = arith.maximumf %11, %12 : vector<1x64xf32>
    %c0_9 = arith.constant 0 : index
    %c0_10 = arith.constant 0 : index
    %14 = vector.load %arg6[%c0_9, %c0_10] : memref<64x64xf32, #tpu.memory_space<vmem>>, vector<64x64xf32>
    %15 = arith.truncf %13 : vector<1x64xf32> to vector<1x64xbf16>
    %16 = arith.truncf %14 : vector<64x64xf32> to vector<64x64xbf16>
    %cst_11 = arith.constant dense<0.000000e+00> : vector<1x64xf32>
    %17 = tpu.matmul %15, %16, %cst_11 {dimension_numbers = #tpu.dot_dimension_numbers<[1], [0], [0], [1], [0, 0, 1, 1], [], []>} : vector<1x64xbf16>, vector<64x64xbf16>, vector<1x64xf32> -> vector<1x64xf32>
    %c0_12 = arith.constant 0 : index
    %c0_13 = arith.constant 0 : index
    %18 = vector.load %arg7[%c0_12, %c0_13] : memref<1x64xf32, #tpu.memory_space<vmem>>, vector<1x64xf32>
    %19 = arith.addf %17, %18 : vector<1x64xf32>
    %20 = arith.negf %19 : vector<1x64xf32>
    %21 = math.exp %20 : vector<1x64xf32>
    %cst_14 = arith.constant 1.000000e+00 : f32
    %22 = vector.broadcast %cst_14 : f32 to vector<1x64xf32>
    %23 = arith.addf %22, %21 : vector<1x64xf32>
    %24 = arith.divf %22, %23 : vector<1x64xf32>
    %25 = vector.extract_strided_slice %24 {offsets = [0, 0], sizes = [1, 32], strides = [1, 1]} : vector<1x64xf32> to vector<1x32xf32>
    %26 = vector.extract_strided_slice %24 {offsets = [0, 32], sizes = [1, 32], strides = [1, 1]} : vector<1x64xf32> to vector<1x32xf32>
    %c0_15 = arith.constant 0 : index
    %c0_16 = arith.constant 0 : index
    %c0_17 = arith.constant 0 : index
    %27 = vector.load %arg2[%c0_15, %c0_16, %c0_17] : memref<1x64x32xf32, #tpu.memory_space<vmem>>, vector<1x64x32xf32>
    %28 = vector.shape_cast %27 : vector<1x64x32xf32> to vector<64x32xf32>
    %29 = vector.broadcast %25 : vector<1x32xf32> to vector<64x32xf32>
    %30 = arith.mulf %29, %28 : vector<64x32xf32>
    %31 = arith.addf %1, %30 : vector<64x32xf32>
    %c0_18 = arith.constant 0 : index
    %c0_19 = arith.constant 0 : index
    %c0_20 = arith.constant 0 : index
    %32 = vector.load %arg3[%c0_18, %c0_19, %c0_20] : memref<1x64x32xf32, #tpu.memory_space<vmem>>, vector<1x64x32xf32>
    %33 = vector.shape_cast %32 : vector<1x64x32xf32> to vector<64x32xf32>
    %34 = vector.broadcast %26 : vector<1x32xf32> to vector<64x32xf32>
    %35 = arith.mulf %34, %33 : vector<64x32xf32>
    %36 = arith.addf %31, %35 : vector<64x32xf32>
    %c0_21 = arith.constant 0 : index
    %c0_22 = arith.constant 0 : index
    %c0_23 = arith.constant 0 : index
    %37 = vector.load %arg8[%c0_21, %c0_22, %c0_23] : memref<1x64x32xf32, #tpu.memory_space<vmem>>, vector<1x64x32xf32>
    %38 = vector.shape_cast %37 : vector<1x64x32xf32> to vector<64x32xf32>
    %39 = vector.shape_cast %36 : vector<64x32xf32> to vector<1x64x32xf32>
    tpu.vector_store %arg8[%c0_21, %c0_22, %c0_23], %39 {strides = array<i32>} : memref<1x64x32xf32, #tpu.memory_space<vmem>>, vector<1x64x32xf32>,
    return
  }
  func.func @transform_0(%arg0: i32) -> (i32, i32, i32) {
    %c0_i32 = arith.constant 0 : i32
    %c0_i32_0 = arith.constant 0 : i32
    %c0_i32_1 = arith.constant 0 : i32
    return %arg0, %c0_i32, %c0_i32_0 : i32, i32, i32
  }
  func.func @transform_1(%arg0: i32) -> (i32, i32, i32) {
    %c0_i32 = arith.constant 0 : i32
    %c0_i32_0 = arith.constant 0 : i32
    %c0_i32_1 = arith.constant 0 : i32
    %c0_i32_2 = arith.constant 0 : i32
    return %c0_i32, %c0_i32_0, %c0_i32_1 : i32, i32, i32
  }
  func.func @transform_2(%arg0: i32) -> (i32, i32, i32) {
    %c0_i32 = arith.constant 0 : i32
    %c0_i32_0 = arith.constant 0 : i32
    %c0_i32_1 = arith.constant 0 : i32
    %c0_i32_2 = arith.constant 0 : i32
    return %c0_i32, %c0_i32_0, %c0_i32_1 : i32, i32, i32
  }
  func.func @transform_3(%arg0: i32) -> (i32, i32) {
    %c0_i32 = arith.constant 0 : i32
    %c0_i32_0 = arith.constant 0 : i32
    %c0_i32_1 = arith.constant 0 : i32
    return %c0_i32, %c0_i32_0 : i32, i32
  }
  func.func @transform_4(%arg0: i32) -> (i32, i32) {
    %c0_i32 = arith.constant 0 : i32
    %c0_i32_0 = arith.constant 0 : i32
    %c0_i32_1 = arith.constant 0 : i32
    return %c0_i32, %c0_i32_0 : i32, i32
  }
  func.func @transform_5(%arg0: i32) -> (i32, i32) {
    %c0_i32 = arith.constant 0 : i32
    %c0_i32_0 = arith.constant 0 : i32
    %c0_i32_1 = arith.constant 0 : i32
    return %c0_i32, %c0_i32_0 : i32, i32
  }
  func.func @transform_6(%arg0: i32) -> (i32, i32) {
    %c0_i32 = arith.constant 0 : i32
    %c0_i32_0 = arith.constant 0 : i32
    %c0_i32_1 = arith.constant 0 : i32
    return %c0_i32, %c0_i32_0 : i32, i32
  }
  func.func @transform_7(%arg0: i32) -> (i32, i32, i32) {
    %c0_i32 = arith.constant 0 : i32
    %c0_i32_0 = arith.constant 0 : i32
    %c0_i32_1 = arith.constant 0 : i32
    return %arg0, %c0_i32, %c0_i32_0 : i32, i32, i32
  }
}

module attributes {stable_mosaic.version = 11 : i64} {
  func.func @_layernorm_kernel(%arg0: memref<128x32xf32, #tpu.memory_space<vmem>>, %arg1: memref<1x32xf32, #tpu.memory_space<vmem>>, %arg2: memref<1x32xf32, #tpu.memory_space<vmem>>, %arg3: memref<128x32xf32, #tpu.memory_space<vmem>>) attributes {dimension_semantics = [], scalar_prefetch = 0 : i64, scratch_operands = 0 : i64, tpu.core_type = #tpu.core_type<tc>} {
    %c0 = arith.constant 0 : index
    %c0_0 = arith.constant 0 : index
    %0 = vector.load %arg0[%c0, %c0_0] : memref<128x32xf32, #tpu.memory_space<vmem>>, vector<128x32xf32>
    %c0_1 = arith.constant 0 : index
    %c0_2 = arith.constant 0 : index
    %1 = vector.load %arg1[%c0_1, %c0_2] : memref<1x32xf32, #tpu.memory_space<vmem>>, vector<1x32xf32>
    %c0_3 = arith.constant 0 : index
    %c0_4 = arith.constant 0 : index
    %2 = vector.load %arg2[%c0_3, %c0_4] : memref<1x32xf32, #tpu.memory_space<vmem>>, vector<1x32xf32>
    %cst = arith.constant dense<0.000000e+00> : vector<128xf32>
    %3 = vector.multi_reduction <add>, %0, %cst [1] : vector<128x32xf32> to vector<128xf32>
    %4 = vector.shape_cast %3 : vector<128xf32> to vector<128x1xf32>
    %cst_5 = arith.constant 3.200000e+01 : f32
    %5 = vector.broadcast %cst_5 : f32 to vector<128x1xf32>
    %6 = arith.divf %4, %5 : vector<128x1xf32>
    %7 = vector.broadcast %6 : vector<128x1xf32> to vector<128x32xf32>
    %8 = arith.subf %0, %7 : vector<128x32xf32>
    %9 = arith.mulf %8, %8 : vector<128x32xf32>
    %cst_6 = arith.constant dense<0.000000e+00> : vector<128xf32>
    %10 = vector.multi_reduction <add>, %9, %cst_6 [1] : vector<128x32xf32> to vector<128xf32>
    %11 = vector.shape_cast %10 : vector<128xf32> to vector<128x1xf32>
    %cst_7 = arith.constant 3.200000e+01 : f32
    %12 = vector.broadcast %cst_7 : f32 to vector<128x1xf32>
    %13 = arith.divf %11, %12 : vector<128x1xf32>
    %cst_8 = arith.constant 9.99999974E-6 : f32
    %14 = vector.broadcast %cst_8 : f32 to vector<128x1xf32>
    %15 = arith.addf %13, %14 : vector<128x1xf32>
    %16 = math.rsqrt %15 : vector<128x1xf32>
    %17 = vector.broadcast %16 : vector<128x1xf32> to vector<128x32xf32>
    %18 = arith.mulf %8, %17 : vector<128x32xf32>
    %19 = vector.broadcast %1 : vector<1x32xf32> to vector<128x32xf32>
    %20 = arith.mulf %18, %19 : vector<128x32xf32>
    %21 = vector.broadcast %2 : vector<1x32xf32> to vector<128x32xf32>
    %22 = arith.addf %20, %21 : vector<128x32xf32>
    %c0_9 = arith.constant 0 : index
    %c0_10 = arith.constant 0 : index
    %23 = vector.load %arg3[%c0_9, %c0_10] : memref<128x32xf32, #tpu.memory_space<vmem>>, vector<128x32xf32>
    tpu.vector_store %arg3[%c0_9, %c0_10], %22 {strides = array<i32>} : memref<128x32xf32, #tpu.memory_space<vmem>>, vector<128x32xf32>,
    return
  }
}

module attributes {stable_mosaic.version = 11 : i64} {
  func.func @_corner_layer_kernel(%arg0: i32, %arg1: memref<1x64x32xf32, #tpu.memory_space<vmem>>, %arg2: memref<1x64x32xf32, #tpu.memory_space<vmem>>, %arg3: memref<1x32xf32, #tpu.memory_space<vmem>>, %arg4: memref<1x32xf32, #tpu.memory_space<vmem>>, %arg5: memref<32x16xf32, #tpu.memory_space<vmem>>, %arg6: memref<32x32xf32, #tpu.memory_space<vmem>>, %arg7: memref<16x32xf32, #tpu.memory_space<vmem>>, %arg8: memref<1x32xf32, #tpu.memory_space<vmem>>, %arg9: memref<1x32xf32, #tpu.memory_space<vmem>>, %arg10: memref<32x64xf32, #tpu.memory_space<vmem>>, %arg11: memref<1x64xf32, #tpu.memory_space<vmem>>, %arg12: memref<576x64xf32, #tpu.memory_space<vmem>>, %arg13: memref<9x64xf32, #tpu.memory_space<vmem>>, %arg14: memref<1x64xf32, #tpu.memory_space<vmem>>, %arg15: memref<64x32xf32, #tpu.memory_space<vmem>>, %arg16: memref<1x32xf32, #tpu.memory_space<vmem>>, %arg17: memref<1x64x32xf32, #tpu.memory_space<vmem>>) attributes {dimension_semantics = [#tpu.dimension_semantics<parallel>], iteration_bounds = array<i64: 2>, scalar_prefetch = 0 : i64, scratch_operands = 0 : i64, tpu.core_type = #tpu.core_type<tc>, window_params = [{transform_indices = @transform_0, window_bounds = array<i64: 1, 64, 32>}, {transform_indices = @transform_1, window_bounds = array<i64: 1, 64, 32>}, {pipeline_mode = #tpu.pipeline_mode<synchronous>, transform_indices = @transform_2, window_bounds = array<i64: 1, 32>}, {pipeline_mode = #tpu.pipeline_mode<synchronous>, transform_indices = @transform_3, window_bounds = array<i64: 1, 32>}, {pipeline_mode = #tpu.pipeline_mode<synchronous>, transform_indices = @transform_4, window_bounds = array<i64: 32, 16>}, {pipeline_mode = #tpu.pipeline_mode<synchronous>, transform_indices = @transform_5, window_bounds = array<i64: 32, 32>}, {pipeline_mode = #tpu.pipeline_mode<synchronous>, transform_indices = @transform_6, window_bounds = array<i64: 16, 32>}, {pipeline_mode = #tpu.pipeline_mode<synchronous>, transform_indices = @transform_7, window_bounds = array<i64: 1, 32>}, {pipeline_mode = #tpu.pipeline_mode<synchronous>, transform_indices = @transform_8, window_bounds = array<i64: 1, 32>}, {pipeline_mode = #tpu.pipeline_mode<synchronous>, transform_indices = @transform_9, window_bounds = array<i64: 32, 64>}, {pipeline_mode = #tpu.pipeline_mode<synchronous>, transform_indices = @transform_10, window_bounds = array<i64: 1, 64>}, {pipeline_mode = #tpu.pipeline_mode<synchronous>, transform_indices = @transform_11, window_bounds = array<i64: 576, 64>}, {pipeline_mode = #tpu.pipeline_mode<synchronous>, transform_indices = @transform_12, window_bounds = array<i64: 9, 64>}, {pipeline_mode = #tpu.pipeline_mode<synchronous>, transform_indices = @transform_13, window_bounds = array<i64: 1, 64>}, {pipeline_mode = #tpu.pipeline_mode<synchronous>, transform_indices = @transform_14, window_bounds = array<i64: 64, 32>}, {pipeline_mode = #tpu.pipeline_mode<synchronous>, transform_indices = @transform_15, window_bounds = array<i64: 1, 32>}, {transform_indices = @transform_16, window_bounds = array<i64: 1, 64, 32>}]} {
    %c0 = arith.constant 0 : index
    %c0_0 = arith.constant 0 : index
    %c0_1 = arith.constant 0 : index
    %0 = vector.load %arg1[%c0, %c0_0, %c0_1] : memref<1x64x32xf32, #tpu.memory_space<vmem>>, vector<1x64x32xf32>
    %1 = vector.shape_cast %0 : vector<1x64x32xf32> to vector<64x32xf32>
    %c0_2 = arith.constant 0 : index
    %c0_3 = arith.constant 0 : index
    %c0_4 = arith.constant 0 : index
    %2 = vector.load %arg2[%c0_2, %c0_3, %c0_4] : memref<1x64x32xf32, #tpu.memory_space<vmem>>, vector<1x64x32xf32>
    %3 = vector.shape_cast %2 : vector<1x64x32xf32> to vector<64x32xf32>
    %c0_5 = arith.constant 0 : index
    %c0_6 = arith.constant 0 : index
    %4 = vector.load %arg3[%c0_5, %c0_6] : memref<1x32xf32, #tpu.memory_space<vmem>>, vector<1x32xf32>
    %c0_7 = arith.constant 0 : index
    %c0_8 = arith.constant 0 : index
    %5 = vector.load %arg4[%c0_7, %c0_8] : memref<1x32xf32, #tpu.memory_space<vmem>>, vector<1x32xf32>
    %cst = arith.constant dense<0.000000e+00> : vector<64xf32>
    %6 = vector.multi_reduction <add>, %1, %cst [1] : vector<64x32xf32> to vector<64xf32>
    %7 = vector.shape_cast %6 : vector<64xf32> to vector<64x1xf32>
    %cst_9 = arith.constant 3.200000e+01 : f32
    %8 = vector.broadcast %cst_9 : f32 to vector<64x1xf32>
    %9 = arith.divf %7, %8 : vector<64x1xf32>
    %10 = vector.broadcast %9 : vector<64x1xf32> to vector<64x32xf32>
    %11 = arith.subf %1, %10 : vector<64x32xf32>
    %12 = arith.mulf %11, %11 : vector<64x32xf32>
    %cst_10 = arith.constant dense<0.000000e+00> : vector<64xf32>
    %13 = vector.multi_reduction <add>, %12, %cst_10 [1] : vector<64x32xf32> to vector<64xf32>
    %14 = vector.shape_cast %13 : vector<64xf32> to vector<64x1xf32>
    %cst_11 = arith.constant 3.200000e+01 : f32
    %15 = vector.broadcast %cst_11 : f32 to vector<64x1xf32>
    %16 = arith.divf %14, %15 : vector<64x1xf32>
    %cst_12 = arith.constant 9.99999974E-6 : f32
    %17 = vector.broadcast %cst_12 : f32 to vector<64x1xf32>
    %18 = arith.addf %16, %17 : vector<64x1xf32>
    %19 = math.rsqrt %18 : vector<64x1xf32>
    %20 = vector.broadcast %19 : vector<64x1xf32> to vector<64x32xf32>
    %21 = arith.mulf %11, %20 : vector<64x32xf32>
    %22 = vector.broadcast %4 : vector<1x32xf32> to vector<64x32xf32>
    %23 = arith.mulf %21, %22 : vector<64x32xf32>
    %24 = vector.broadcast %5 : vector<1x32xf32> to vector<64x32xf32>
    %25 = arith.addf %23, %24 : vector<64x32xf32>
    %c0_13 = arith.constant 0 : index
    %c0_14 = arith.constant 0 : index
    %26 = vector.load %arg5[%c0_13, %c0_14] : memref<32x16xf32, #tpu.memory_space<vmem>>, vector<32x16xf32>
    %27 = arith.truncf %25 : vector<64x32xf32> to vector<64x32xbf16>
    %28 = arith.truncf %26 : vector<32x16xf32> to vector<32x16xbf16>
    %cst_15 = arith.constant dense<0.000000e+00> : vector<64x16xf32>
    %29 = tpu.matmul %27, %28, %cst_15 {dimension_numbers = #tpu.dot_dimension_numbers<[1], [0], [0], [1], [0, 0, 1, 1], [], []>} : vector<64x32xbf16>, vector<32x16xbf16>, vector<64x16xf32> -> vector<64x16xf32>
    %c0_16 = arith.constant 0 : index
    %c0_17 = arith.constant 0 : index
    %30 = vector.load %arg6[%c0_16, %c0_17] : memref<32x32xf32, #tpu.memory_space<vmem>>, vector<32x32xf32>
    %31 = arith.truncf %3 : vector<64x32xf32> to vector<64x32xbf16>
    %32 = arith.truncf %30 : vector<32x32xf32> to vector<32x32xbf16>
    %cst_18 = arith.constant dense<0.000000e+00> : vector<64x32xf32>
    %33 = tpu.matmul %31, %32, %cst_18 {dimension_numbers = #tpu.dot_dimension_numbers<[1], [0], [0], [1], [0, 0, 1, 1], [], []>} : vector<64x32xbf16>, vector<32x32xbf16>, vector<64x32xf32> -> vector<64x32xf32>
    %c0_19 = arith.constant 0 : index
    %c0_20 = arith.constant 0 : index
    %34 = vector.load %arg7[%c0_19, %c0_20] : memref<16x32xf32, #tpu.memory_space<vmem>>, vector<16x32xf32>
    %35 = vector.extract_strided_slice %29 {offsets = [0, 0], sizes = [64, 8], strides = [1, 1]} : vector<64x16xf32> to vector<64x8xf32>
    %36 = vector.extract_strided_slice %33 {offsets = [0, 0], sizes = [64, 8], strides = [1, 1]} : vector<64x32xf32> to vector<64x8xf32>
    %37 = vector.extract_strided_slice %33 {offsets = [0, 16], sizes = [64, 8], strides = [1, 1]} : vector<64x32xf32> to vector<64x8xf32>
    %38 = arith.truncf %35 : vector<64x8xf32> to vector<64x8xbf16>
    %39 = arith.truncf %36 : vector<64x8xf32> to vector<64x8xbf16>
    %cst_21 = arith.constant dense<0.000000e+00> : vector<64x64xf32>
    %40 = tpu.matmul %38, %39, %cst_21 {dimension_numbers = #tpu.dot_dimension_numbers<[1], [1], [0], [0], [0, 0, 1, 0], [], []>} : vector<64x8xbf16>, vector<64x8xbf16>, vector<64x64xf32> -> vector<64x64xf32>
    %cst_22 = arith.constant dense<0xFF800000> : vector<64xf32>
    %41 = vector.multi_reduction <maximumf>, %40, %cst_22 [1] : vector<64x64xf32> to vector<64xf32>
    %42 = vector.shape_cast %41 : vector<64xf32> to vector<64x1xf32>
    %43 = vector.broadcast %42 : vector<64x1xf32> to vector<64x64xf32>
    %44 = arith.subf %40, %43 : vector<64x64xf32>
    %45 = math.exp %44 : vector<64x64xf32>
    %cst_23 = arith.constant dense<0.000000e+00> : vector<64xf32>
    %46 = vector.multi_reduction <add>, %45, %cst_23 [1] : vector<64x64xf32> to vector<64xf32>
    %47 = vector.shape_cast %46 : vector<64xf32> to vector<64x1xf32>
    %48 = tpu.reciprocal %47 {approx = true} : vector<64x1xf32> -> vector<64x1xf32>
    %49 = vector.broadcast %48 : vector<64x1xf32> to vector<64x64xf32>
    %50 = arith.mulf %45, %49 : vector<64x64xf32>
    %51 = arith.truncf %50 : vector<64x64xf32> to vector<64x64xbf16>
    %52 = arith.truncf %37 : vector<64x8xf32> to vector<64x8xbf16>
    %cst_24 = arith.constant dense<0.000000e+00> : vector<64x8xf32>
    %53 = tpu.matmul %51, %52, %cst_24 {dimension_numbers = #tpu.dot_dimension_numbers<[1], [0], [0], [1], [0, 0, 1, 1], [], []>} : vector<64x64xbf16>, vector<64x8xbf16>, vector<64x8xf32> -> vector<64x8xf32>
    %54 = vector.extract_strided_slice %34 {offsets = [0, 0], sizes = [8, 32], strides = [1, 1]} : vector<16x32xf32> to vector<8x32xf32>
    %55 = arith.truncf %53 : vector<64x8xf32> to vector<64x8xbf16>
    %56 = arith.truncf %54 : vector<8x32xf32> to vector<8x32xbf16>
    %cst_25 = arith.constant dense<0.000000e+00> : vector<64x32xf32>
    %57 = tpu.matmul %55, %56, %cst_25 {dimension_numbers = #tpu.dot_dimension_numbers<[1], [0], [0], [1], [0, 0, 1, 1], [], []>} : vector<64x8xbf16>, vector<8x32xbf16>, vector<64x32xf32> -> vector<64x32xf32>
    %58 = arith.addf %1, %57 : vector<64x32xf32>
    %59 = vector.extract_strided_slice %29 {offsets = [0, 8], sizes = [64, 8], strides = [1, 1]} : vector<64x16xf32> to vector<64x8xf32>
    %60 = vector.extract_strided_slice %33 {offsets = [0, 8], sizes = [64, 8], strides = [1, 1]} : vector<64x32xf32> to vector<64x8xf32>
    %61 = vector.extract_strided_slice %33 {offsets = [0, 24], sizes = [64, 8], strides = [1, 1]} : vector<64x32xf32> to vector<64x8xf32>
    %62 = arith.truncf %59 : vector<64x8xf32> to vector<64x8xbf16>
    %63 = arith.truncf %60 : vector<64x8xf32> to vector<64x8xbf16>
    %cst_26 = arith.constant dense<0.000000e+00> : vector<64x64xf32>
    %64 = tpu.matmul %62, %63, %cst_26 {dimension_numbers = #tpu.dot_dimension_numbers<[1], [1], [0], [0], [0, 0, 1, 0], [], []>} : vector<64x8xbf16>, vector<64x8xbf16>, vector<64x64xf32> -> vector<64x64xf32>
    %cst_27 = arith.constant dense<0xFF800000> : vector<64xf32>
    %65 = vector.multi_reduction <maximumf>, %64, %cst_27 [1] : vector<64x64xf32> to vector<64xf32>
    %66 = vector.shape_cast %65 : vector<64xf32> to vector<64x1xf32>
    %67 = vector.broadcast %66 : vector<64x1xf32> to vector<64x64xf32>
    %68 = arith.subf %64, %67 : vector<64x64xf32>
    %69 = math.exp %68 : vector<64x64xf32>
    %cst_28 = arith.constant dense<0.000000e+00> : vector<64xf32>
    %70 = vector.multi_reduction <add>, %69, %cst_28 [1] : vector<64x64xf32> to vector<64xf32>
    %71 = vector.shape_cast %70 : vector<64xf32> to vector<64x1xf32>
    %72 = tpu.reciprocal %71 {approx = true} : vector<64x1xf32> -> vector<64x1xf32>
    %73 = vector.broadcast %72 : vector<64x1xf32> to vector<64x64xf32>
    %74 = arith.mulf %69, %73 : vector<64x64xf32>
    %75 = arith.truncf %74 : vector<64x64xf32> to vector<64x64xbf16>
    %76 = arith.truncf %61 : vector<64x8xf32> to vector<64x8xbf16>
    %cst_29 = arith.constant dense<0.000000e+00> : vector<64x8xf32>
    %77 = tpu.matmul %75, %76, %cst_29 {dimension_numbers = #tpu.dot_dimension_numbers<[1], [0], [0], [1], [0, 0, 1, 1], [], []>} : vector<64x64xbf16>, vector<64x8xbf16>, vector<64x8xf32> -> vector<64x8xf32>
    %78 = vector.extract_strided_slice %34 {offsets = [8, 0], sizes = [8, 32], strides = [1, 1]} : vector<16x32xf32> to vector<8x32xf32>
    %79 = arith.truncf %77 : vector<64x8xf32> to vector<64x8xbf16>
    %80 = arith.truncf %78 : vector<8x32xf32> to vector<8x32xbf16>
    %cst_30 = arith.constant dense<0.000000e+00> : vector<64x32xf32>
    %81 = tpu.matmul %79, %80, %cst_30 {dimension_numbers = #tpu.dot_dimension_numbers<[1], [0], [0], [1], [0, 0, 1, 1], [], []>} : vector<64x8xbf16>, vector<8x32xbf16>, vector<64x32xf32> -> vector<64x32xf32>
    %82 = arith.addf %58, %81 : vector<64x32xf32>
    %c0_31 = arith.constant 0 : index
    %c0_32 = arith.constant 0 : index
    %83 = vector.load %arg8[%c0_31, %c0_32] : memref<1x32xf32, #tpu.memory_space<vmem>>, vector<1x32xf32>
    %c0_33 = arith.constant 0 : index
    %c0_34 = arith.constant 0 : index
    %84 = vector.load %arg9[%c0_33, %c0_34] : memref<1x32xf32, #tpu.memory_space<vmem>>, vector<1x32xf32>
    %cst_35 = arith.constant dense<0.000000e+00> : vector<64xf32>
    %85 = vector.multi_reduction <add>, %82, %cst_35 [1] : vector<64x32xf32> to vector<64xf32>
    %86 = vector.shape_cast %85 : vector<64xf32> to vector<64x1xf32>
    %cst_36 = arith.constant 3.200000e+01 : f32
    %87 = vector.broadcast %cst_36 : f32 to vector<64x1xf32>
    %88 = arith.divf %86, %87 : vector<64x1xf32>
    %89 = vector.broadcast %88 : vector<64x1xf32> to vector<64x32xf32>
    %90 = arith.subf %82, %89 : vector<64x32xf32>
    %91 = arith.mulf %90, %90 : vector<64x32xf32>
    %cst_37 = arith.constant dense<0.000000e+00> : vector<64xf32>
    %92 = vector.multi_reduction <add>, %91, %cst_37 [1] : vector<64x32xf32> to vector<64xf32>
    %93 = vector.shape_cast %92 : vector<64xf32> to vector<64x1xf32>
    %cst_38 = arith.constant 3.200000e+01 : f32
    %94 = vector.broadcast %cst_38 : f32 to vector<64x1xf32>
    %95 = arith.divf %93, %94 : vector<64x1xf32>
    %cst_39 = arith.constant 9.99999974E-6 : f32
    %96 = vector.broadcast %cst_39 : f32 to vector<64x1xf32>
    %97 = arith.addf %95, %96 : vector<64x1xf32>
    %98 = math.rsqrt %97 : vector<64x1xf32>
    %99 = vector.broadcast %98 : vector<64x1xf32> to vector<64x32xf32>
    %100 = arith.mulf %90, %99 : vector<64x32xf32>
    %101 = vector.broadcast %83 : vector<1x32xf32> to vector<64x32xf32>
    %102 = arith.mulf %100, %101 : vector<64x32xf32>
    %103 = vector.broadcast %84 : vector<1x32xf32> to vector<64x32xf32>
    %104 = arith.addf %102, %103 : vector<64x32xf32>
    %c0_40 = arith.constant 0 : index
    %c0_41 = arith.constant 0 : index
    %105 = vector.load %arg10[%c0_40, %c0_41] : memref<32x64xf32, #tpu.memory_space<vmem>>, vector<32x64xf32>
    %106 = arith.truncf %104 : vector<64x32xf32> to vector<64x32xbf16>
    %107 = arith.truncf %105 : vector<32x64xf32> to vector<32x64xbf16>
    %cst_42 = arith.constant dense<0.000000e+00> : vector<64x64xf32>
    %108 = tpu.matmul %106, %107, %cst_42 {dimension_numbers = #tpu.dot_dimension_numbers<[1], [0], [0], [1], [0, 0, 1, 1], [], []>} : vector<64x32xbf16>, vector<32x64xbf16>, vector<64x64xf32> -> vector<64x64xf32>
    %c0_43 = arith.constant 0 : index
    %c0_44 = arith.constant 0 : index
    %109 = vector.load %arg11[%c0_43, %c0_44] : memref<1x64xf32, #tpu.memory_space<vmem>>, vector<1x64xf32>
    %110 = vector.broadcast %109 : vector<1x64xf32> to vector<64x64xf32>
    %111 = arith.addf %108, %110 : vector<64x64xf32>
    %cst_45 = arith.constant 0.000000e+00 : f32
    %112 = vector.broadcast %cst_45 : f32 to vector<64x64xf32>
    %113 = arith.maximumf %111, %112 : vector<64x64xf32>
    %c0_46 = arith.constant 0 : index
    %c0_47 = arith.constant 0 : index
    %114 = vector.load %arg12[%c0_46, %c0_47] : memref<576x64xf32, #tpu.memory_space<vmem>>, vector<576x64xf32>
    %115 = arith.truncf %114 : vector<576x64xf32> to vector<576x64xbf16>
    %116 = arith.truncf %113 : vector<64x64xf32> to vector<64x64xbf16>
    %cst_48 = arith.constant dense<0.000000e+00> : vector<576x64xf32>
    %117 = tpu.matmul %115, %116, %cst_48 {dimension_numbers = #tpu.dot_dimension_numbers<[1], [0], [0], [1], [0, 0, 1, 1], [], []>} : vector<576x64xbf16>, vector<64x64xbf16>, vector<576x64xf32> -> vector<576x64xf32>
    %118 = vector.shape_cast %117 : vector<576x64xf32> to vector<9x64x64xf32>
    %c0_49 = arith.constant 0 : index
    %c0_50 = arith.constant 0 : index
    %119 = vector.load %arg13[%c0_49, %c0_50] : memref<9x64xf32, #tpu.memory_space<vmem>>, vector<9x64xf32>
    %120 = vector.extract_strided_slice %118 {offsets = [0, 0, 0], sizes = [1, 64, 64], strides = [1, 1, 1]} : vector<9x64x64xf32> to vector<1x64x64xf32>
    %121 = vector.shape_cast %120 : vector<1x64x64xf32> to vector<64x64xf32>
    %122 = vector.extract_strided_slice %119 {offsets = [0, 0], sizes = [1, 64], strides = [1, 1]} : vector<9x64xf32> to vector<1x64xf32>
    %123 = vector.broadcast %122 : vector<1x64xf32> to vector<64x64xf32>
    %124 = arith.mulf %121, %123 : vector<64x64xf32>
    %125 = vector.extract_strided_slice %118 {offsets = [1, 0, 0], sizes = [1, 64, 64], strides = [1, 1, 1]} : vector<9x64x64xf32> to vector<1x64x64xf32>
    %126 = vector.shape_cast %125 : vector<1x64x64xf32> to vector<64x64xf32>
    %127 = vector.extract_strided_slice %119 {offsets = [1, 0], sizes = [1, 64], strides = [1, 1]} : vector<9x64xf32> to vector<1x64xf32>
    %128 = vector.broadcast %127 : vector<1x64xf32> to vector<64x64xf32>
    %129 = arith.mulf %126, %128 : vector<64x64xf32>
    %130 = arith.addf %124, %129 : vector<64x64xf32>
    %131 = vector.extract_strided_slice %118 {offsets = [2, 0, 0], sizes = [1, 64, 64], strides = [1, 1, 1]} : vector<9x64x64xf32> to vector<1x64x64xf32>
    %132 = vector.shape_cast %131 : vector<1x64x64xf32> to vector<64x64xf32>
    %133 = vector.extract_strided_slice %119 {offsets = [2, 0], sizes = [1, 64], strides = [1, 1]} : vector<9x64xf32> to vector<1x64xf32>
    %134 = vector.broadcast %133 : vector<1x64xf32> to vector<64x64xf32>
    %135 = arith.mulf %132, %134 : vector<64x64xf32>
    %136 = arith.addf %130, %135 : vector<64x64xf32>
    %137 = vector.extract_strided_slice %118 {offsets = [3, 0, 0], sizes = [1, 64, 64], strides = [1, 1, 1]} : vector<9x64x64xf32> to vector<1x64x64xf32>
    %138 = vector.shape_cast %137 : vector<1x64x64xf32> to vector<64x64xf32>
    %139 = vector.extract_strided_slice %119 {offsets = [3, 0], sizes = [1, 64], strides = [1, 1]} : vector<9x64xf32> to vector<1x64xf32>
    %140 = vector.broadcast %139 : vector<1x64xf32> to vector<64x64xf32>
    %141 = arith.mulf %138, %140 : vector<64x64xf32>
    %142 = arith.addf %136, %141 : vector<64x64xf32>
    %143 = vector.extract_strided_slice %118 {offsets = [4, 0, 0], sizes = [1, 64, 64], strides = [1, 1, 1]} : vector<9x64x64xf32> to vector<1x64x64xf32>
    %144 = vector.shape_cast %143 : vector<1x64x64xf32> to vector<64x64xf32>
    %145 = vector.extract_strided_slice %119 {offsets = [4, 0], sizes = [1, 64], strides = [1, 1]} : vector<9x64xf32> to vector<1x64xf32>
    %146 = vector.broadcast %145 : vector<1x64xf32> to vector<64x64xf32>
    %147 = arith.mulf %144, %146 : vector<64x64xf32>
    %148 = arith.addf %142, %147 : vector<64x64xf32>
    %149 = vector.extract_strided_slice %118 {offsets = [5, 0, 0], sizes = [1, 64, 64], strides = [1, 1, 1]} : vector<9x64x64xf32> to vector<1x64x64xf32>
    %150 = vector.shape_cast %149 : vector<1x64x64xf32> to vector<64x64xf32>
    %151 = vector.extract_strided_slice %119 {offsets = [5, 0], sizes = [1, 64], strides = [1, 1]} : vector<9x64xf32> to vector<1x64xf32>
    %152 = vector.broadcast %151 : vector<1x64xf32> to vector<64x64xf32>
    %153 = arith.mulf %150, %152 : vector<64x64xf32>
    %154 = arith.addf %148, %153 : vector<64x64xf32>
    %155 = vector.extract_strided_slice %118 {offsets = [6, 0, 0], sizes = [1, 64, 64], strides = [1, 1, 1]} : vector<9x64x64xf32> to vector<1x64x64xf32>
    %156 = vector.shape_cast %155 : vector<1x64x64xf32> to vector<64x64xf32>
    %157 = vector.extract_strided_slice %119 {offsets = [6, 0], sizes = [1, 64], strides = [1, 1]} : vector<9x64xf32> to vector<1x64xf32>
    %158 = vector.broadcast %157 : vector<1x64xf32> to vector<64x64xf32>
    %159 = arith.mulf %156, %158 : vector<64x64xf32>
    %160 = arith.addf %154, %159 : vector<64x64xf32>
    %161 = vector.extract_strided_slice %118 {offsets = [7, 0, 0], sizes = [1, 64, 64], strides = [1, 1, 1]} : vector<9x64x64xf32> to vector<1x64x64xf32>
    %162 = vector.shape_cast %161 : vector<1x64x64xf32> to vector<64x64xf32>
    %163 = vector.extract_strided_slice %119 {offsets = [7, 0], sizes = [1, 64], strides = [1, 1]} : vector<9x64xf32> to vector<1x64xf32>
    %164 = vector.broadcast %163 : vector<1x64xf32> to vector<64x64xf32>
    %165 = arith.mulf %162, %164 : vector<64x64xf32>
    %166 = arith.addf %160, %165 : vector<64x64xf32>
    %167 = vector.extract_strided_slice %118 {offsets = [8, 0, 0], sizes = [1, 64, 64], strides = [1, 1, 1]} : vector<9x64x64xf32> to vector<1x64x64xf32>
    %168 = vector.shape_cast %167 : vector<1x64x64xf32> to vector<64x64xf32>
    %169 = vector.extract_strided_slice %119 {offsets = [8, 0], sizes = [1, 64], strides = [1, 1]} : vector<9x64xf32> to vector<1x64xf32>
    %170 = vector.broadcast %169 : vector<1x64xf32> to vector<64x64xf32>
    %171 = arith.mulf %168, %170 : vector<64x64xf32>
    %172 = arith.addf %166, %171 : vector<64x64xf32>
    %c0_51 = arith.constant 0 : index
    %c0_52 = arith.constant 0 : index
    %173 = vector.load %arg14[%c0_51, %c0_52] : memref<1x64xf32, #tpu.memory_space<vmem>>, vector<1x64xf32>
    %174 = vector.broadcast %173 : vector<1x64xf32> to vector<64x64xf32>
    %175 = arith.addf %172, %174 : vector<64x64xf32>
    %cst_53 = arith.constant 0.000000e+00 : f32
    %176 = vector.broadcast %cst_53 : f32 to vector<64x64xf32>
    %177 = arith.maximumf %175, %176 : vector<64x64xf32>
    %c0_54 = arith.constant 0 : index
    %c0_55 = arith.constant 0 : index
    %178 = vector.load %arg15[%c0_54, %c0_55] : memref<64x32xf32, #tpu.memory_space<vmem>>, vector<64x32xf32>
    %179 = arith.truncf %177 : vector<64x64xf32> to vector<64x64xbf16>
    %180 = arith.truncf %178 : vector<64x32xf32> to vector<64x32xbf16>
    %cst_56 = arith.constant dense<0.000000e+00> : vector<64x32xf32>
    %181 = tpu.matmul %179, %180, %cst_56 {dimension_numbers = #tpu.dot_dimension_numbers<[1], [0], [0], [1], [0, 0, 1, 1], [], []>} : vector<64x64xbf16>, vector<64x32xbf16>, vector<64x32xf32> -> vector<64x32xf32>
    %c0_57 = arith.constant 0 : index
    %c0_58 = arith.constant 0 : index
    %182 = vector.load %arg16[%c0_57, %c0_58] : memref<1x32xf32, #tpu.memory_space<vmem>>, vector<1x32xf32>
    %183 = vector.broadcast %182 : vector<1x32xf32> to vector<64x32xf32>
    %184 = arith.addf %181, %183 : vector<64x32xf32>
    %cst_59 = arith.constant 0.000000e+00 : f32
    %185 = vector.broadcast %cst_59 : f32 to vector<64x32xf32>
    %186 = arith.maximumf %184, %185 : vector<64x32xf32>
    %187 = arith.addf %82, %186 : vector<64x32xf32>
    %c0_60 = arith.constant 0 : index
    %c0_61 = arith.constant 0 : index
    %c0_62 = arith.constant 0 : index
    %188 = vector.load %arg17[%c0_60, %c0_61, %c0_62] : memref<1x64x32xf32, #tpu.memory_space<vmem>>, vector<1x64x32xf32>
    %189 = vector.shape_cast %188 : vector<1x64x32xf32> to vector<64x32xf32>
    %190 = vector.shape_cast %187 : vector<64x32xf32> to vector<1x64x32xf32>
    tpu.vector_store %arg17[%c0_60, %c0_61, %c0_62], %190 {strides = array<i32>} : memref<1x64x32xf32, #tpu.memory_space<vmem>>, vector<1x64x32xf32>,
    return
  }
  func.func @transform_0(%arg0: i32) -> (i32, i32, i32) {
    %c0_i32 = arith.constant 0 : i32
    %c0_i32_0 = arith.constant 0 : i32
    %c0_i32_1 = arith.constant 0 : i32
    return %arg0, %c0_i32, %c0_i32_0 : i32, i32, i32
  }
  func.func @transform_1(%arg0: i32) -> (i32, i32, i32) {
    %c0_i32 = arith.constant 0 : i32
    %c0_i32_0 = arith.constant 0 : i32
    %c0_i32_1 = arith.constant 0 : i32
    return %arg0, %c0_i32, %c0_i32_0 : i32, i32, i32
  }
  func.func @transform_2(%arg0: i32) -> (i32, i32) {
    %c0_i32 = arith.constant 0 : i32
    %c0_i32_0 = arith.constant 0 : i32
    %c0_i32_1 = arith.constant 0 : i32
    return %c0_i32, %c0_i32_0 : i32, i32
  }
  func.func @transform_3(%arg0: i32) -> (i32, i32) {
    %c0_i32 = arith.constant 0 : i32
    %c0_i32_0 = arith.constant 0 : i32
    %c0_i32_1 = arith.constant 0 : i32
    return %c0_i32, %c0_i32_0 : i32, i32
  }
  func.func @transform_4(%arg0: i32) -> (i32, i32) {
    %c0_i32 = arith.constant 0 : i32
    %c0_i32_0 = arith.constant 0 : i32
    %c0_i32_1 = arith.constant 0 : i32
    return %c0_i32, %c0_i32_0 : i32, i32
  }
  func.func @transform_5(%arg0: i32) -> (i32, i32) {
    %c0_i32 = arith.constant 0 : i32
    %c0_i32_0 = arith.constant 0 : i32
    %c0_i32_1 = arith.constant 0 : i32
    return %c0_i32, %c0_i32_0 : i32, i32
  }
  func.func @transform_6(%arg0: i32) -> (i32, i32) {
    %c0_i32 = arith.constant 0 : i32
    %c0_i32_0 = arith.constant 0 : i32
    %c0_i32_1 = arith.constant 0 : i32
    return %c0_i32, %c0_i32_0 : i32, i32
  }
  func.func @transform_7(%arg0: i32) -> (i32, i32) {
    %c0_i32 = arith.constant 0 : i32
    %c0_i32_0 = arith.constant 0 : i32
    %c0_i32_1 = arith.constant 0 : i32
    return %c0_i32, %c0_i32_0 : i32, i32
  }
  func.func @transform_8(%arg0: i32) -> (i32, i32) {
    %c0_i32 = arith.constant 0 : i32
    %c0_i32_0 = arith.constant 0 : i32
    %c0_i32_1 = arith.constant 0 : i32
    return %c0_i32, %c0_i32_0 : i32, i32
  }
  func.func @transform_9(%arg0: i32) -> (i32, i32) {
    %c0_i32 = arith.constant 0 : i32
    %c0_i32_0 = arith.constant 0 : i32
    %c0_i32_1 = arith.constant 0 : i32
    return %c0_i32, %c0_i32_0 : i32, i32
  }
  func.func @transform_10(%arg0: i32) -> (i32, i32) {
    %c0_i32 = arith.constant 0 : i32
    %c0_i32_0 = arith.constant 0 : i32
    %c0_i32_1 = arith.constant 0 : i32
    return %c0_i32, %c0_i32_0 : i32, i32
  }
  func.func @transform_11(%arg0: i32) -> (i32, i32) {
    %c0_i32 = arith.constant 0 : i32
    %c0_i32_0 = arith.constant 0 : i32
    %c0_i32_1 = arith.constant 0 : i32
    return %c0_i32, %c0_i32_0 : i32, i32
  }
  func.func @transform_12(%arg0: i32) -> (i32, i32) {
    %c0_i32 = arith.constant 0 : i32
    %c0_i32_0 = arith.constant 0 : i32
    %c0_i32_1 = arith.constant 0 : i32
    return %c0_i32, %c0_i32_0 : i32, i32
  }
  func.func @transform_13(%arg0: i32) -> (i32, i32) {
    %c0_i32 = arith.constant 0 : i32
    %c0_i32_0 = arith.constant 0 : i32
    %c0_i32_1 = arith.constant 0 : i32
    return %c0_i32, %c0_i32_0 : i32, i32
  }
  func.func @transform_14(%arg0: i32) -> (i32, i32) {
    %c0_i32 = arith.constant 0 : i32
    %c0_i32_0 = arith.constant 0 : i32
    %c0_i32_1 = arith.constant 0 : i32
    return %c0_i32, %c0_i32_0 : i32, i32
  }
  func.func @transform_15(%arg0: i32) -> (i32, i32) {
    %c0_i32 = arith.constant 0 : i32
    %c0_i32_0 = arith.constant 0 : i32
    %c0_i32_1 = arith.constant 0 : i32
    return %c0_i32, %c0_i32_0 : i32, i32
  }
  func.func @transform_16(%arg0: i32) -> (i32, i32, i32) {
    %c0_i32 = arith.constant 0 : i32
    %c0_i32_0 = arith.constant 0 : i32
    %c0_i32_1 = arith.constant 0 : i32
    return %arg0, %c0_i32, %c0_i32_0 : i32, i32, i32
  }
}

</mosaic_0001>

<llo_original>
// kernel: corner_encoder_forward.5
$region0: #{corner_encoder_forward.5}
  #allocation0 [shape = 'u32[]', space=smem, size = 0x4, offset = 0x4, fixed_abs, tag = 'smem constant byte address 0x4 - core index']
  #allocation1 [shape = 'u32[144,128]{1,0:T(1,128)}', space=vmem, size = 0x12000, scoped, tag = 'internal scratch']
  %s0 = inlined_call_operand.vmem [shape: f32[2,64,32], index: 0, kind: input, shape index: {}]
  %s1 = inlined_call_operand.vmem [shape: f32[1,64,32], index: 1, kind: input, shape index: {}]
  %s2 = inlined_call_operand.vmem [shape: f32[1,64,32], index: 2, kind: input, shape index: {}]
  %s3 = inlined_call_operand.vmem [shape: f32[32,64], index: 3, kind: input, shape index: {}]
  %s4 = inlined_call_operand.vmem [shape: f32[1,64], index: 4, kind: input, shape index: {}]
  %s5 = inlined_call_operand.vmem [shape: f32[64,64], index: 5, kind: input, shape index: {}]
  %s6 = inlined_call_operand.vmem [shape: f32[1,64], index: 6, kind: input, shape index: {}]
  %s7 = inlined_call_operand.vmem [shape: f32[2,64,32], index: 7, kind: output, shape index: {}]
  %s8 = sld [smem:[#allocation0]]
  $region61: #{corner_encoder_forward.5} parent=0
    _
  %s10 = ssub.s32 1, %s8
  %s11 = scalar_select 0, %s10, %s8
  loop: start=0, step=1, limit=4
  $region2: #{corner_encoder_forward.5} parent=0 // loop_pre_header
    _
  $region3: #{corner_encoder_forward.5} parent=0 // loop_header
    %s13 = sphi 0, %s17
    %p14 = scmp.ge.s32.totalorder %s13, 4
    %s23 = sphi 0, %s25
    %s26 = sphi 0, %s23
    %s27 = sphi 0, %s26
    %s43 = sphi 0, %s27
    %s47 = sphi 0, %s47
    %s49 = sphi 0, %s47
    %s50 = sphi 0, %s49
    %s64 = sphi 0, %s50
    %s68 = sphi 0, %s68
    %s70 = sphi 0, %s68
    %s71 = sphi 0, %s70
    %s85 = sphi 0, %s71
    %s89 = sphi 0, %s89
    %s91 = sphi 0, %s89
    %s92 = sphi 0, %s91
    %s106 = sphi 0, %s92
    %s110 = sphi 0, %s110
    %s112 = sphi 0, %s110
    %s113 = sphi 0, %s112
    %s127 = sphi 0, %s113
    %s131 = sphi 0, %s131
    %s133 = sphi 0, %s131
    %s134 = sphi 0, %s133
    %s148 = sphi 0, %s134
    %s152 = sphi 0, %s152
    %s154 = sphi 0, %s152
    %s155 = sphi 0, %s154
    %s169 = sphi 0, %s155
    %s175 = sphi 0, %s177
    %s178 = sphi 0, %s175
    %s179 = sphi 0, %s178
    %s195 = sphi 0, %s179
  $region4: #{corner_encoder_forward.5} parent=0 // loop_header_branch
    %16 = sbr.rel (%p14) target = $region8
  $region5: #{corner_encoder_forward.5} parent=0 // loop_body
    %s18 = ssub.s32 %s13, 1
    %s19 = ssub.s32 %s13, 2
    %s20 = sadd.s32 %s13, 1
    %s21 = ssub.s32 %s13, %s20
    %p22 = scmp.eq.s32.totalorder %s21, 0
    %s24 = sadd.s32 %s23, 1
    %s25 = scalar_select %p22, %s23, %s24
    %p28 = pneg %p22
    %p29 = scmp.eq.s32.totalorder %s13, 1
    %p30 = por %p28, %p29
    %p31 = scmp.ne.s32.totalorder %s23, %s26
    %p32 = scmp.eq.s32.totalorder %s13, 0
    %p33 = por %p31, %p32
    %p34 = scmp.ne.s32.totalorder %s23, %s26
    %p35 = scmp.eq.s32.totalorder %s18, 1
    %p36 = por %p34, %p35
    %p37 = scmp.ne.s32.totalorder %s26, %s27
    %p38 = scmp.eq.s32.totalorder %s18, 0
    %p39 = por %p37, %p38
    %p40 = scmp.ne.s32.totalorder %s26, %s27
    %p41 = scmp.eq.s32.totalorder %s19, 1
    %p42 = por %p40, %p41
    %p44 = scmp.ne.s32.totalorder %s27, %s43
    %p45 = scmp.eq.s32.totalorder %s19, 0
    %p46 = por %p44, %p45
    %s48 = sadd.s32 %s47, 1
    %p51 = scmp.eq.s32.totalorder %s13, 1
    %p52 = scmp.ne.s32.totalorder %s47, %s49
    %p53 = scmp.eq.s32.totalorder %s13, 0
    %p54 = por %p52, %p53
    %p55 = scmp.ne.s32.totalorder %s47, %s49
    %p56 = scmp.eq.s32.totalorder %s18, 1
    %p57 = por %p55, %p56
    %p58 = scmp.ne.s32.totalorder %s49, %s50
    %p59 = scmp.eq.s32.totalorder %s18, 0
    %p60 = por %p58, %p59
    %p61 = scmp.ne.s32.totalorder %s49, %s50
    %p62 = scmp.eq.s32.totalorder %s19, 1
    %p63 = por %p61, %p62
    %p65 = scmp.ne.s32.totalorder %s50, %s64
    %p66 = scmp.eq.s32.totalorder %s19, 0
    %p67 = por %p65, %p66
    %s69 = sadd.s32 %s68, 1
    %p72 = scmp.eq.s32.totalorder %s13, 1
    %p73 = scmp.ne.s32.totalorder %s68, %s70
    %p74 = scmp.eq.s32.totalorder %s13, 0
    %p75 = por %p73, %p74
    %p76 = scmp.ne.s32.totalorder %s68, %s70
    %p77 = scmp.eq.s32.totalorder %s18, 1
    %p78 = por %p76, %p77
    %p79 = scmp.ne.s32.totalorder %s70, %s71
    %p80 = scmp.eq.s32.totalorder %s18, 0
    %p81 = por %p79, %p80
    %p82 = scmp.ne.s32.totalorder %s70, %s71
    %p83 = scmp.eq.s32.totalorder %s19, 1
    %p84 = por %p82, %p83
    %p86 = scmp.ne.s32.totalorder %s71, %s85
    %p87 = scmp.eq.s32.totalorder %s19, 0
    %p88 = por %p86, %p87
    %s90 = sadd.s32 %s89, 1
    %p93 = scmp.eq.s32.totalorder %s13, 1
    %p94 = scmp.ne.s32.totalorder %s89, %s91
    %p95 = scmp.eq.s32.totalorder %s13, 0
    %p96 = por %p94, %p95
    %p97 = scmp.ne.s32.totalorder %s89, %s91
    %p98 = scmp.eq.s32.totalorder %s18, 1
    %p99 = por %p97, %p98
    %p100 = scmp.ne.s32.totalorder %s91, %s92
    %p101 = scmp.eq.s32.totalorder %s18, 0
    %p102 = por %p100, %p101
    %p103 = scmp.ne.s32.totalorder %s91, %s92
    %p104 = scmp.eq.s32.totalorder %s19, 1
    %p105 = por %p103, %p104
    %p107 = scmp.ne.s32.totalorder %s92, %s106
    %p108 = scmp.eq.s32.totalorder %s19, 0
    %p109 = por %p107, %p108
    %s111 = sadd.s32 %s110, 1
    %p114 = scmp.eq.s32.totalorder %s13, 1
    %p115 = scmp.ne.s32.totalorder %s110, %s112
    %p116 = scmp.eq.s32.totalorder %s13, 0
    %p117 = por %p115, %p116
    %p118 = scmp.ne.s32.totalorder %s110, %s112
    %p119 = scmp.eq.s32.totalorder %s18, 1
    %p120 = por %p118, %p119
    %p121 = scmp.ne.s32.totalorder %s112, %s113
    %p122 = scmp.eq.s32.totalorder %s18, 0
    %p123 = por %p121, %p122
    %p124 = scmp.ne.s32.totalorder %s112, %s113
    %p125 = scmp.eq.s32.totalorder %s19, 1
    %p126 = por %p124, %p125
    %p128 = scmp.ne.s32.totalorder %s113, %s127
    %p129 = scmp.eq.s32.totalorder %s19, 0
    %p130 = por %p128, %p129
    %s132 = sadd.s32 %s131, 1
    %p135 = scmp.eq.s32.totalorder %s13, 1
    %p136 = scmp.ne.s32.totalorder %s131, %s133
    %p137 = scmp.eq.s32.totalorder %s13, 0
    %p138 = por %p136, %p137
    %p139 = scmp.ne.s32.totalorder %s131, %s133
    %p140 = scmp.eq.s32.totalorder %s18, 1
    %p141 = por %p139, %p140
    %p142 = scmp.ne.s32.totalorder %s133, %s134
    %p143 = scmp.eq.s32.totalorder %s18, 0
    %p144 = por %p142, %p143
    %p145 = scmp.ne.s32.totalorder %s133, %s134
    %p146 = scmp.eq.s32.totalorder %s19, 1
    %p147 = por %p145, %p146
    %p149 = scmp.ne.s32.totalorder %s134, %s148
    %p150 = scmp.eq.s32.totalorder %s19, 0
    %p151 = por %p149, %p150
    %s153 = sadd.s32 %s152, 1
    %p156 = scmp.eq.s32.totalorder %s13, 1
    %p157 = scmp.ne.s32.totalorder %s152, %s154
    %p158 = scmp.eq.s32.totalorder %s13, 0
    %p159 = por %p157, %p158
    %p160 = scmp.ne.s32.totalorder %s152, %s154
    %p161 = scmp.eq.s32.totalorder %s18, 1
    %p162 = por %p160, %p161
    %p163 = scmp.ne.s32.totalorder %s154, %s155
    %p164 = scmp.eq.s32.totalorder %s18, 0
    %p165 = por %p163, %p164
    %p166 = scmp.ne.s32.totalorder %s154, %s155
    %p167 = scmp.eq.s32.totalorder %s19, 1
    %p168 = por %p166, %p167
    %p170 = scmp.ne.s32.totalorder %s155, %s169
    %p171 = scmp.eq.s32.totalorder %s19, 0
    %p172 = por %p170, %p171
    %s173 = ssub.s32 %s13, %s20
    %p174 = scmp.eq.s32.totalorder %s173, 0
    %s176 = sadd.s32 %s175, 1
    %s177 = scalar_select %p174, %s175, %s176
    %p180 = pneg %p174
    %p181 = scmp.eq.s32.totalorder %s13, 1
    %p182 = por %p180, %p181
    %p183 = scmp.ne.s32.totalorder %s175, %s178
    %p184 = scmp.eq.s32.totalorder %s13, 0
    %p185 = por %p183, %p184
    %p186 = scmp.ne.s32.totalorder %s175, %s178
    %p187 = scmp.eq.s32.totalorder %s18, 1
    %p188 = por %p186, %p187
    %p189 = scmp.ne.s32.totalorder %s178, %s179
    %p190 = scmp.eq.s32.totalorder %s18, 0
    %p191 = por %p189, %p190
    %p192 = scmp.ne.s32.totalorder %s178, %s179
    %p193 = scmp.eq.s32.totalorder %s19, 1
    %p194 = por %p192, %p193
    %p196 = scmp.ne.s32.totalorder %s179, %s195
    %p197 = scmp.eq.s32.totalorder %s19, 0
    %p198 = por %p196, %p197
    %p199 = scmp.le.s32.totalorder 1, %s13
    %p200 = scmp.lt.s32.totalorder %s13, 3
    %p201 = pnand %p199, %p200
    %p202 = pneg %p201
    // Predicated region
    $region9: #{corner_encoder_forward.5} parent=5 // pred_check
      _
    $region10: #{corner_encoder_forward.5} parent=5 // pred_check_branch
      %204 = sbr.rel (%p201) target = $region12
    $region11: #{corner_encoder_forward.5} parent=5 // pred_region
      %s205 = ssub.s32 %s13, 1
      // Predicated region
      $region13: #{corner_encoder_forward.5} parent=11 // pred_check
        %p206 = pneg %p60
      $region14: #{corner_encoder_forward.5} parent=11 // pred_check_branch
        %208 = sbr.rel (%p206) target = $region16
      $region15: #{corner_encoder_forward.5} parent=11 // pred_region
        _
      $region16: #{corner_encoder_forward.5} parent=11 // pred_fallthru
        _
      // Predicated region
      $region17: #{corner_encoder_forward.5} parent=11 // pred_check
        %p209 = pneg %p81
      $region18: #{corner_encoder_forward.5} parent=11 // pred_check_branch
        %211 = sbr.rel (%p209) target = $region20
      $region19: #{corner_encoder_forward.5} parent=11 // pred_region
        _
      $region20: #{corner_encoder_forward.5} parent=11 // pred_fallthru
        _
      // Predicated region
      $region21: #{corner_encoder_forward.5} parent=11 // pred_check
        %p212 = pneg %p102
      $region22: #{corner_encoder_forward.5} parent=11 // pred_check_branch
        %214 = sbr.rel (%p212) target = $region24
      $region23: #{corner_encoder_forward.5} parent=11 // pred_region
        _
      $region24: #{corner_encoder_forward.5} parent=11 // pred_fallthru
        _
      // Predicated region
      $region25: #{corner_encoder_forward.5} parent=11 // pred_check
        %p215 = pneg %p123
      $region26: #{corner_encoder_forward.5} parent=11 // pred_check_branch
        %217 = sbr.rel (%p215) target = $region28
      $region27: #{corner_encoder_forward.5} parent=11 // pred_region
        _
      $region28: #{corner_encoder_forward.5} parent=11 // pred_fallthru
        _
      // Predicated region
      $region29: #{corner_encoder_forward.5} parent=11 // pred_check
        %p218 = pneg %p144
      $region30: #{corner_encoder_forward.5} parent=11 // pred_check_branch
        %220 = sbr.rel (%p218) target = $region32
      $region31: #{corner_encoder_forward.5} parent=11 // pred_region
        _
      $region32: #{corner_encoder_forward.5} parent=11 // pred_fallthru
        _
      // Predicated region
      $region33: #{corner_encoder_forward.5} parent=11 // pred_check
        %p221 = pneg %p165
      $region34: #{corner_encoder_forward.5} parent=11 // pred_check_branch
        %223 = sbr.rel (%p221) target = $region36
      $region35: #{corner_encoder_forward.5} parent=11 // pred_region
        _
      $region36: #{corner_encoder_forward.5} parent=11 // pred_fallthru
        _
    $region12: #{corner_encoder_forward.5} parent=5 // pred_fallthru
      _
    %p224 = scmp.lt.s32.totalorder %s13, 2
    // Predicated region
    $region37: #{corner_encoder_forward.5} parent=5 // pred_check
      %p225 = pneg %p224
    $region38: #{corner_encoder_forward.5} parent=5 // pred_check_branch
      %227 = sbr.rel (%p225) target = $region40
    $region39: #{corner_encoder_forward.5} parent=5 // pred_region
      // Predicated region
      $region41: #{corner_encoder_forward.5} parent=39 // pred_check
        %p228 = pneg %p33
      $region42: #{corner_encoder_forward.5} parent=39 // pred_check_branch
        %230 = sbr.rel (%p228) target = $region44
      $region43: #{corner_encoder_forward.5} parent=39 // pred_region
        %p231 = scmp.lt.s32.totalorder %s13, 1
        %s232 = scalar_select %p231, %s13, 1
        %s233 = smul.addr %s232, 8
        %s234 = smul.addr %s233, 8
        %s235 = scalar_lea.vmem %s0, %s234
      $region44: #{corner_encoder_forward.5} parent=39 // pred_fallthru
        _
    $region40: #{corner_encoder_forward.5} parent=5 // pred_fallthru
      _
    %p236 = scmp.le.s32.totalorder 1, %s13
    %p237 = scmp.lt.s32.totalorder %s13, 3
    %p238 = pnand %p236, %p237
    %p239 = pneg %p238
    // Predicated region
    $region45: #{corner_encoder_forward.5} parent=5 // pred_check
      _
    $region46: #{corner_encoder_forward.5} parent=5 // pred_check_branch
      %241 = sbr.rel (%p238) target = $region48
    $region47: #{corner_encoder_forward.5} parent=5 // pred_region
      %s242 = ssub.s32 %s13, 1
      %p243 = scmp.lt.s32.totalorder %s18, 1
      %s244 = scalar_select %p243, %s18, 1
      %s245 = smul.addr %s244, 8
      %s246 = smul.addr %s245, 8
      %s247 = scalar_lea.vmem %s0, %s246
      %p248 = pneg %p39
      %p249 = pneg %p36
      %p250 = pneg %p60
      %p251 = pneg %p57
      %p252 = pneg %p81
      %p253 = pneg %p78
      %p254 = pneg %p102
      %p255 = pneg %p99
      %p256 = pneg %p123
      %p257 = pneg %p120
      %p258 = pneg %p144
      %p259 = pneg %p141
      %p260 = pneg %p165
      %p261 = pneg %p162
      %p262 = pneg %p191
      %p263 = pneg %p188
      %p264 = scmp.lt.s32.totalorder %s18, 1
      %s265 = scalar_select %p264, %s18, 1
      %s266 = smul.addr %s265, 8
      %s267 = smul.addr %s266, 8
      %s268 = scalar_lea.vmem %s7, %s267
      %p269 = scmp.lt.s32.totalorder %s18, 1
      %s270 = scalar_select %p269, %s18, 1
      %s271 = smul.addr %s270, 8
      %s272 = smul.addr %s271, 8
      %s273 = scalar_lea.vmem %s0, %s272
      %p274 = scmp.lt.s32.totalorder %s18, 1
      %s275 = scalar_select %p274, %s18, 1
      %s276 = smul.addr %s275, 8
      %s277 = smul.addr %s276, 8
      %s278 = scalar_lea.vmem %s7, %s277
      %v280 = vld [vmem:[%s273] sm:$0xff]
      %v281 = vld [vmem:[%s273 + $0x8] sm:$0xff]
      %v282 = vld [vmem:[%s273 + $0x10] sm:$0xff]
      %v283 = vld [vmem:[%s273 + $0x18] sm:$0xff]
      %v284 = vld [vmem:[%s273 + $0x20] sm:$0xff]
      %v285 = vld [vmem:[%s273 + $0x28] sm:$0xff]
      %v286 = vld [vmem:[%s273 + $0x30] sm:$0xff]
      %v287 = vld [vmem:[%s273 + $0x38] sm:$0xff]
      %vm288 = vcmask 261120
      %v289 = vsel %vm288, %v280, 0.0
      %v290 = vsel %vm288, %v281, 0.0
      %v291 = vadd.f32 %v289, %v290
      %v292 = vsel %vm288, %v282, 0.0
      %v293 = vadd.f32 %v291, %v292
      %v294 = vsel %vm288, %v283, 0.0
      %v295 = vadd.f32 %v293, %v294
      %v296 = vsel %vm288, %v284, 0.0
      %v297 = vadd.f32 %v295, %v296
      %v298 = vsel %vm288, %v285, 0.0
      %v299 = vadd.f32 %v297, %v298
      %v300 = vsel %vm288, %v286, 0.0
      %v301 = vadd.f32 %v299, %v300
      %v302 = vsel %vm288, %v287, 0.0
      %v303 = vadd.f32 %v301, %v302
      %v304 = vrot.slane %v303, 4
      %v305 = vadd.f32 %v303, %v304
      %v306 = vrot.slane %v305, 2
      %v307 = vadd.f32 %v305, %v306
      %v308 = vrot.slane %v307, 1
      %v309 = vadd.f32 %v307, %v308
      %v310 = vrcp.pop 64.0
      %v311 = vmul.f32 %v309, %v310
      %v312 = vld [vmem:[%s3] sm:$0xff]
      %v313 = vld [vmem:[%s3 + $0x8] sm:$0xff]
      %v314 = vld [vmem:[%s3 + $0x10] sm:$0xff]
      %v315 = vld [vmem:[%s3 + $0x18] sm:$0xff]
      %v316 = vpack.c.bf16 %v311, %v311
      %v317 = vpack.c.bf16 %v313, %v312
      %v318 = vpack.c.bf16 %v315, %v314
      %v319 = vld [vmem:[%s4] sm:$0x1]
      %v321 = vsel %vm288, %v316, 0
      %323 = vmatprep.subr.bf16.mxu0 0
      %324 = vmatpush1.bf16.msra.mxu0 0
      %325 = vmatprep.subr.bf16.mxu0 0
      %326 = vmatpush1.bf16.msra.mxu0 0
      %327 = vmatprep.subr.bf16.mxu0 0
      %328 = vmatpush1.bf16.msra.mxu0 0
      %329 = vmatprep.subr.bf16.mxu0 0
      %330 = vmatpush1.bf16.msra.mxu0 0
      %331 = vmatprep.subr.bf16.mxu0 0
      %332 = vmatpush1.bf16.msra.mxu0 0
      %333 = vmatprep.subr.bf16.mxu0 0
      %334 = vmatpush1.bf16.msra.mxu0 0
      %335 = vmatprep.subr.bf16.mxu0 0
      %336 = vmatpush1.bf16.msra.mxu0 %v318
      %337 = vmatprep.subr.bf16.mxu0 0
      %338 = vmatpush1.bf16.msra.mxu0 %v317
      %339 = vmatprep.subr.bf16.mxu0 0
      %340 = vmatpush2.bf16.msra.mxu0 0
      %341 = vmatprep.subr.bf16.mxu0 0
      %342 = vmatpush2.bf16.msra.mxu0 0
      %343 = vmatprep.subr.bf16.mxu0 0
      %344 = vmatpush2.bf16.msra.mxu0 0
      %345 = vmatprep.subr.bf16.mxu0 0
      %346 = vmatpush2.bf16.msra.mxu0 0
      %347 = vmatprep.subr.bf16.mxu0 0
      %348 = vmatpush2.bf16.msra.mxu0 0
      %349 = vmatprep.subr.bf16.mxu0 0
      %350 = vmatpush2.bf16.msra.mxu0 0
      %351 = vmatprep.subr.bf16.mxu0 0
      %352 = vmatpush2.bf16.msra.mxu0 0
      %353 = vmatprep.subr.bf16.mxu0 0
      %354 = vmatpush2.bf16.msra.mxu0 0
      %355 = vmatprep.mubr.bf16.mxu0 0
      %356 = vmatmul.mubr.bf16.gmra.mxu0 %v321
      %v357 = vpop.f32.mrf.mxu0
      %v358 = vadd.f32 %v319, %v357
      %v359 = vpop.f32.mrf.mxu0
      %v360 = vpop.f32.mrf.mxu0
      %v361 = vpop.f32.mrf.mxu0
      %362 = vdwg.mxu0
      %v363 = vmax.f32 %v358, 0.0
      %v364 = vld [vmem:[%s5] sm:$0xff]
      %v365 = vld [vmem:[%s5 + $0x8] sm:$0xff]
      %v366 = vld [vmem:[%s5 + $0x10] sm:$0xff]
      %v367 = vld [vmem:[%s5 + $0x18] sm:$0xff]
      %v368 = vld [vmem:[%s5 + $0x20] sm:$0xff]
      %v369 = vld [vmem:[%s5 + $0x28] sm:$0xff]
      %v370 = vld [vmem:[%s5 + $0x30] sm:$0xff]
      %v371 = vld [vmem:[%s5 + $0x38] sm:$0xff]
      %v372 = vpack.c.bf16 %v363, %v363
      %v373 = vpack.c.bf16 %v365, %v364
      %v374 = vpack.c.bf16 %v367, %v366
      %v375 = vpack.c.bf16 %v369, %v368
      %v376 = vpack.c.bf16 %v371, %v370
      %v377 = vld [vmem:[%s6] sm:$0x1]
      %vm378 = vcmask 523264
      %v380 = vsel %vm378, %v372, 0
      %382 = vmatprep.subr.bf16.mxu0 0
      %383 = vmatpush1.bf16.msra.mxu0 0
      %384 = vmatprep.subr.bf16.mxu0 0
      %385 = vmatpush1.bf16.msra.mxu0 0
      %386 = vmatprep.subr.bf16.mxu0 0
      %387 = vmatpush1.bf16.msra.mxu0 0
      %388 = vmatprep.subr.bf16.mxu0 0
      %389 = vmatpush1.bf16.msra.mxu0 0
      %390 = vmatprep.subr.bf16.mxu0 0
      %391 = vmatpush1.bf16.msra.mxu0 %v376
      %392 = vmatprep.subr.bf16.mxu0 0
      %393 = vmatpush1.bf16.msra.mxu0 %v375
      %394 = vmatprep.subr.bf16.mxu0 0
      %395 = vmatpush1.bf16.msra.mxu0 %v374
      %396 = vmatprep.subr.bf16.mxu0 0
      %397 = vmatpush1.bf16.msra.mxu0 %v373
      %398 = vmatprep.subr.bf16.mxu0 0
      %399 = vmatpush2.bf16.msra.mxu0 0
      %400 = vmatprep.subr.bf16.mxu0 0
      %401 = vmatpush2.bf16.msra.mxu0 0
      %402 = vmatprep.subr.bf16.mxu0 0
      %403 = vmatpush2.bf16.msra.mxu0 0
      %404 = vmatprep.subr.bf16.mxu0 0
      %405 = vmatpush2.bf16.msra.mxu0 0
      %406 = vmatprep.subr.bf16.mxu0 0
      %407 = vmatpush2.bf16.msra.mxu0 0
      %408 = vmatprep.subr.bf16.mxu0 0
      %409 = vmatpush2.bf16.msra.mxu0 0
      %410 = vmatprep.subr.bf16.mxu0 0
      %411 = vmatpush2.bf16.msra.mxu0 0
      %412 = vmatprep.subr.bf16.mxu0 0
      %413 = vmatpush2.bf16.msra.mxu0 0
      %414 = vmatprep.mubr.bf16.mxu0 0
      %415 = vmatmul.mubr.bf16.gmra.mxu0 %v380
      %v416 = vpop.f32.mrf.mxu0
      %v417 = vadd.f32 %v377, %v416
      %v418 = vpop.f32.mrf.mxu0
      %v419 = vpop.f32.mrf.mxu0
      %v420 = vpop.f32.mrf.mxu0
      %421 = vdwg.mxu0
      %v422 = vxor.u32 %v417, 2147483648
      %v423 = vmul.f32 %v422, 1.442695
      %v424 = vpow.pop %v423
      %v425 = vadd.f32 %v424, 1.0
      %v426 = vrcp.pop %v425
      %v427 = vmul.f32 1.0, %v426
      %v428 = vld [vmem:[%s1] sm:$0xff]
      %v429 = vld [vmem:[%s1 + $0x8] sm:$0xff]
      %v430 = vld [vmem:[%s1 + $0x10] sm:$0xff]
      %v431 = vld [vmem:[%s1 + $0x18] sm:$0xff]
      %v432 = vld [vmem:[%s1 + $0x20] sm:$0xff]
      %v433 = vld [vmem:[%s1 + $0x28] sm:$0xff]
      %v434 = vld [vmem:[%s1 + $0x30] sm:$0xff]
      %v435 = vld [vmem:[%s1 + $0x38] sm:$0xff]
      %v436 = vlaneseq
      %v437 = vshrl.u32 %v436, 7
      %v438 = vsub.s32 0, %v437
      %v439 = vrot.slane %v427, %v438
      %v440 = vmul.f32 %v439, %v428
      %v441 = vmul.f32 %v439, %v429
      %v442 = vmul.f32 %v439, %v430
      %v443 = vmul.f32 %v439, %v431
      %v444 = vmul.f32 %v439, %v432
      %v445 = vmul.f32 %v439, %v433
      %v446 = vmul.f32 %v439, %v434
      %v447 = vmul.f32 %v439, %v435
      %v448 = vadd.f32 %v280, %v440
      %v449 = vadd.f32 %v281, %v441
      %v450 = vadd.f32 %v282, %v442
      %v451 = vadd.f32 %v283, %v443
      %v452 = vadd.f32 %v284, %v444
      %v453 = vadd.f32 %v285, %v445
      %v454 = vadd.f32 %v286, %v446
      %v455 = vadd.f32 %v287, %v447
      %v456 = vld [vmem:[%s2] sm:$0xff]
      %v457 = vld [vmem:[%s2 + $0x8] sm:$0xff]
      %v458 = vld [vmem:[%s2 + $0x10] sm:$0xff]
      %v459 = vld [vmem:[%s2 + $0x18] sm:$0xff]
      %v460 = vld [vmem:[%s2 + $0x20] sm:$0xff]
      %v461 = vld [vmem:[%s2 + $0x28] sm:$0xff]
      %v462 = vld [vmem:[%s2 + $0x30] sm:$0xff]
      %v463 = vld [vmem:[%s2 + $0x38] sm:$0xff]
      %472 = vrot.lane.b32.xlu0 %v456, 32
      %v473 = vpop.permute.xlu0 %472
      %474 = vrot.lane.b32.xlu0 %v457, 32
      %v475 = vpop.permute.xlu0 %474
      %476 = vrot.lane.b32.xlu0 %v458, 32
      %v477 = vpop.permute.xlu0 %476
      %478 = vrot.lane.b32.xlu0 %v459, 32
      %v479 = vpop.permute.xlu0 %478
      %480 = vrot.lane.b32.xlu0 %v460, 32
      %v481 = vpop.permute.xlu0 %480
      %482 = vrot.lane.b32.xlu0 %v461, 32
      %v483 = vpop.permute.xlu0 %482
      %484 = vrot.lane.b32.xlu0 %v462, 32
      %v485 = vpop.permute.xlu0 %484
      %486 = vrot.lane.b32.xlu0 %v463, 32
      %v487 = vpop.permute.xlu0 %486
      %v496 = vmul.f32 %v439, %v473
      %v497 = vmul.f32 %v439, %v475
      %v498 = vmul.f32 %v439, %v477
      %v499 = vmul.f32 %v439, %v479
      %v500 = vmul.f32 %v439, %v481
      %v501 = vmul.f32 %v439, %v483
      %v502 = vmul.f32 %v439, %v485
      %v503 = vmul.f32 %v439, %v487
      %512 = vrot.lane.b32.xlu0 %v496, 96
      %v513 = vpop.permute.xlu0 %512
      %514 = vrot.lane.b32.xlu0 %v497, 96
      %v515 = vpop.permute.xlu0 %514
      %516 = vrot.lane.b32.xlu0 %v498, 96
      %v517 = vpop.permute.xlu0 %516
      %518 = vrot.lane.b32.xlu0 %v499, 96
      %v519 = vpop.permute.xlu0 %518
      %520 = vrot.lane.b32.xlu0 %v500, 96
      %v521 = vpop.permute.xlu0 %520
      %522 = vrot.lane.b32.xlu0 %v501, 96
      %v523 = vpop.permute.xlu0 %522
      %524 = vrot.lane.b32.xlu0 %v502, 96
      %v525 = vpop.permute.xlu0 %524
      %526 = vrot.lane.b32.xlu0 %v503, 96
      %v527 = vpop.permute.xlu0 %526
      %v536 = vadd.f32 %v448, %v513
      %v537 = vadd.f32 %v449, %v515
      %v538 = vadd.f32 %v450, %v517
      %v539 = vadd.f32 %v451, %v519
      %v540 = vadd.f32 %v452, %v521
      %v541 = vadd.f32 %v453, %v523
      %v542 = vadd.f32 %v454, %v525
      %v543 = vadd.f32 %v455, %v527
      %544 = vst.msk [vmem:[%s278] sm:$0xff] %vm288, %v536
      %545 = vst.msk [vmem:[%s278 + $0x8] sm:$0xff] %vm288, %v537
      %546 = vst.msk [vmem:[%s278 + $0x10] sm:$0xff] %vm288, %v538
      %547 = vst.msk [vmem:[%s278 + $0x18] sm:$0xff] %vm288, %v539
      %548 = vst.msk [vmem:[%s278 + $0x20] sm:$0xff] %vm288, %v540
      %549 = vst.msk [vmem:[%s278 + $0x28] sm:$0xff] %vm288, %v541
      %550 = vst.msk [vmem:[%s278 + $0x30] sm:$0xff] %vm288, %v542
      %551 = vst.msk [vmem:[%s278 + $0x38] sm:$0xff] %vm288, %v543
      %p552 = scmp.lt.s32.totalorder %s18, 1
      %s553 = scalar_select %p552, %s18, 1
      %s554 = smul.addr %s553, 8
      %s555 = smul.addr %s554, 8
      %s556 = scalar_lea.vmem %s7, %s555
      // Predicated region
      $region49: #{corner_encoder_forward.5} parent=47 // pred_check
        %p557 = pneg %p188
      $region50: #{corner_encoder_forward.5} parent=47 // pred_check_branch
        %559 = sbr.rel (%p557) target = $region52
      $region51: #{corner_encoder_forward.5} parent=47 // pred_region
        _
      $region52: #{corner_encoder_forward.5} parent=47 // pred_fallthru
        _
    $region48: #{corner_encoder_forward.5} parent=5 // pred_fallthru
      _
    %p560 = scmp.le.s32.totalorder 2, %s13
    // Predicated region
    $region53: #{corner_encoder_forward.5} parent=5 // pred_check
      %p561 = pneg %p560
    $region54: #{corner_encoder_forward.5} parent=5 // pred_check_branch
      %563 = sbr.rel (%p561) target = $region56
    $region55: #{corner_encoder_forward.5} parent=5 // pred_region
      %s564 = ssub.s32 %s13, 2
      // Predicated region
      $region57: #{corner_encoder_forward.5} parent=55 // pred_check
        %p565 = pneg %p194
      $region58: #{corner_encoder_forward.5} parent=55 // pred_check_branch
        %567 = sbr.rel (%p565) target = $region60
      $region59: #{corner_encoder_forward.5} parent=55 // pred_region
        %p568 = scmp.lt.s32.totalorder %s19, 1
        %s569 = scalar_select %p568, %s19, 1
        %s570 = smul.addr %s569, 8
        %s571 = smul.addr %s570, 8
        %s572 = scalar_lea.vmem %s7, %s571
      $region60: #{corner_encoder_forward.5} parent=55 // pred_fallthru
        _
    $region56: #{corner_encoder_forward.5} parent=5 // pred_fallthru
      _
  $region6: #{corner_encoder_forward.5} parent=0 // loop_footer
    %s17 = sadd.s32 1, %s13
  $region7: #{corner_encoder_forward.5} parent=0 // loop_footer_branch
    %12 = sbr.rel target = $region3
  $region8: #{corner_encoder_forward.5} parent=0 // loop_exit
    _

// kernel: corner_encoder_forward.6
$region0: #{corner_encoder_forward.6}
  #allocation0 [shape = 'u32[]', space=smem, size = 0x4, offset = 0x4, fixed_abs, tag = 'smem constant byte address 0x4 - core index']
  #allocation1 [shape = 'u32[144,128]{1,0:T(1,128)}', space=vmem, size = 0x12000, scoped, tag = 'internal scratch']
  %s0 = inlined_call_operand.vmem [shape: f32[2,64,32], index: 0, kind: input, shape index: {}]
  %s1 = inlined_call_operand.vmem [shape: f32[1,64,32], index: 1, kind: input, shape index: {}]
  %s2 = inlined_call_operand.vmem [shape: f32[1,64,32], index: 2, kind: input, shape index: {}]
  %s3 = inlined_call_operand.hbm [shape: f32[32,64], index: 3, kind: input, shape index: {}]
  %s4 = inlined_call_operand.vmem [shape: f32[1,64], index: 4, kind: input, shape index: {}]
  %s5 = inlined_call_operand.vmem [shape: f32[64,64], index: 5, kind: input, shape index: {}]
  %s6 = inlined_call_operand.vmem [shape: f32[1,64], index: 6, kind: input, shape index: {}]
  %s7 = inlined_call_operand.vmem [shape: f32[2,64,32], index: 7, kind: output, shape index: {}]
  %s8 = sld [smem:[#allocation0]]
  $region65: #{corner_encoder_forward.6} parent=0
    _
  %s10 = ssub.s32 1, %s8
  %s11 = scalar_select 0, %s10, %s8
  $region1: #{corner_encoder_forward.6} parent=0
    #allocation2 [shape = 'u8[16384]{0}', space=vmem, size = 0x4000, scoped, tag = 'input window, operand 3, single buffered']
    #allocation3 [shape = 's32[2]{0}', space=sflag, size = 0x8, scoped, tag = 'scoped memory for corner_encoder_forward.6']
    %12 = vsyncpa [#allocation3], 0
    loop: start=0, step=1, limit=4
    $region2: #{corner_encoder_forward.6} parent=1 // loop_pre_header
      _
    $region3: #{corner_encoder_forward.6} parent=1 // loop_header
      %s14 = sphi 0, %s18
      %p15 = scmp.ge.s32.totalorder %s14, 4
      %s24 = sphi 0, %s26
      %s27 = sphi 0, %s24
      %s28 = sphi 0, %s27
      %s44 = sphi 0, %s28
      %s48 = sphi 0, %s48
      %s50 = sphi 0, %s48
      %s51 = sphi 0, %s50
      %s65 = sphi 0, %s51
      %s69 = sphi 0, %s69
      %s71 = sphi 0, %s69
      %s72 = sphi 0, %s71
      %s86 = sphi 0, %s72
      %s90 = sphi 0, %s90
      %s92 = sphi 0, %s90
      %s93 = sphi 0, %s92
      %s107 = sphi 0, %s93
      %s111 = sphi 0, %s111
      %s113 = sphi 0, %s111
      %s114 = sphi 0, %s113
      %s128 = sphi 0, %s114
      %s132 = sphi 0, %s132
      %s134 = sphi 0, %s132
      %s135 = sphi 0, %s134
      %s149 = sphi 0, %s135
      %s153 = sphi 0, %s153
      %s155 = sphi 0, %s153
      %s156 = sphi 0, %s155
      %s170 = sphi 0, %s156
      %s176 = sphi 0, %s178
      %s179 = sphi 0, %s176
      %s180 = sphi 0, %s179
      %s196 = sphi 0, %s180
    $region4: #{corner_encoder_forward.6} parent=1 // loop_header_branch
      %17 = sbr.rel (%p15) target = $region8
    $region5: #{corner_encoder_forward.6} parent=1 // loop_body
      %s19 = ssub.s32 %s14, 1
      %s20 = ssub.s32 %s14, 2
      %s21 = sadd.s32 %s14, 1
      %s22 = ssub.s32 %s14, %s21
      %p23 = scmp.eq.s32.totalorder %s22, 0
      %s25 = sadd.s32 %s24, 1
      %s26 = scalar_select %p23, %s24, %s25
      %p29 = pneg %p23
      %p30 = scmp.eq.s32.totalorder %s14, 1
      %p31 = por %p29, %p30
      %p32 = scmp.ne.s32.totalorder %s24, %s27
      %p33 = scmp.eq.s32.totalorder %s14, 0
      %p34 = por %p32, %p33
      %p35 = scmp.ne.s32.totalorder %s24, %s27
      %p36 = scmp.eq.s32.totalorder %s19, 1
      %p37 = por %p35, %p36
      %p38 = scmp.ne.s32.totalorder %s27, %s28
      %p39 = scmp.eq.s32.totalorder %s19, 0
      %p40 = por %p38, %p39
      %p41 = scmp.ne.s32.totalorder %s27, %s28
      %p42 = scmp.eq.s32.totalorder %s20, 1
      %p43 = por %p41, %p42
      %p45 = scmp.ne.s32.totalorder %s28, %s44
      %p46 = scmp.eq.s32.totalorder %s20, 0
      %p47 = por %p45, %p46
      %s49 = sadd.s32 %s48, 1
      %p52 = scmp.eq.s32.totalorder %s14, 1
      %p53 = scmp.ne.s32.totalorder %s48, %s50
      %p54 = scmp.eq.s32.totalorder %s14, 0
      %p55 = por %p53, %p54
      %p56 = scmp.ne.s32.totalorder %s48, %s50
      %p57 = scmp.eq.s32.totalorder %s19, 1
      %p58 = por %p56, %p57
      %p59 = scmp.ne.s32.totalorder %s50, %s51
      %p60 = scmp.eq.s32.totalorder %s19, 0
      %p61 = por %p59, %p60
      %p62 = scmp.ne.s32.totalorder %s50, %s51
      %p63 = scmp.eq.s32.totalorder %s20, 1
      %p64 = por %p62, %p63
      %p66 = scmp.ne.s32.totalorder %s51, %s65
      %p67 = scmp.eq.s32.totalorder %s20, 0
      %p68 = por %p66, %p67
      %s70 = sadd.s32 %s69, 1
      %p73 = scmp.eq.s32.totalorder %s14, 1
      %p74 = scmp.ne.s32.totalorder %s69, %s71
      %p75 = scmp.eq.s32.totalorder %s14, 0
      %p76 = por %p74, %p75
      %p77 = scmp.ne.s32.totalorder %s69, %s71
      %p78 = scmp.eq.s32.totalorder %s19, 1
      %p79 = por %p77, %p78
      %p80 = scmp.ne.s32.totalorder %s71, %s72
      %p81 = scmp.eq.s32.totalorder %s19, 0
      %p82 = por %p80, %p81
      %p83 = scmp.ne.s32.totalorder %s71, %s72
      %p84 = scmp.eq.s32.totalorder %s20, 1
      %p85 = por %p83, %p84
      %p87 = scmp.ne.s32.totalorder %s72, %s86
      %p88 = scmp.eq.s32.totalorder %s20, 0
      %p89 = por %p87, %p88
      %s91 = sadd.s32 %s90, 1
      %p94 = scmp.eq.s32.totalorder %s14, 1
      %p95 = scmp.ne.s32.totalorder %s90, %s92
      %p96 = scmp.eq.s32.totalorder %s14, 0
      %p97 = por %p95, %p96
      %p98 = scmp.ne.s32.totalorder %s90, %s92
      %p99 = scmp.eq.s32.totalorder %s19, 1
      %p100 = por %p98, %p99
      %p101 = scmp.ne.s32.totalorder %s92, %s93
      %p102 = scmp.eq.s32.totalorder %s19, 0
      %p103 = por %p101, %p102
      %p104 = scmp.ne.s32.totalorder %s92, %s93
      %p105 = scmp.eq.s32.totalorder %s20, 1
      %p106 = por %p104, %p105
      %p108 = scmp.ne.s32.totalorder %s93, %s107
      %p109 = scmp.eq.s32.totalorder %s20, 0
      %p110 = por %p108, %p109
      %s112 = sadd.s32 %s111, 1
      %p115 = scmp.eq.s32.totalorder %s14, 1
      %p116 = scmp.ne.s32.totalorder %s111, %s113
      %p117 = scmp.eq.s32.totalorder %s14, 0
      %p118 = por %p116, %p117
      %p119 = scmp.ne.s32.totalorder %s111, %s113
      %p120 = scmp.eq.s32.totalorder %s19, 1
      %p121 = por %p119, %p120
      %p122 = scmp.ne.s32.totalorder %s113, %s114
      %p123 = scmp.eq.s32.totalorder %s19, 0
      %p124 = por %p122, %p123
      %p125 = scmp.ne.s32.totalorder %s113, %s114
      %p126 = scmp.eq.s32.totalorder %s20, 1
      %p127 = por %p125, %p126
      %p129 = scmp.ne.s32.totalorder %s114, %s128
      %p130 = scmp.eq.s32.totalorder %s20, 0
      %p131 = por %p129, %p130
      %s133 = sadd.s32 %s132, 1
      %p136 = scmp.eq.s32.totalorder %s14, 1
      %p137 = scmp.ne.s32.totalorder %s132, %s134
      %p138 = scmp.eq.s32.totalorder %s14, 0
      %p139 = por %p137, %p138
      %p140 = scmp.ne.s32.totalorder %s132, %s134
      %p141 = scmp.eq.s32.totalorder %s19, 1
      %p142 = por %p140, %p141
      %p143 = scmp.ne.s32.totalorder %s134, %s135
      %p144 = scmp.eq.s32.totalorder %s19, 0
      %p145 = por %p143, %p144
      %p146 = scmp.ne.s32.totalorder %s134, %s135
      %p147 = scmp.eq.s32.totalorder %s20, 1
      %p148 = por %p146, %p147
      %p150 = scmp.ne.s32.totalorder %s135, %s149
      %p151 = scmp.eq.s32.totalorder %s20, 0
      %p152 = por %p150, %p151
      %s154 = sadd.s32 %s153, 1
      %p157 = scmp.eq.s32.totalorder %s14, 1
      %p158 = scmp.ne.s32.totalorder %s153, %s155
      %p159 = scmp.eq.s32.totalorder %s14, 0
      %p160 = por %p158, %p159
      %p161 = scmp.ne.s32.totalorder %s153, %s155
      %p162 = scmp.eq.s32.totalorder %s19, 1
      %p163 = por %p161, %p162
      %p164 = scmp.ne.s32.totalorder %s155, %s156
      %p165 = scmp.eq.s32.totalorder %s19, 0
      %p166 = por %p164, %p165
      %p167 = scmp.ne.s32.totalorder %s155, %s156
      %p168 = scmp.eq.s32.totalorder %s20, 1
      %p169 = por %p167, %p168
      %p171 = scmp.ne.s32.totalorder %s156, %s170
      %p172 = scmp.eq.s32.totalorder %s20, 0
      %p173 = por %p171, %p172
      %s174 = ssub.s32 %s14, %s21
      %p175 = scmp.eq.s32.totalorder %s174, 0
      %s177 = sadd.s32 %s176, 1
      %s178 = scalar_select %p175, %s176, %s177
      %p181 = pneg %p175
      %p182 = scmp.eq.s32.totalorder %s14, 1
      %p183 = por %p181, %p182
      %p184 = scmp.ne.s32.totalorder %s176, %s179
      %p185 = scmp.eq.s32.totalorder %s14, 0
      %p186 = por %p184, %p185
      %p187 = scmp.ne.s32.totalorder %s176, %s179
      %p188 = scmp.eq.s32.totalorder %s19, 1
      %p189 = por %p187, %p188
      %p190 = scmp.ne.s32.totalorder %s179, %s180
      %p191 = scmp.eq.s32.totalorder %s19, 0
      %p192 = por %p190, %p191
      %p193 = scmp.ne.s32.totalorder %s179, %s180
      %p194 = scmp.eq.s32.totalorder %s20, 1
      %p195 = por %p193, %p194
      %p197 = scmp.ne.s32.totalorder %s180, %s196
      %p198 = scmp.eq.s32.totalorder %s20, 0
      %p199 = por %p197, %p198
      %p200 = scmp.le.s32.totalorder 1, %s14
      %p201 = scmp.lt.s32.totalorder %s14, 3
      %p202 = pnand %p200, %p201
      %p203 = pneg %p202
      // Predicated region
      $region9: #{corner_encoder_forward.6} parent=5 // pred_check
        _
      $region10: #{corner_encoder_forward.6} parent=5 // pred_check_branch
        %205 = sbr.rel (%p202) target = $region12
      $region11: #{corner_encoder_forward.6} parent=5 // pred_region
        %s206 = ssub.s32 %s14, 1
        // Predicated region
        $region13: #{corner_encoder_forward.6} parent=11 // pred_check
          %p207 = pneg %p61
        $region14: #{corner_encoder_forward.6} parent=11 // pred_check_branch
          %209 = sbr.rel (%p207) target = $region16
        $region15: #{corner_encoder_forward.6} parent=11 // pred_region
          _
        $region16: #{corner_encoder_forward.6} parent=11 // pred_fallthru
          _
        // Predicated region
        $region17: #{corner_encoder_forward.6} parent=11 // pred_check
          %p210 = pneg %p82
        $region18: #{corner_encoder_forward.6} parent=11 // pred_check_branch
          %212 = sbr.rel (%p210) target = $region20
        $region19: #{corner_encoder_forward.6} parent=11 // pred_region
          _
        $region20: #{corner_encoder_forward.6} parent=11 // pred_fallthru
          _
        // Predicated region
        $region21: #{corner_encoder_forward.6} parent=11 // pred_check
          %p213 = pneg %p103
        $region22: #{corner_encoder_forward.6} parent=11 // pred_check_branch
          %215 = sbr.rel (%p213) target = $region24
        $region23: #{corner_encoder_forward.6} parent=11 // pred_region
          %s217 = ssub.s32 512, 512
          %218 = vsyncadd [#allocation3], %s217
          %s219 = sshll.u32 [#allocation2], 4
          %s220 = int_to_ptr.vmem [resolvable:$true] %s219
          %225 = dma.hbm_to_vmem [thread:$0]  %s3, 512, %s220, [#allocation3], 128, 128, 8
        $region24: #{corner_encoder_forward.6} parent=11 // pred_fallthru
          _
        // Predicated region
        $region25: #{corner_encoder_forward.6} parent=11 // pred_check
          %p226 = pneg %p124
        $region26: #{corner_encoder_forward.6} parent=11 // pred_check_branch
          %228 = sbr.rel (%p226) target = $region28
        $region27: #{corner_encoder_forward.6} parent=11 // pred_region
          _
        $region28: #{corner_encoder_forward.6} parent=11 // pred_fallthru
          _
        // Predicated region
        $region29: #{corner_encoder_forward.6} parent=11 // pred_check
          %p229 = pneg %p145
        $region30: #{corner_encoder_forward.6} parent=11 // pred_check_branch
          %231 = sbr.rel (%p229) target = $region32
        $region31: #{corner_encoder_forward.6} parent=11 // pred_region
          _
        $region32: #{corner_encoder_forward.6} parent=11 // pred_fallthru
          _
        // Predicated region
        $region33: #{corner_encoder_forward.6} parent=11 // pred_check
          %p232 = pneg %p166
        $region34: #{corner_encoder_forward.6} parent=11 // pred_check_branch
          %234 = sbr.rel (%p232) target = $region36
        $region35: #{corner_encoder_forward.6} parent=11 // pred_region
          _
        $region36: #{corner_encoder_forward.6} parent=11 // pred_fallthru
          _
      $region12: #{corner_encoder_forward.6} parent=5 // pred_fallthru
        _
      %p235 = scmp.lt.s32.totalorder %s14, 2
      // Predicated region
      $region37: #{corner_encoder_forward.6} parent=5 // pred_check
        %p236 = pneg %p235
      $region38: #{corner_encoder_forward.6} parent=5 // pred_check_branch
        %238 = sbr.rel (%p236) target = $region40
      $region39: #{corner_encoder_forward.6} parent=5 // pred_region
        // Predicated region
        $region41: #{corner_encoder_forward.6} parent=39 // pred_check
          %p239 = pneg %p34
        $region42: #{corner_encoder_forward.6} parent=39 // pred_check_branch
          %241 = sbr.rel (%p239) target = $region44
        $region43: #{corner_encoder_forward.6} parent=39 // pred_region
          %p242 = scmp.lt.s32.totalorder %s14, 1
          %s243 = scalar_select %p242, %s14, 1
          %s244 = smul.addr %s243, 8
          %s245 = smul.addr %s244, 8
          %s246 = scalar_lea.vmem %s0, %s245
        $region44: #{corner_encoder_forward.6} parent=39 // pred_fallthru
          _
      $region40: #{corner_encoder_forward.6} parent=5 // pred_fallthru
        _
      %p247 = scmp.le.s32.totalorder 1, %s14
      %p248 = scmp.lt.s32.totalorder %s14, 3
      %p249 = pnand %p247, %p248
      %p250 = pneg %p249
      // Predicated region
      $region45: #{corner_encoder_forward.6} parent=5 // pred_check
        _
      $region46: #{corner_encoder_forward.6} parent=5 // pred_check_branch
        %252 = sbr.rel (%p249) target = $region48
      $region47: #{corner_encoder_forward.6} parent=5 // pred_region
        %s253 = ssub.s32 %s14, 1
        // Predicated region
        $region49: #{corner_encoder_forward.6} parent=47 // pred_check
          %p254 = pneg %p103
        $region50: #{corner_encoder_forward.6} parent=47 // pred_check_branch
          %256 = sbr.rel (%p254) target = $region52
        $region51: #{corner_encoder_forward.6} parent=47 // pred_region
          %257 = dma.done [#allocation3], 512
        $region52: #{corner_encoder_forward.6} parent=47 // pred_fallthru
          _
        %p258 = scmp.lt.s32.totalorder %s19, 1
        %s259 = scalar_select %p258, %s19, 1
        %s260 = smul.addr %s259, 8
        %s261 = smul.addr %s260, 8
        %s262 = scalar_lea.vmem %s0, %s261
        %p263 = pneg %p40
        %p264 = pneg %p37
        %p265 = pneg %p61
        %p266 = pneg %p58
        %p267 = pneg %p82
        %p268 = pneg %p79
        %p269 = pneg %p103
        %p270 = pneg %p100
        %p271 = pneg %p124
        %p272 = pneg %p121
        %p273 = pneg %p145
        %p274 = pneg %p142
        %p275 = pneg %p166
        %p276 = pneg %p163
        %p277 = pneg %p192
        %p278 = pneg %p189
        %p279 = scmp.lt.s32.totalorder %s19, 1
        %s280 = scalar_select %p279, %s19, 1
        %s281 = smul.addr %s280, 8
        %s282 = smul.addr %s281, 8
        %s283 = scalar_lea.vmem %s7, %s282
        %p284 = scmp.lt.s32.totalorder %s19, 1
        %s285 = scalar_select %p284, %s19, 1
        %s286 = smul.addr %s285, 8
        %s287 = smul.addr %s286, 8
        %s288 = scalar_lea.vmem %s0, %s287
        %p289 = scmp.lt.s32.totalorder %s19, 1
        %s290 = scalar_select %p289, %s19, 1
        %s291 = smul.addr %s290, 8
        %s292 = smul.addr %s291, 8
        %s293 = scalar_lea.vmem %s7, %s292
        %v295 = vld [vmem:[%s288] sm:$0xff]
        %v296 = vld [vmem:[%s288 + $0x8] sm:$0xff]
        %v297 = vld [vmem:[%s288 + $0x10] sm:$0xff]
        %v298 = vld [vmem:[%s288 + $0x18] sm:$0xff]
        %v299 = vld [vmem:[%s288 + $0x20] sm:$0xff]
        %v300 = vld [vmem:[%s288 + $0x28] sm:$0xff]
        %v301 = vld [vmem:[%s288 + $0x30] sm:$0xff]
        %v302 = vld [vmem:[%s288 + $0x38] sm:$0xff]
        %vm303 = vcmask 261120
        %v304 = vsel %vm303, %v295, 0.0
        %v305 = vsel %vm303, %v296, 0.0
        %v306 = vadd.f32 %v304, %v305
        %v307 = vsel %vm303, %v297, 0.0
        %v308 = vadd.f32 %v306, %v307
        %v309 = vsel %vm303, %v298, 0.0
        %v310 = vadd.f32 %v308, %v309
        %v311 = vsel %vm303, %v299, 0.0
        %v312 = vadd.f32 %v310, %v311
        %v313 = vsel %vm303, %v300, 0.0
        %v314 = vadd.f32 %v312, %v313
        %v315 = vsel %vm303, %v301, 0.0
        %v316 = vadd.f32 %v314, %v315
        %v317 = vsel %vm303, %v302, 0.0
        %v318 = vadd.f32 %v316, %v317
        %v319 = vrot.slane %v318, 4
        %v320 = vadd.f32 %v318, %v319
        %v321 = vrot.slane %v320, 2
        %v322 = vadd.f32 %v320, %v321
        %v323 = vrot.slane %v322, 1
        %v324 = vadd.f32 %v322, %v323
        %v325 = vrcp.pop 64.0
        %v326 = vmul.f32 %v324, %v325
        %v327 = vld [vmem:[#allocation2] sm:$0xff]
        %v328 = vld [vmem:[#allocation2 + $0x8] sm:$0xff]
        %v329 = vld [vmem:[#allocation2 + $0x10] sm:$0xff]
        %v330 = vld [vmem:[#allocation2 + $0x18] sm:$0xff]
        %v331 = vpack.c.bf16 %v326, %v326
        %v332 = vpack.c.bf16 %v328, %v327
        %v333 = vpack.c.bf16 %v330, %v329
        %v334 = vld [vmem:[%s4] sm:$0x1]
        %v336 = vsel %vm303, %v331, 0
        %338 = vmatprep.subr.bf16.mxu0 0
        %339 = vmatpush1.bf16.msra.mxu0 0
        %340 = vmatprep.subr.bf16.mxu0 0
        %341 = vmatpush1.bf16.msra.mxu0 0
        %342 = vmatprep.subr.bf16.mxu0 0
        %343 = vmatpush1.bf16.msra.mxu0 0
        %344 = vmatprep.subr.bf16.mxu0 0
        %345 = vmatpush1.bf16.msra.mxu0 0
        %346 = vmatprep.subr.bf16.mxu0 0
        %347 = vmatpush1.bf16.msra.mxu0 0
        %348 = vmatprep.subr.bf16.mxu0 0
        %349 = vmatpush1.bf16.msra.mxu0 0
        %350 = vmatprep.subr.bf16.mxu0 0
        %351 = vmatpush1.bf16.msra.mxu0 %v333
        %352 = vmatprep.subr.bf16.mxu0 0
        %353 = vmatpush1.bf16.msra.mxu0 %v332
        %354 = vmatprep.subr.bf16.mxu0 0
        %355 = vmatpush2.bf16.msra.mxu0 0
        %356 = vmatprep.subr.bf16.mxu0 0
        %357 = vmatpush2.bf16.msra.mxu0 0
        %358 = vmatprep.subr.bf16.mxu0 0
        %359 = vmatpush2.bf16.msra.mxu0 0
        %360 = vmatprep.subr.bf16.mxu0 0
        %361 = vmatpush2.bf16.msra.mxu0 0
        %362 = vmatprep.subr.bf16.mxu0 0
        %363 = vmatpush2.bf16.msra.mxu0 0
        %364 = vmatprep.subr.bf16.mxu0 0
        %365 = vmatpush2.bf16.msra.mxu0 0
        %366 = vmatprep.subr.bf16.mxu0 0
        %367 = vmatpush2.bf16.msra.mxu0 0
        %368 = vmatprep.subr.bf16.mxu0 0
        %369 = vmatpush2.bf16.msra.mxu0 0
        %370 = vmatprep.mubr.bf16.mxu0 0
        %371 = vmatmul.mubr.bf16.gmra.mxu0 %v336
        %v372 = vpop.f32.mrf.mxu0
        %v373 = vadd.f32 %v334, %v372
        %v374 = vpop.f32.mrf.mxu0
        %v375 = vpop.f32.mrf.mxu0
        %v376 = vpop.f32.mrf.mxu0
        %377 = vdwg.mxu0
        %v378 = vmax.f32 %v373, 0.0
        %v379 = vld [vmem:[%s5] sm:$0xff]
        %v380 = vld [vmem:[%s5 + $0x8] sm:$0xff]
        %v381 = vld [vmem:[%s5 + $0x10] sm:$0xff]
        %v382 = vld [vmem:[%s5 + $0x18] sm:$0xff]
        %v383 = vld [vmem:[%s5 + $0x20] sm:$0xff]
        %v384 = vld [vmem:[%s5 + $0x28] sm:$0xff]
        %v385 = vld [vmem:[%s5 + $0x30] sm:$0xff]
        %v386 = vld [vmem:[%s5 + $0x38] sm:$0xff]
        %v387 = vpack.c.bf16 %v378, %v378
        %v388 = vpack.c.bf16 %v380, %v379
        %v389 = vpack.c.bf16 %v382, %v381
        %v390 = vpack.c.bf16 %v384, %v383
        %v391 = vpack.c.bf16 %v386, %v385
        %v392 = vld [vmem:[%s6] sm:$0x1]
        %vm393 = vcmask 523264
        %v395 = vsel %vm393, %v387, 0
        %397 = vmatprep.subr.bf16.mxu0 0
        %398 = vmatpush1.bf16.msra.mxu0 0
        %399 = vmatprep.subr.bf16.mxu0 0
        %400 = vmatpush1.bf16.msra.mxu0 0
        %401 = vmatprep.subr.bf16.mxu0 0
        %402 = vmatpush1.bf16.msra.mxu0 0
        %403 = vmatprep.subr.bf16.mxu0 0
        %404 = vmatpush1.bf16.msra.mxu0 0
        %405 = vmatprep.subr.bf16.mxu0 0
        %406 = vmatpush1.bf16.msra.mxu0 %v391
        %407 = vmatprep.subr.bf16.mxu0 0
        %408 = vmatpush1.bf16.msra.mxu0 %v390
        %409 = vmatprep.subr.bf16.mxu0 0
        %410 = vmatpush1.bf16.msra.mxu0 %v389
        %411 = vmatprep.subr.bf16.mxu0 0
        %412 = vmatpush1.bf16.msra.mxu0 %v388
        %413 = vmatprep.subr.bf16.mxu0 0
        %414 = vmatpush2.bf16.msra.mxu0 0
        %415 = vmatprep.subr.bf16.mxu0 0
        %416 = vmatpush2.bf16.msra.mxu0 0
        %417 = vmatprep.subr.bf16.mxu0 0
        %418 = vmatpush2.bf16.msra.mxu0 0
        %419 = vmatprep.subr.bf16.mxu0 0
        %420 = vmatpush2.bf16.msra.mxu0 0
        %421 = vmatprep.subr.bf16.mxu0 0
        %422 = vmatpush2.bf16.msra.mxu0 0
        %423 = vmatprep.subr.bf16.mxu0 0
        %424 = vmatpush2.bf16.msra.mxu0 0
        %425 = vmatprep.subr.bf16.mxu0 0
        %426 = vmatpush2.bf16.msra.mxu0 0
        %427 = vmatprep.subr.bf16.mxu0 0
        %428 = vmatpush2.bf16.msra.mxu0 0
        %429 = vmatprep.mubr.bf16.mxu0 0
        %430 = vmatmul.mubr.bf16.gmra.mxu0 %v395
        %v431 = vpop.f32.mrf.mxu0
        %v432 = vadd.f32 %v392, %v431
        %v433 = vpop.f32.mrf.mxu0
        %v434 = vpop.f32.mrf.mxu0
        %v435 = vpop.f32.mrf.mxu0
        %436 = vdwg.mxu0
        %v437 = vxor.u32 %v432, 2147483648
        %v438 = vmul.f32 %v437, 1.442695
        %v439 = vpow.pop %v438
        %v440 = vadd.f32 %v439, 1.0
        %v441 = vrcp.pop %v440
        %v442 = vmul.f32 1.0, %v441
        %v443 = vld [vmem:[%s1] sm:$0xff]
        %v444 = vld [vmem:[%s1 + $0x8] sm:$0xff]
        %v445 = vld [vmem:[%s1 + $0x10] sm:$0xff]
        %v446 = vld [vmem:[%s1 + $0x18] sm:$0xff]
        %v447 = vld [vmem:[%s1 + $0x20] sm:$0xff]
        %v448 = vld [vmem:[%s1 + $0x28] sm:$0xff]
        %v449 = vld [vmem:[%s1 + $0x30] sm:$0xff]
        %v450 = vld [vmem:[%s1 + $0x38] sm:$0xff]
        %v451 = vlaneseq
        %v452 = vshrl.u32 %v451, 7
        %v453 = vsub.s32 0, %v452
        %v454 = vrot.slane %v442, %v453
        %v455 = vmul.f32 %v454, %v443
        %v456 = vmul.f32 %v454, %v444
        %v457 = vmul.f32 %v454, %v445
        %v458 = vmul.f32 %v454, %v446
        %v459 = vmul.f32 %v454, %v447
        %v460 = vmul.f32 %v454, %v448
        %v461 = vmul.f32 %v454, %v449
        %v462 = vmul.f32 %v454, %v450
        %v463 = vadd.f32 %v295, %v455
        %v464 = vadd.f32 %v296, %v456
        %v465 = vadd.f32 %v297, %v457
        %v466 = vadd.f32 %v298, %v458
        %v467 = vadd.f32 %v299, %v459
        %v468 = vadd.f32 %v300, %v460
        %v469 = vadd.f32 %v301, %v461
        %v470 = vadd.f32 %v302, %v462
        %v471 = vld [vmem:[%s2] sm:$0xff]
        %v472 = vld [vmem:[%s2 + $0x8] sm:$0xff]
        %v473 = vld [vmem:[%s2 + $0x10] sm:$0xff]
        %v474 = vld [vmem:[%s2 + $0x18] sm:$0xff]
        %v475 = vld [vmem:[%s2 + $0x20] sm:$0xff]
        %v476 = vld [vmem:[%s2 + $0x28] sm:$0xff]
        %v477 = vld [vmem:[%s2 + $0x30] sm:$0xff]
        %v478 = vld [vmem:[%s2 + $0x38] sm:$0xff]
        %487 = vrot.lane.b32.xlu0 %v471, 32
        %v488 = vpop.permute.xlu0 %487
        %489 = vrot.lane.b32.xlu0 %v472, 32
        %v490 = vpop.permute.xlu0 %489
        %491 = vrot.lane.b32.xlu0 %v473, 32
        %v492 = vpop.permute.xlu0 %491
        %493 = vrot.lane.b32.xlu0 %v474, 32
        %v494 = vpop.permute.xlu0 %493
        %495 = vrot.lane.b32.xlu0 %v475, 32
        %v496 = vpop.permute.xlu0 %495
        %497 = vrot.lane.b32.xlu0 %v476, 32
        %v498 = vpop.permute.xlu0 %497
        %499 = vrot.lane.b32.xlu0 %v477, 32
        %v500 = vpop.permute.xlu0 %499
        %501 = vrot.lane.b32.xlu0 %v478, 32
        %v502 = vpop.permute.xlu0 %501
        %v511 = vmul.f32 %v454, %v488
        %v512 = vmul.f32 %v454, %v490
        %v513 = vmul.f32 %v454, %v492
        %v514 = vmul.f32 %v454, %v494
        %v515 = vmul.f32 %v454, %v496
        %v516 = vmul.f32 %v454, %v498
        %v517 = vmul.f32 %v454, %v500
        %v518 = vmul.f32 %v454, %v502
        %527 = vrot.lane.b32.xlu0 %v511, 96
        %v528 = vpop.permute.xlu0 %527
        %529 = vrot.lane.b32.xlu0 %v512, 96
        %v530 = vpop.permute.xlu0 %529
        %531 = vrot.lane.b32.xlu0 %v513, 96
        %v532 = vpop.permute.xlu0 %531
        %533 = vrot.lane.b32.xlu0 %v514, 96
        %v534 = vpop.permute.xlu0 %533
        %535 = vrot.lane.b32.xlu0 %v515, 96
        %v536 = vpop.permute.xlu0 %535
        %537 = vrot.lane.b32.xlu0 %v516, 96
        %v538 = vpop.permute.xlu0 %537
        %539 = vrot.lane.b32.xlu0 %v517, 96
        %v540 = vpop.permute.xlu0 %539
        %541 = vrot.lane.b32.xlu0 %v518, 96
        %v542 = vpop.permute.xlu0 %541
        %v551 = vadd.f32 %v463, %v528
        %v552 = vadd.f32 %v464, %v530
        %v553 = vadd.f32 %v465, %v532
        %v554 = vadd.f32 %v466, %v534
        %v555 = vadd.f32 %v467, %v536
        %v556 = vadd.f32 %v468, %v538
        %v557 = vadd.f32 %v469, %v540
        %v558 = vadd.f32 %v470, %v542
        %559 = vst.msk [vmem:[%s293] sm:$0xff] %vm303, %v551
        %560 = vst.msk [vmem:[%s293 + $0x8] sm:$0xff] %vm303, %v552
        %561 = vst.msk [vmem:[%s293 + $0x10] sm:$0xff] %vm303, %v553
        %562 = vst.msk [vmem:[%s293 + $0x18] sm:$0xff] %vm303, %v554
        %563 = vst.msk [vmem:[%s293 + $0x20] sm:$0xff] %vm303, %v555
        %564 = vst.msk [vmem:[%s293 + $0x28] sm:$0xff] %vm303, %v556
        %565 = vst.msk [vmem:[%s293 + $0x30] sm:$0xff] %vm303, %v557
        %566 = vst.msk [vmem:[%s293 + $0x38] sm:$0xff] %vm303, %v558
        %p567 = scmp.lt.s32.totalorder %s19, 1
        %s568 = scalar_select %p567, %s19, 1
        %s569 = smul.addr %s568, 8
        %s570 = smul.addr %s569, 8
        %s571 = scalar_lea.vmem %s7, %s570
        // Predicated region
        $region53: #{corner_encoder_forward.6} parent=47 // pred_check
          %p572 = pneg %p189
        $region54: #{corner_encoder_forward.6} parent=47 // pred_check_branch
          %574 = sbr.rel (%p572) target = $region56
        $region55: #{corner_encoder_forward.6} parent=47 // pred_region
          _
        $region56: #{corner_encoder_forward.6} parent=47 // pred_fallthru
          _
      $region48: #{corner_encoder_forward.6} parent=5 // pred_fallthru
        _
      %p575 = scmp.le.s32.totalorder 2, %s14
      // Predicated region
      $region57: #{corner_encoder_forward.6} parent=5 // pred_check
        %p576 = pneg %p575
      $region58: #{corner_encoder_forward.6} parent=5 // pred_check_branch
        %578 = sbr.rel (%p576) target = $region60
      $region59: #{corner_encoder_forward.6} parent=5 // pred_region
        %s579 = ssub.s32 %s14, 2
        // Predicated region
        $region61: #{corner_encoder_forward.6} parent=59 // pred_check
          %p580 = pneg %p195
        $region62: #{corner_encoder_forward.6} parent=59 // pred_check_branch
          %582 = sbr.rel (%p580) target = $region64
        $region63: #{corner_encoder_forward.6} parent=59 // pred_region
          %p583 = scmp.lt.s32.totalorder %s20, 1
          %s584 = scalar_select %p583, %s20, 1
          %s585 = smul.addr %s584, 8
          %s586 = smul.addr %s585, 8
          %s587 = scalar_lea.vmem %s7, %s586
        $region64: #{corner_encoder_forward.6} parent=59 // pred_fallthru
          _
      $region60: #{corner_encoder_forward.6} parent=5 // pred_fallthru
        _
    $region6: #{corner_encoder_forward.6} parent=1 // loop_footer
      %s18 = sadd.s32 1, %s14
    $region7: #{corner_encoder_forward.6} parent=1 // loop_footer_branch
      %13 = sbr.rel target = $region3
    $region8: #{corner_encoder_forward.6} parent=1 // loop_exit
      _
    %588 = vsyncpa [#allocation3], 1
    %s589 = scalar_lea.sflag [#allocation3], 1
    %590 = vsyncpa %s589, 1

// kernel: corner_encoder_forward.9
$region0: #{corner_encoder_forward.9}
  #allocation0 [shape = 'u32[]', space=smem, size = 0x4, offset = 0x4, fixed_abs, tag = 'smem constant byte address 0x4 - core index']
  #allocation1 [shape = 'u32[144,128]{1,0:T(1,128)}', space=vmem, size = 0x12000, scoped, tag = 'internal scratch']
  %s0 = inlined_call_operand.vmem [shape: f32[128,32], index: 0, kind: input, shape index: {}]
  %s1 = inlined_call_operand.vmem [shape: f32[1,32], index: 1, kind: input, shape index: {}]
  %s2 = inlined_call_operand.vmem [shape: f32[1,32], index: 2, kind: input, shape index: {}]
  %s3 = inlined_call_operand.vmem [shape: f32[128,32], index: 3, kind: output, shape index: {}]
  %s4 = sld [smem:[#allocation0]]
  $region22: #{corner_encoder_forward.9} parent=0
    _
  %s6 = ssub.s32 1, %s4
  %s7 = scalar_select 0, %s6, %s4
  // Predicated region
  $region2: #{corner_encoder_forward.9} parent=0 // pred_check
    _
  $region3: #{corner_encoder_forward.9} parent=0 // pred_check_branch
    %9 = sbr.rel (0) target = $region5
  $region4: #{corner_encoder_forward.9} parent=0 // pred_region
    _
  $region5: #{corner_encoder_forward.9} parent=0 // pred_fallthru
    _
  // Predicated region
  $region6: #{corner_encoder_forward.9} parent=0 // pred_check
    _
  $region7: #{corner_encoder_forward.9} parent=0 // pred_check_branch
    %11 = sbr.rel (0) target = $region9
  $region8: #{corner_encoder_forward.9} parent=0 // pred_region
    _
  $region9: #{corner_encoder_forward.9} parent=0 // pred_fallthru
    _
  // Predicated region
  $region10: #{corner_encoder_forward.9} parent=0 // pred_check
    _
  $region11: #{corner_encoder_forward.9} parent=0 // pred_check_branch
    %13 = sbr.rel (0) target = $region13
  $region12: #{corner_encoder_forward.9} parent=0 // pred_region
    _
  $region13: #{corner_encoder_forward.9} parent=0 // pred_fallthru
    _
  %v14 = vld [vmem:[%s0] sm:$0xff]
  %v15 = vld [vmem:[%s0 + $0x8] sm:$0xff]
  %v16 = vld [vmem:[%s0 + $0x10] sm:$0xff]
  %v17 = vld [vmem:[%s0 + $0x18] sm:$0xff]
  %v18 = vld [vmem:[%s0 + $0x20] sm:$0xff]
  %v19 = vld [vmem:[%s0 + $0x28] sm:$0xff]
  %v20 = vld [vmem:[%s0 + $0x30] sm:$0xff]
  %v21 = vld [vmem:[%s0 + $0x38] sm:$0xff]
  %v22 = vld [vmem:[%s0 + $0x40] sm:$0xff]
  %v23 = vld [vmem:[%s0 + $0x48] sm:$0xff]
  %v24 = vld [vmem:[%s0 + $0x50] sm:$0xff]
  %v25 = vld [vmem:[%s0 + $0x58] sm:$0xff]
  %v26 = vld [vmem:[%s0 + $0x60] sm:$0xff]
  %v27 = vld [vmem:[%s0 + $0x68] sm:$0xff]
  %v28 = vld [vmem:[%s0 + $0x70] sm:$0xff]
  %v29 = vld [vmem:[%s0 + $0x78] sm:$0xff]
  %v30 = vld [vmem:[%s1] sm:$0x1]
  %v31 = vld [vmem:[%s2] sm:$0x1]
  %vm32 = vcmask 261120
  %v33 = vsel %vm32, %v14, 0.0
  %34 = vadd.xlane.f32.xlu0 %v33
  %v35 = vpop.xlane.xlu0 %34
  %v36 = vsel %vm32, %v15, 0.0
  %37 = vadd.xlane.f32.xlu0 %v36
  %v38 = vpop.xlane.xlu0 %37
  %v39 = vsel %vm32, %v16, 0.0
  %40 = vadd.xlane.f32.xlu0 %v39
  %v41 = vpop.xlane.xlu0 %40
  %v42 = vsel %vm32, %v17, 0.0
  %43 = vadd.xlane.f32.xlu0 %v42
  %v44 = vpop.xlane.xlu0 %43
  %v45 = vsel %vm32, %v18, 0.0
  %46 = vadd.xlane.f32.xlu0 %v45
  %v47 = vpop.xlane.xlu0 %46
  %v48 = vsel %vm32, %v19, 0.0
  %49 = vadd.xlane.f32.xlu0 %v48
  %v50 = vpop.xlane.xlu0 %49
  %v51 = vsel %vm32, %v20, 0.0
  %52 = vadd.xlane.f32.xlu0 %v51
  %v53 = vpop.xlane.xlu0 %52
  %v54 = vsel %vm32, %v21, 0.0
  %55 = vadd.xlane.f32.xlu0 %v54
  %v56 = vpop.xlane.xlu0 %55
  %v57 = vsel %vm32, %v22, 0.0
  %58 = vadd.xlane.f32.xlu0 %v57
  %v59 = vpop.xlane.xlu0 %58
  %v60 = vsel %vm32, %v23, 0.0
  %61 = vadd.xlane.f32.xlu0 %v60
  %v62 = vpop.xlane.xlu0 %61
  %v63 = vsel %vm32, %v24, 0.0
  %64 = vadd.xlane.f32.xlu0 %v63
  %v65 = vpop.xlane.xlu0 %64
  %v66 = vsel %vm32, %v25, 0.0
  %67 = vadd.xlane.f32.xlu0 %v66
  %v68 = vpop.xlane.xlu0 %67
  %v69 = vsel %vm32, %v26, 0.0
  %70 = vadd.xlane.f32.xlu0 %v69
  %v71 = vpop.xlane.xlu0 %70
  %v72 = vsel %vm32, %v27, 0.0
  %73 = vadd.xlane.f32.xlu0 %v72
  %v74 = vpop.xlane.xlu0 %73
  %v75 = vsel %vm32, %v28, 0.0
  %76 = vadd.xlane.f32.xlu0 %v75
  %v77 = vpop.xlane.xlu0 %76
  %v78 = vsel %vm32, %v29, 0.0
  %79 = vadd.xlane.f32.xlu0 %v78
  %v80 = vpop.xlane.xlu0 %79
  %v81 = vrcp.pop 32.0
  %v82 = vmul.f32 %v35, %v81
  %v83 = vmul.f32 %v38, %v81
  %v84 = vmul.f32 %v41, %v81
  %v85 = vmul.f32 %v44, %v81
  %v86 = vmul.f32 %v47, %v81
  %v87 = vmul.f32 %v50, %v81
  %v88 = vmul.f32 %v53, %v81
  %v89 = vmul.f32 %v56, %v81
  %v90 = vmul.f32 %v59, %v81
  %v91 = vmul.f32 %v62, %v81
  %v92 = vmul.f32 %v65, %v81
  %v93 = vmul.f32 %v68, %v81
  %v94 = vmul.f32 %v71, %v81
  %v95 = vmul.f32 %v74, %v81
  %v96 = vmul.f32 %v77, %v81
  %v97 = vmul.f32 %v80, %v81
  %v98 = vsub.f32 %v14, %v82
  %v99 = vsub.f32 %v15, %v83
  %v100 = vsub.f32 %v16, %v84
  %v101 = vsub.f32 %v17, %v85
  %v102 = vsub.f32 %v18, %v86
  %v103 = vsub.f32 %v19, %v87
  %v104 = vsub.f32 %v20, %v88
  %v105 = vsub.f32 %v21, %v89
  %v106 = vsub.f32 %v22, %v90
  %v107 = vsub.f32 %v23, %v91
  %v108 = vsub.f32 %v24, %v92
  %v109 = vsub.f32 %v25, %v93
  %v110 = vsub.f32 %v26, %v94
  %v111 = vsub.f32 %v27, %v95
  %v112 = vsub.f32 %v28, %v96
  %v113 = vsub.f32 %v29, %v97
  %v114 = vmul.f32 %v98, %v98
  %v115 = vmul.f32 %v99, %v99
  %v116 = vmul.f32 %v100, %v100
  %v117 = vmul.f32 %v101, %v101
  %v118 = vmul.f32 %v102, %v102
  %v119 = vmul.f32 %v103, %v103
  %v120 = vmul.f32 %v104, %v104
  %v121 = vmul.f32 %v105, %v105
  %v122 = vmul.f32 %v106, %v106
  %v123 = vmul.f32 %v107, %v107
  %v124 = vmul.f32 %v108, %v108
  %v125 = vmul.f32 %v109, %v109
  %v126 = vmul.f32 %v110, %v110
  %v127 = vmul.f32 %v111, %v111
  %v128 = vmul.f32 %v112, %v112
  %v129 = vmul.f32 %v113, %v113
  %v130 = vsel %vm32, %v114, 0.0
  %131 = vadd.xlane.f32.xlu0 %v130
  %v132 = vpop.xlane.xlu0 %131
  %v133 = vsel %vm32, %v115, 0.0
  %134 = vadd.xlane.f32.xlu0 %v133
  %v135 = vpop.xlane.xlu0 %134
  %v136 = vsel %vm32, %v116, 0.0
  %137 = vadd.xlane.f32.xlu0 %v136
  %v138 = vpop.xlane.xlu0 %137
  %v139 = vsel %vm32, %v117, 0.0
  %140 = vadd.xlane.f32.xlu0 %v139
  %v141 = vpop.xlane.xlu0 %140
  %v142 = vsel %vm32, %v118, 0.0
  %143 = vadd.xlane.f32.xlu0 %v142
  %v144 = vpop.xlane.xlu0 %143
  %v145 = vsel %vm32, %v119, 0.0
  %146 = vadd.xlane.f32.xlu0 %v145
  %v147 = vpop.xlane.xlu0 %146
  %v148 = vsel %vm32, %v120, 0.0
  %149 = vadd.xlane.f32.xlu0 %v148
  %v150 = vpop.xlane.xlu0 %149
  %v151 = vsel %vm32, %v121, 0.0
  %152 = vadd.xlane.f32.xlu0 %v151
  %v153 = vpop.xlane.xlu0 %152
  %v154 = vsel %vm32, %v122, 0.0
  %155 = vadd.xlane.f32.xlu0 %v154
  %v156 = vpop.xlane.xlu0 %155
  %v157 = vsel %vm32, %v123, 0.0
  %158 = vadd.xlane.f32.xlu0 %v157
  %v159 = vpop.xlane.xlu0 %158
  %v160 = vsel %vm32, %v124, 0.0
  %161 = vadd.xlane.f32.xlu0 %v160
  %v162 = vpop.xlane.xlu0 %161
  %v163 = vsel %vm32, %v125, 0.0
  %164 = vadd.xlane.f32.xlu0 %v163
  %v165 = vpop.xlane.xlu0 %164
  %v166 = vsel %vm32, %v126, 0.0
  %167 = vadd.xlane.f32.xlu0 %v166
  %v168 = vpop.xlane.xlu0 %167
  %v169 = vsel %vm32, %v127, 0.0
  %170 = vadd.xlane.f32.xlu0 %v169
  %v171 = vpop.xlane.xlu0 %170
  %v172 = vsel %vm32, %v128, 0.0
  %173 = vadd.xlane.f32.xlu0 %v172
  %v174 = vpop.xlane.xlu0 %173
  %v175 = vsel %vm32, %v129, 0.0
  %176 = vadd.xlane.f32.xlu0 %v175
  %v177 = vpop.xlane.xlu0 %176
  %v178 = vmul.f32 %v132, %v81
  %v179 = vmul.f32 %v135, %v81
  %v180 = vmul.f32 %v138, %v81
  %v181 = vmul.f32 %v141, %v81
  %v182 = vmul.f32 %v144, %v81
  %v183 = vmul.f32 %v147, %v81
  %v184 = vmul.f32 %v150, %v81
  %v185 = vmul.f32 %v153, %v81
  %v186 = vmul.f32 %v156, %v81
  %v187 = vmul.f32 %v159, %v81
  %v188 = vmul.f32 %v162, %v81
  %v189 = vmul.f32 %v165, %v81
  %v190 = vmul.f32 %v168, %v81
  %v191 = vmul.f32 %v171, %v81
  %v192 = vmul.f32 %v174, %v81
  %v193 = vmul.f32 %v177, %v81
  %v194 = vadd.f32 %v178, 1e-05
  %v195 = vadd.f32 %v179, 1e-05
  %v196 = vadd.f32 %v180, 1e-05
  %v197 = vadd.f32 %v181, 1e-05
  %v198 = vadd.f32 %v182, 1e-05
  %v199 = vadd.f32 %v183, 1e-05
  %v200 = vadd.f32 %v184, 1e-05
  %v201 = vadd.f32 %v185, 1e-05
  %v202 = vadd.f32 %v186, 1e-05
  %v203 = vadd.f32 %v187, 1e-05
  %v204 = vadd.f32 %v188, 1e-05
  %v205 = vadd.f32 %v189, 1e-05
  %v206 = vadd.f32 %v190, 1e-05
  %v207 = vadd.f32 %v191, 1e-05
  %v208 = vadd.f32 %v192, 1e-05
  %v209 = vadd.f32 %v193, 1e-05
  %v210 = vrsqrt.pop %v194
  %v211 = vrsqrt.pop %v195
  %v212 = vrsqrt.pop %v196
  %v213 = vrsqrt.pop %v197
  %v214 = vrsqrt.pop %v198
  %v215 = vrsqrt.pop %v199
  %v216 = vrsqrt.pop %v200
  %v217 = vrsqrt.pop %v201
  %v218 = vrsqrt.pop %v202
  %v219 = vrsqrt.pop %v203
  %v220 = vrsqrt.pop %v204
  %v221 = vrsqrt.pop %v205
  %v222 = vrsqrt.pop %v206
  %v223 = vrsqrt.pop %v207
  %v224 = vrsqrt.pop %v208
  %v225 = vrsqrt.pop %v209
  %v226 = vmul.f32 %v98, %v210
  %v227 = vmul.f32 %v99, %v211
  %v228 = vmul.f32 %v100, %v212
  %v229 = vmul.f32 %v101, %v213
  %v230 = vmul.f32 %v102, %v214
  %v231 = vmul.f32 %v103, %v215
  %v232 = vmul.f32 %v104, %v216
  %v233 = vmul.f32 %v105, %v217
  %v234 = vmul.f32 %v106, %v218
  %v235 = vmul.f32 %v107, %v219
  %v236 = vmul.f32 %v108, %v220
  %v237 = vmul.f32 %v109, %v221
  %v238 = vmul.f32 %v110, %v222
  %v239 = vmul.f32 %v111, %v223
  %v240 = vmul.f32 %v112, %v224
  %v241 = vmul.f32 %v113, %v225
  %v243 = vlaneseq
  %v244 = vshrl.u32 %v243, 7
  %v245 = vsub.s32 0, %v244
  %v246 = vrot.slane %v30, %v245
  %v248 = vmul.f32 %v226, %v246
  %v249 = vmul.f32 %v227, %v246
  %v250 = vmul.f32 %v228, %v246
  %v251 = vmul.f32 %v229, %v246
  %v252 = vmul.f32 %v230, %v246
  %v253 = vmul.f32 %v231, %v246
  %v254 = vmul.f32 %v232, %v246
  %v255 = vmul.f32 %v233, %v246
  %v256 = vmul.f32 %v234, %v246
  %v257 = vmul.f32 %v235, %v246
  %v258 = vmul.f32 %v236, %v246
  %v259 = vmul.f32 %v237, %v246
  %v260 = vmul.f32 %v238, %v246
  %v261 = vmul.f32 %v239, %v246
  %v262 = vmul.f32 %v240, %v246
  %v263 = vmul.f32 %v241, %v246
  %v265 = vlaneseq
  %v266 = vshrl.u32 %v265, 7
  %v267 = vsub.s32 0, %v266
  %v268 = vrot.slane %v31, %v267
  %v270 = vadd.f32 %v248, %v268
  %v271 = vadd.f32 %v249, %v268
  %v272 = vadd.f32 %v250, %v268
  %v273 = vadd.f32 %v251, %v268
  %v274 = vadd.f32 %v252, %v268
  %v275 = vadd.f32 %v253, %v268
  %v276 = vadd.f32 %v254, %v268
  %v277 = vadd.f32 %v255, %v268
  %v278 = vadd.f32 %v256, %v268
  %v279 = vadd.f32 %v257, %v268
  %v280 = vadd.f32 %v258, %v268
  %v281 = vadd.f32 %v259, %v268
  %v282 = vadd.f32 %v260, %v268
  %v283 = vadd.f32 %v261, %v268
  %v284 = vadd.f32 %v262, %v268
  %v285 = vadd.f32 %v263, %v268
  %286 = vst.msk [vmem:[%s3] sm:$0xff] %vm32, %v270
  %287 = vst.msk [vmem:[%s3 + $0x8] sm:$0xff] %vm32, %v271
  %288 = vst.msk [vmem:[%s3 + $0x10] sm:$0xff] %vm32, %v272
  %289 = vst.msk [vmem:[%s3 + $0x18] sm:$0xff] %vm32, %v273
  %290 = vst.msk [vmem:[%s3 + $0x20] sm:$0xff] %vm32, %v274
  %291 = vst.msk [vmem:[%s3 + $0x28] sm:$0xff] %vm32, %v275
  %292 = vst.msk [vmem:[%s3 + $0x30] sm:$0xff] %vm32, %v276
  %293 = vst.msk [vmem:[%s3 + $0x38] sm:$0xff] %vm32, %v277
  %294 = vst.msk [vmem:[%s3 + $0x40] sm:$0xff] %vm32, %v278
  %295 = vst.msk [vmem:[%s3 + $0x48] sm:$0xff] %vm32, %v279
  %296 = vst.msk [vmem:[%s3 + $0x50] sm:$0xff] %vm32, %v280
  %297 = vst.msk [vmem:[%s3 + $0x58] sm:$0xff] %vm32, %v281
  %298 = vst.msk [vmem:[%s3 + $0x60] sm:$0xff] %vm32, %v282
  %299 = vst.msk [vmem:[%s3 + $0x68] sm:$0xff] %vm32, %v283
  %300 = vst.msk [vmem:[%s3 + $0x70] sm:$0xff] %vm32, %v284
  %301 = vst.msk [vmem:[%s3 + $0x78] sm:$0xff] %vm32, %v285
  // Predicated region
  $region14: #{corner_encoder_forward.9} parent=0 // pred_check
    _
  $region15: #{corner_encoder_forward.9} parent=0 // pred_check_branch
    %303 = sbr.rel (0) target = $region17
  $region16: #{corner_encoder_forward.9} parent=0 // pred_region
    _
  $region17: #{corner_encoder_forward.9} parent=0 // pred_fallthru
    _
  // Predicated region
  $region18: #{corner_encoder_forward.9} parent=0 // pred_check
    _
  $region19: #{corner_encoder_forward.9} parent=0 // pred_check_branch
    %305 = sbr.rel (0) target = $region21
  $region20: #{corner_encoder_forward.9} parent=0 // pred_region
    _
  $region21: #{corner_encoder_forward.9} parent=0 // pred_fallthru
    _

// kernel: corner_encoder_forward.7
$region0: #{corner_encoder_forward.7}
  #allocation0 [shape = 'u32[]', space=smem, size = 0x4, offset = 0x4, fixed_abs, tag = 'smem constant byte address 0x4 - core index']
  #allocation1 [shape = 'u32[144,128]{1,0:T(1,128)}', space=vmem, size = 0x12000, scoped, tag = 'internal scratch']
  %s0 = inlined_call_operand.vmem [shape: f32[2,64,32], index: 0, kind: input, shape index: {}]
  %s1 = inlined_call_operand.vmem [shape: f32[2,64,32], index: 1, kind: input, shape index: {}]
  %s2 = inlined_call_operand.vmem [shape: f32[1,32], index: 2, kind: input, shape index: {}]
  %s3 = inlined_call_operand.vmem [shape: f32[1,32], index: 3, kind: input, shape index: {}]
  %s4 = inlined_call_operand.vmem [shape: f32[32,16], index: 4, kind: input, shape index: {}]
  %s5 = inlined_call_operand.vmem [shape: f32[32,32], index: 5, kind: input, shape index: {}]
  %s6 = inlined_call_operand.vmem [shape: f32[16,32], index: 6, kind: input, shape index: {}]
  %s7 = inlined_call_operand.vmem [shape: f32[1,32], index: 7, kind: input, shape index: {}]
  %s8 = inlined_call_operand.vmem [shape: f32[1,32], index: 8, kind: input, shape index: {}]
  %s9 = inlined_call_operand.vmem [shape: f32[32,64], index: 9, kind: input, shape index: {}]
  %s10 = inlined_call_operand.vmem [shape: f32[1,64], index: 10, kind: input, shape index: {}]
  %s11 = inlined_call_operand.vmem [shape: f32[576,64], index: 11, kind: input, shape index: {}]
  %s12 = inlined_call_operand.vmem [shape: f32[9,64], index: 12, kind: input, shape index: {}]
  %s13 = inlined_call_operand.vmem [shape: f32[1,64], index: 13, kind: input, shape index: {}]
  %s14 = inlined_call_operand.vmem [shape: f32[64,32], index: 14, kind: input, shape index: {}]
  %s15 = inlined_call_operand.vmem [shape: f32[1,32], index: 15, kind: input, shape index: {}]
  %s16 = inlined_call_operand.vmem [shape: f32[2,64,32], index: 16, kind: output, shape index: {}]
  %s17 = sld [smem:[#allocation0]]
  $region97: #{corner_encoder_forward.7} parent=0
    _
  %s19 = ssub.s32 1, %s17
  %s20 = scalar_select 0, %s19, %s17
  loop: start=0, step=1, limit=4
  $region2: #{corner_encoder_forward.7} parent=0 // loop_pre_header
    _
  $region3: #{corner_encoder_forward.7} parent=0 // loop_header
    %s22 = sphi 0, %s26
    %p23 = scmp.ge.s32.totalorder %s22, 4
    %s32 = sphi 0, %s34
    %s35 = sphi 0, %s32
    %s36 = sphi 0, %s35
    %s52 = sphi 0, %s36
    %s58 = sphi 0, %s60
    %s61 = sphi 0, %s58
    %s62 = sphi 0, %s61
    %s78 = sphi 0, %s62
    %s82 = sphi 0, %s82
    %s84 = sphi 0, %s82
    %s85 = sphi 0, %s84
    %s99 = sphi 0, %s85
    %s103 = sphi 0, %s103
    %s105 = sphi 0, %s103
    %s106 = sphi 0, %s105
    %s120 = sphi 0, %s106
    %s124 = sphi 0, %s124
    %s126 = sphi 0, %s124
    %s127 = sphi 0, %s126
    %s141 = sphi 0, %s127
    %s145 = sphi 0, %s145
    %s147 = sphi 0, %s145
    %s148 = sphi 0, %s147
    %s162 = sphi 0, %s148
    %s166 = sphi 0, %s166
    %s168 = sphi 0, %s166
    %s169 = sphi 0, %s168
    %s183 = sphi 0, %s169
    %s187 = sphi 0, %s187
    %s189 = sphi 0, %s187
    %s190 = sphi 0, %s189
    %s204 = sphi 0, %s190
    %s208 = sphi 0, %s208
    %s210 = sphi 0, %s208
    %s211 = sphi 0, %s210
    %s225 = sphi 0, %s211
    %s229 = sphi 0, %s229
    %s231 = sphi 0, %s229
    %s232 = sphi 0, %s231
    %s246 = sphi 0, %s232
    %s250 = sphi 0, %s250
    %s252 = sphi 0, %s250
    %s253 = sphi 0, %s252
    %s267 = sphi 0, %s253
    %s271 = sphi 0, %s271
    %s273 = sphi 0, %s271
    %s274 = sphi 0, %s273
    %s288 = sphi 0, %s274
    %s292 = sphi 0, %s292
    %s294 = sphi 0, %s292
    %s295 = sphi 0, %s294
    %s309 = sphi 0, %s295
    %s313 = sphi 0, %s313
    %s315 = sphi 0, %s313
    %s316 = sphi 0, %s315
    %s330 = sphi 0, %s316
    %s334 = sphi 0, %s334
    %s336 = sphi 0, %s334
    %s337 = sphi 0, %s336
    %s351 = sphi 0, %s337
    %s355 = sphi 0, %s355
    %s357 = sphi 0, %s355
    %s358 = sphi 0, %s357
    %s372 = sphi 0, %s358
    %s378 = sphi 0, %s380
    %s381 = sphi 0, %s378
    %s382 = sphi 0, %s381
    %s398 = sphi 0, %s382
  $region4: #{corner_encoder_forward.7} parent=0 // loop_header_branch
    %25 = sbr.rel (%p23) target = $region8
  $region5: #{corner_encoder_forward.7} parent=0 // loop_body
    %s27 = ssub.s32 %s22, 1
    %s28 = ssub.s32 %s22, 2
    %s29 = sadd.s32 %s22, 1
    %s30 = ssub.s32 %s22, %s29
    %p31 = scmp.eq.s32.totalorder %s30, 0
    %s33 = sadd.s32 %s32, 1
    %s34 = scalar_select %p31, %s32, %s33
    %p37 = pneg %p31
    %p38 = scmp.eq.s32.totalorder %s22, 1
    %p39 = por %p37, %p38
    %p40 = scmp.ne.s32.totalorder %s32, %s35
    %p41 = scmp.eq.s32.totalorder %s22, 0
    %p42 = por %p40, %p41
    %p43 = scmp.ne.s32.totalorder %s32, %s35
    %p44 = scmp.eq.s32.totalorder %s27, 1
    %p45 = por %p43, %p44
    %p46 = scmp.ne.s32.totalorder %s35, %s36
    %p47 = scmp.eq.s32.totalorder %s27, 0
    %p48 = por %p46, %p47
    %p49 = scmp.ne.s32.totalorder %s35, %s36
    %p50 = scmp.eq.s32.totalorder %s28, 1
    %p51 = por %p49, %p50
    %p53 = scmp.ne.s32.totalorder %s36, %s52
    %p54 = scmp.eq.s32.totalorder %s28, 0
    %p55 = por %p53, %p54
    %s56 = ssub.s32 %s22, %s29
    %p57 = scmp.eq.s32.totalorder %s56, 0
    %s59 = sadd.s32 %s58, 1
    %s60 = scalar_select %p57, %s58, %s59
    %p63 = pneg %p57
    %p64 = scmp.eq.s32.totalorder %s22, 1
    %p65 = por %p63, %p64
    %p66 = scmp.ne.s32.totalorder %s58, %s61
    %p67 = scmp.eq.s32.totalorder %s22, 0
    %p68 = por %p66, %p67
    %p69 = scmp.ne.s32.totalorder %s58, %s61
    %p70 = scmp.eq.s32.totalorder %s27, 1
    %p71 = por %p69, %p70
    %p72 = scmp.ne.s32.totalorder %s61, %s62
    %p73 = scmp.eq.s32.totalorder %s27, 0
    %p74 = por %p72, %p73
    %p75 = scmp.ne.s32.totalorder %s61, %s62
    %p76 = scmp.eq.s32.totalorder %s28, 1
    %p77 = por %p75, %p76
    %p79 = scmp.ne.s32.totalorder %s62, %s78
    %p80 = scmp.eq.s32.totalorder %s28, 0
    %p81 = por %p79, %p80
    %s83 = sadd.s32 %s82, 1
    %p86 = scmp.eq.s32.totalorder %s22, 1
    %p87 = scmp.ne.s32.totalorder %s82, %s84
    %p88 = scmp.eq.s32.totalorder %s22, 0
    %p89 = por %p87, %p88
    %p90 = scmp.ne.s32.totalorder %s82, %s84
    %p91 = scmp.eq.s32.totalorder %s27, 1
    %p92 = por %p90, %p91
    %p93 = scmp.ne.s32.totalorder %s84, %s85
    %p94 = scmp.eq.s32.totalorder %s27, 0
    %p95 = por %p93, %p94
    %p96 = scmp.ne.s32.totalorder %s84, %s85
    %p97 = scmp.eq.s32.totalorder %s28, 1
    %p98 = por %p96, %p97
    %p100 = scmp.ne.s32.totalorder %s85, %s99
    %p101 = scmp.eq.s32.totalorder %s28, 0
    %p102 = por %p100, %p101
    %s104 = sadd.s32 %s103, 1
    %p107 = scmp.eq.s32.totalorder %s22, 1
    %p108 = scmp.ne.s32.totalorder %s103, %s105
    %p109 = scmp.eq.s32.totalorder %s22, 0
    %p110 = por %p108, %p109
    %p111 = scmp.ne.s32.totalorder %s103, %s105
    %p112 = scmp.eq.s32.totalorder %s27, 1
    %p113 = por %p111, %p112
    %p114 = scmp.ne.s32.totalorder %s105, %s106
    %p115 = scmp.eq.s32.totalorder %s27, 0
    %p116 = por %p114, %p115
    %p117 = scmp.ne.s32.totalorder %s105, %s106
    %p118 = scmp.eq.s32.totalorder %s28, 1
    %p119 = por %p117, %p118
    %p121 = scmp.ne.s32.totalorder %s106, %s120
    %p122 = scmp.eq.s32.totalorder %s28, 0
    %p123 = por %p121, %p122
    %s125 = sadd.s32 %s124, 1
    %p128 = scmp.eq.s32.totalorder %s22, 1
    %p129 = scmp.ne.s32.totalorder %s124, %s126
    %p130 = scmp.eq.s32.totalorder %s22, 0
    %p131 = por %p129, %p130
    %p132 = scmp.ne.s32.totalorder %s124, %s126
    %p133 = scmp.eq.s32.totalorder %s27, 1
    %p134 = por %p132, %p133
    %p135 = scmp.ne.s32.totalorder %s126, %s127
    %p136 = scmp.eq.s32.totalorder %s27, 0
    %p137 = por %p135, %p136
    %p138 = scmp.ne.s32.totalorder %s126, %s127
    %p139 = scmp.eq.s32.totalorder %s28, 1
    %p140 = por %p138, %p139
    %p142 = scmp.ne.s32.totalorder %s127, %s141
    %p143 = scmp.eq.s32.totalorder %s28, 0
    %p144 = por %p142, %p143
    %s146 = sadd.s32 %s145, 1
    %p149 = scmp.eq.s32.totalorder %s22, 1
    %p150 = scmp.ne.s32.totalorder %s145, %s147
    %p151 = scmp.eq.s32.totalorder %s22, 0
    %p152 = por %p150, %p151
    %p153 = scmp.ne.s32.totalorder %s145, %s147
    %p154 = scmp.eq.s32.totalorder %s27, 1
    %p155 = por %p153, %p154
    %p156 = scmp.ne.s32.totalorder %s147, %s148
    %p157 = scmp.eq.s32.totalorder %s27, 0
    %p158 = por %p156, %p157
    %p159 = scmp.ne.s32.totalorder %s147, %s148
    %p160 = scmp.eq.s32.totalorder %s28, 1
    %p161 = por %p159, %p160
    %p163 = scmp.ne.s32.totalorder %s148, %s162
    %p164 = scmp.eq.s32.totalorder %s28, 0
    %p165 = por %p163, %p164
    %s167 = sadd.s32 %s166, 1
    %p170 = scmp.eq.s32.totalorder %s22, 1
    %p171 = scmp.ne.s32.totalorder %s166, %s168
    %p172 = scmp.eq.s32.totalorder %s22, 0
    %p173 = por %p171, %p172
    %p174 = scmp.ne.s32.totalorder %s166, %s168
    %p175 = scmp.eq.s32.totalorder %s27, 1
    %p176 = por %p174, %p175
    %p177 = scmp.ne.s32.totalorder %s168, %s169
    %p178 = scmp.eq.s32.totalorder %s27, 0
    %p179 = por %p177, %p178
    %p180 = scmp.ne.s32.totalorder %s168, %s169
    %p181 = scmp.eq.s32.totalorder %s28, 1
    %p182 = por %p180, %p181
    %p184 = scmp.ne.s32.totalorder %s169, %s183
    %p185 = scmp.eq.s32.totalorder %s28, 0
    %p186 = por %p184, %p185
    %s188 = sadd.s32 %s187, 1
    %p191 = scmp.eq.s32.totalorder %s22, 1
    %p192 = scmp.ne.s32.totalorder %s187, %s189
    %p193 = scmp.eq.s32.totalorder %s22, 0
    %p194 = por %p192, %p193
    %p195 = scmp.ne.s32.totalorder %s187, %s189
    %p196 = scmp.eq.s32.totalorder %s27, 1
    %p197 = por %p195, %p196
    %p198 = scmp.ne.s32.totalorder %s189, %s190
    %p199 = scmp.eq.s32.totalorder %s27, 0
    %p200 = por %p198, %p199
    %p201 = scmp.ne.s32.totalorder %s189, %s190
    %p202 = scmp.eq.s32.totalorder %s28, 1
    %p203 = por %p201, %p202
    %p205 = scmp.ne.s32.totalorder %s190, %s204
    %p206 = scmp.eq.s32.totalorder %s28, 0
    %p207 = por %p205, %p206
    %s209 = sadd.s32 %s208, 1
    %p212 = scmp.eq.s32.totalorder %s22, 1
    %p213 = scmp.ne.s32.totalorder %s208, %s210
    %p214 = scmp.eq.s32.totalorder %s22, 0
    %p215 = por %p213, %p214
    %p216 = scmp.ne.s32.totalorder %s208, %s210
    %p217 = scmp.eq.s32.totalorder %s27, 1
    %p218 = por %p216, %p217
    %p219 = scmp.ne.s32.totalorder %s210, %s211
    %p220 = scmp.eq.s32.totalorder %s27, 0
    %p221 = por %p219, %p220
    %p222 = scmp.ne.s32.totalorder %s210, %s211
    %p223 = scmp.eq.s32.totalorder %s28, 1
    %p224 = por %p222, %p223
    %p226 = scmp.ne.s32.totalorder %s211, %s225
    %p227 = scmp.eq.s32.totalorder %s28, 0
    %p228 = por %p226, %p227
    %s230 = sadd.s32 %s229, 1
    %p233 = scmp.eq.s32.totalorder %s22, 1
    %p234 = scmp.ne.s32.totalorder %s229, %s231
    %p235 = scmp.eq.s32.totalorder %s22, 0
    %p236 = por %p234, %p235
    %p237 = scmp.ne.s32.totalorder %s229, %s231
    %p238 = scmp.eq.s32.totalorder %s27, 1
    %p239 = por %p237, %p238
    %p240 = scmp.ne.s32.totalorder %s231, %s232
    %p241 = scmp.eq.s32.totalorder %s27, 0
    %p242 = por %p240, %p241
    %p243 = scmp.ne.s32.totalorder %s231, %s232
    %p244 = scmp.eq.s32.totalorder %s28, 1
    %p245 = por %p243, %p244
    %p247 = scmp.ne.s32.totalorder %s232, %s246
    %p248 = scmp.eq.s32.totalorder %s28, 0
    %p249 = por %p247, %p248
    %s251 = sadd.s32 %s250, 1
    %p254 = scmp.eq.s32.totalorder %s22, 1
    %p255 = scmp.ne.s32.totalorder %s250, %s252
    %p256 = scmp.eq.s32.totalorder %s22, 0
    %p257 = por %p255, %p256
    %p258 = scmp.ne.s32.totalorder %s250, %s252
    %p259 = scmp.eq.s32.totalorder %s27, 1
    %p260 = por %p258, %p259
    %p261 = scmp.ne.s32.totalorder %s252, %s253
    %p262 = scmp.eq.s32.totalorder %s27, 0
    %p263 = por %p261, %p262
    %p264 = scmp.ne.s32.totalorder %s252, %s253
    %p265 = scmp.eq.s32.totalorder %s28, 1
    %p266 = por %p264, %p265
    %p268 = scmp.ne.s32.totalorder %s253, %s267
    %p269 = scmp.eq.s32.totalorder %s28, 0
    %p270 = por %p268, %p269
    %s272 = sadd.s32 %s271, 1
    %p275 = scmp.eq.s32.totalorder %s22, 1
    %p276 = scmp.ne.s32.totalorder %s271, %s273
    %p277 = scmp.eq.s32.totalorder %s22, 0
    %p278 = por %p276, %p277
    %p279 = scmp.ne.s32.totalorder %s271, %s273
    %p280 = scmp.eq.s32.totalorder %s27, 1
    %p281 = por %p279, %p280
    %p282 = scmp.ne.s32.totalorder %s273, %s274
    %p283 = scmp.eq.s32.totalorder %s27, 0
    %p284 = por %p282, %p283
    %p285 = scmp.ne.s32.totalorder %s273, %s274
    %p286 = scmp.eq.s32.totalorder %s28, 1
    %p287 = por %p285, %p286
    %p289 = scmp.ne.s32.totalorder %s274, %s288
    %p290 = scmp.eq.s32.totalorder %s28, 0
    %p291 = por %p289, %p290
    %s293 = sadd.s32 %s292, 1
    %p296 = scmp.eq.s32.totalorder %s22, 1
    %p297 = scmp.ne.s32.totalorder %s292, %s294
    %p298 = scmp.eq.s32.totalorder %s22, 0
    %p299 = por %p297, %p298
    %p300 = scmp.ne.s32.totalorder %s292, %s294
    %p301 = scmp.eq.s32.totalorder %s27, 1
    %p302 = por %p300, %p301
    %p303 = scmp.ne.s32.totalorder %s294, %s295
    %p304 = scmp.eq.s32.totalorder %s27, 0
    %p305 = por %p303, %p304
    %p306 = scmp.ne.s32.totalorder %s294, %s295
    %p307 = scmp.eq.s32.totalorder %s28, 1
    %p308 = por %p306, %p307
    %p310 = scmp.ne.s32.totalorder %s295, %s309
    %p311 = scmp.eq.s32.totalorder %s28, 0
    %p312 = por %p310, %p311
    %s314 = sadd.s32 %s313, 1
    %p317 = scmp.eq.s32.totalorder %s22, 1
    %p318 = scmp.ne.s32.totalorder %s313, %s315
    %p319 = scmp.eq.s32.totalorder %s22, 0
    %p320 = por %p318, %p319
    %p321 = scmp.ne.s32.totalorder %s313, %s315
    %p322 = scmp.eq.s32.totalorder %s27, 1
    %p323 = por %p321, %p322
    %p324 = scmp.ne.s32.totalorder %s315, %s316
    %p325 = scmp.eq.s32.totalorder %s27, 0
    %p326 = por %p324, %p325
    %p327 = scmp.ne.s32.totalorder %s315, %s316
    %p328 = scmp.eq.s32.totalorder %s28, 1
    %p329 = por %p327, %p328
    %p331 = scmp.ne.s32.totalorder %s316, %s330
    %p332 = scmp.eq.s32.totalorder %s28, 0
    %p333 = por %p331, %p332
    %s335 = sadd.s32 %s334, 1
    %p338 = scmp.eq.s32.totalorder %s22, 1
    %p339 = scmp.ne.s32.totalorder %s334, %s336
    %p340 = scmp.eq.s32.totalorder %s22, 0
    %p341 = por %p339, %p340
    %p342 = scmp.ne.s32.totalorder %s334, %s336
    %p343 = scmp.eq.s32.totalorder %s27, 1
    %p344 = por %p342, %p343
    %p345 = scmp.ne.s32.totalorder %s336, %s337
    %p346 = scmp.eq.s32.totalorder %s27, 0
    %p347 = por %p345, %p346
    %p348 = scmp.ne.s32.totalorder %s336, %s337
    %p349 = scmp.eq.s32.totalorder %s28, 1
    %p350 = por %p348, %p349
    %p352 = scmp.ne.s32.totalorder %s337, %s351
    %p353 = scmp.eq.s32.totalorder %s28, 0
    %p354 = por %p352, %p353
    %s356 = sadd.s32 %s355, 1
    %p359 = scmp.eq.s32.totalorder %s22, 1
    %p360 = scmp.ne.s32.totalorder %s355, %s357
    %p361 = scmp.eq.s32.totalorder %s22, 0
    %p362 = por %p360, %p361
    %p363 = scmp.ne.s32.totalorder %s355, %s357
    %p364 = scmp.eq.s32.totalorder %s27, 1
    %p365 = por %p363, %p364
    %p366 = scmp.ne.s32.totalorder %s357, %s358
    %p367 = scmp.eq.s32.totalorder %s27, 0
    %p368 = por %p366, %p367
    %p369 = scmp.ne.s32.totalorder %s357, %s358
    %p370 = scmp.eq.s32.totalorder %s28, 1
    %p371 = por %p369, %p370
    %p373 = scmp.ne.s32.totalorder %s358, %s372
    %p374 = scmp.eq.s32.totalorder %s28, 0
    %p375 = por %p373, %p374
    %s376 = ssub.s32 %s22, %s29
    %p377 = scmp.eq.s32.totalorder %s376, 0
    %s379 = sadd.s32 %s378, 1
    %s380 = scalar_select %p377, %s378, %s379
    %p383 = pneg %p377
    %p384 = scmp.eq.s32.totalorder %s22, 1
    %p385 = por %p383, %p384
    %p386 = scmp.ne.s32.totalorder %s378, %s381
    %p387 = scmp.eq.s32.totalorder %s22, 0
    %p388 = por %p386, %p387
    %p389 = scmp.ne.s32.totalorder %s378, %s381
    %p390 = scmp.eq.s32.totalorder %s27, 1
    %p391 = por %p389, %p390
    %p392 = scmp.ne.s32.totalorder %s381, %s382
    %p393 = scmp.eq.s32.totalorder %s27, 0
    %p394 = por %p392, %p393
    %p395 = scmp.ne.s32.totalorder %s381, %s382
    %p396 = scmp.eq.s32.totalorder %s28, 1
    %p397 = por %p395, %p396
    %p399 = scmp.ne.s32.totalorder %s382, %s398
    %p400 = scmp.eq.s32.totalorder %s28, 0
    %p401 = por %p399, %p400
    %p402 = scmp.le.s32.totalorder 1, %s22
    %p403 = scmp.lt.s32.totalorder %s22, 3
    %p404 = pnand %p402, %p403
    %p405 = pneg %p404
    // Predicated region
    $region9: #{corner_encoder_forward.7} parent=5 // pred_check
      _
    $region10: #{corner_encoder_forward.7} parent=5 // pred_check_branch
      %407 = sbr.rel (%p404) target = $region12
    $region11: #{corner_encoder_forward.7} parent=5 // pred_region
      %s408 = ssub.s32 %s22, 1
      // Predicated region
      $region13: #{corner_encoder_forward.7} parent=11 // pred_check
        %p409 = pneg %p95
      $region14: #{corner_encoder_forward.7} parent=11 // pred_check_branch
        %411 = sbr.rel (%p409) target = $region16
      $region15: #{corner_encoder_forward.7} parent=11 // pred_region
        _
      $region16: #{corner_encoder_forward.7} parent=11 // pred_fallthru
        _
      // Predicated region
      $region17: #{corner_encoder_forward.7} parent=11 // pred_check
        %p412 = pneg %p116
      $region18: #{corner_encoder_forward.7} parent=11 // pred_check_branch
        %414 = sbr.rel (%p412) target = $region20
      $region19: #{corner_encoder_forward.7} parent=11 // pred_region
        _
      $region20: #{corner_encoder_forward.7} parent=11 // pred_fallthru
        _
      // Predicated region
      $region21: #{corner_encoder_forward.7} parent=11 // pred_check
        %p415 = pneg %p137
      $region22: #{corner_encoder_forward.7} parent=11 // pred_check_branch
        %417 = sbr.rel (%p415) target = $region24
      $region23: #{corner_encoder_forward.7} parent=11 // pred_region
        _
      $region24: #{corner_encoder_forward.7} parent=11 // pred_fallthru
        _
      // Predicated region
      $region25: #{corner_encoder_forward.7} parent=11 // pred_check
        %p418 = pneg %p158
      $region26: #{corner_encoder_forward.7} parent=11 // pred_check_branch
        %420 = sbr.rel (%p418) target = $region28
      $region27: #{corner_encoder_forward.7} parent=11 // pred_region
        _
      $region28: #{corner_encoder_forward.7} parent=11 // pred_fallthru
        _
      // Predicated region
      $region29: #{corner_encoder_forward.7} parent=11 // pred_check
        %p421 = pneg %p179
      $region30: #{corner_encoder_forward.7} parent=11 // pred_check_branch
        %423 = sbr.rel (%p421) target = $region32
      $region31: #{corner_encoder_forward.7} parent=11 // pred_region
        _
      $region32: #{corner_encoder_forward.7} parent=11 // pred_fallthru
        _
      // Predicated region
      $region33: #{corner_encoder_forward.7} parent=11 // pred_check
        %p424 = pneg %p200
      $region34: #{corner_encoder_forward.7} parent=11 // pred_check_branch
        %426 = sbr.rel (%p424) target = $region36
      $region35: #{corner_encoder_forward.7} parent=11 // pred_region
        _
      $region36: #{corner_encoder_forward.7} parent=11 // pred_fallthru
        _
      // Predicated region
      $region37: #{corner_encoder_forward.7} parent=11 // pred_check
        %p427 = pneg %p221
      $region38: #{corner_encoder_forward.7} parent=11 // pred_check_branch
        %429 = sbr.rel (%p427) target = $region40
      $region39: #{corner_encoder_forward.7} parent=11 // pred_region
        _
      $region40: #{corner_encoder_forward.7} parent=11 // pred_fallthru
        _
      // Predicated region
      $region41: #{corner_encoder_forward.7} parent=11 // pred_check
        %p430 = pneg %p242
      $region42: #{corner_encoder_forward.7} parent=11 // pred_check_branch
        %432 = sbr.rel (%p430) target = $region44
      $region43: #{corner_encoder_forward.7} parent=11 // pred_region
        _
      $region44: #{corner_encoder_forward.7} parent=11 // pred_fallthru
        _
      // Predicated region
      $region45: #{corner_encoder_forward.7} parent=11 // pred_check
        %p433 = pneg %p263
      $region46: #{corner_encoder_forward.7} parent=11 // pred_check_branch
        %435 = sbr.rel (%p433) target = $region48
      $region47: #{corner_encoder_forward.7} parent=11 // pred_region
        _
      $region48: #{corner_encoder_forward.7} parent=11 // pred_fallthru
        _
      // Predicated region
      $region49: #{corner_encoder_forward.7} parent=11 // pred_check
        %p436 = pneg %p284
      $region50: #{corner_encoder_forward.7} parent=11 // pred_check_branch
        %438 = sbr.rel (%p436) target = $region52
      $region51: #{corner_encoder_forward.7} parent=11 // pred_region
        _
      $region52: #{corner_encoder_forward.7} parent=11 // pred_fallthru
        _
      // Predicated region
      $region53: #{corner_encoder_forward.7} parent=11 // pred_check
        %p439 = pneg %p305
      $region54: #{corner_encoder_forward.7} parent=11 // pred_check_branch
        %441 = sbr.rel (%p439) target = $region56
      $region55: #{corner_encoder_forward.7} parent=11 // pred_region
        _
      $region56: #{corner_encoder_forward.7} parent=11 // pred_fallthru
        _
      // Predicated region
      $region57: #{corner_encoder_forward.7} parent=11 // pred_check
        %p442 = pneg %p326
      $region58: #{corner_encoder_forward.7} parent=11 // pred_check_branch
        %444 = sbr.rel (%p442) target = $region60
      $region59: #{corner_encoder_forward.7} parent=11 // pred_region
        _
      $region60: #{corner_encoder_forward.7} parent=11 // pred_fallthru
        _
      // Predicated region
      $region61: #{corner_encoder_forward.7} parent=11 // pred_check
        %p445 = pneg %p347
      $region62: #{corner_encoder_forward.7} parent=11 // pred_check_branch
        %447 = sbr.rel (%p445) target = $region64
      $region63: #{corner_encoder_forward.7} parent=11 // pred_region
        _
      $region64: #{corner_encoder_forward.7} parent=11 // pred_fallthru
        _
      // Predicated region
      $region65: #{corner_encoder_forward.7} parent=11 // pred_check
        %p448 = pneg %p368
      $region66: #{corner_encoder_forward.7} parent=11 // pred_check_branch
        %450 = sbr.rel (%p448) target = $region68
      $region67: #{corner_encoder_forward.7} parent=11 // pred_region
        _
      $region68: #{corner_encoder_forward.7} parent=11 // pred_fallthru
        _
    $region12: #{corner_encoder_forward.7} parent=5 // pred_fallthru
      _
    %p451 = scmp.lt.s32.totalorder %s22, 2
    // Predicated region
    $region69: #{corner_encoder_forward.7} parent=5 // pred_check
      %p452 = pneg %p451
    $region70: #{corner_encoder_forward.7} parent=5 // pred_check_branch
      %454 = sbr.rel (%p452) target = $region72
    $region71: #{corner_encoder_forward.7} parent=5 // pred_region
      // Predicated region
      $region73: #{corner_encoder_forward.7} parent=71 // pred_check
        %p455 = pneg %p42
      $region74: #{corner_encoder_forward.7} parent=71 // pred_check_branch
        %457 = sbr.rel (%p455) target = $region76
      $region75: #{corner_encoder_forward.7} parent=71 // pred_region
        %p458 = scmp.lt.s32.totalorder %s22, 1
        %s459 = scalar_select %p458, %s22, 1
        %s460 = smul.addr %s459, 8
        %s461 = smul.addr %s460, 8
        %s462 = scalar_lea.vmem %s0, %s461
      $region76: #{corner_encoder_forward.7} parent=71 // pred_fallthru
        _
      // Predicated region
      $region77: #{corner_encoder_forward.7} parent=71 // pred_check
        %p463 = pneg %p68
      $region78: #{corner_encoder_forward.7} parent=71 // pred_check_branch
        %465 = sbr.rel (%p463) target = $region80
      $region79: #{corner_encoder_forward.7} parent=71 // pred_region
        %p466 = scmp.lt.s32.totalorder %s22, 1
        %s467 = scalar_select %p466, %s22, 1
        %s468 = smul.addr %s467, 8
        %s469 = smul.addr %s468, 8
        %s470 = scalar_lea.vmem %s1, %s469
      $region80: #{corner_encoder_forward.7} parent=71 // pred_fallthru
        _
    $region72: #{corner_encoder_forward.7} parent=5 // pred_fallthru
      _
    %p471 = scmp.le.s32.totalorder 1, %s22
    %p472 = scmp.lt.s32.totalorder %s22, 3
    %p473 = pnand %p471, %p472
    %p474 = pneg %p473
    // Predicated region
    $region81: #{corner_encoder_forward.7} parent=5 // pred_check
      _
    $region82: #{corner_encoder_forward.7} parent=5 // pred_check_branch
      %476 = sbr.rel (%p473) target = $region84
    $region83: #{corner_encoder_forward.7} parent=5 // pred_region
      %s477 = ssub.s32 %s22, 1
      %p478 = scmp.lt.s32.totalorder %s27, 1
      %s479 = scalar_select %p478, %s27, 1
      %s480 = smul.addr %s479, 8
      %s481 = smul.addr %s480, 8
      %s482 = scalar_lea.vmem %s0, %s481
      %p483 = pneg %p48
      %p484 = pneg %p45
      %p485 = scmp.lt.s32.totalorder %s27, 1
      %s486 = scalar_select %p485, %s27, 1
      %s487 = smul.addr %s486, 8
      %s488 = smul.addr %s487, 8
      %s489 = scalar_lea.vmem %s1, %s488
      %p490 = pneg %p74
      %p491 = pneg %p71
      %p492 = pneg %p95
      %p493 = pneg %p92
      %p494 = pneg %p116
      %p495 = pneg %p113
      %p496 = pneg %p137
      %p497 = pneg %p134
      %p498 = pneg %p158
      %p499 = pneg %p155
      %p500 = pneg %p179
      %p501 = pneg %p176
      %p502 = pneg %p200
      %p503 = pneg %p197
      %p504 = pneg %p221
      %p505 = pneg %p218
      %p506 = pneg %p242
      %p507 = pneg %p239
      %p508 = pneg %p263
      %p509 = pneg %p260
      %p510 = pneg %p284
      %p511 = pneg %p281
      %p512 = pneg %p305
      %p513 = pneg %p302
      %p514 = pneg %p326
      %p515 = pneg %p323
      %p516 = pneg %p347
      %p517 = pneg %p344
      %p518 = pneg %p368
      %p519 = pneg %p365
      %p520 = pneg %p394
      %p521 = pneg %p391
      %p522 = scmp.lt.s32.totalorder %s27, 1
      %s523 = scalar_select %p522, %s27, 1
      %s524 = smul.addr %s523, 8
      %s525 = smul.addr %s524, 8
      %s526 = scalar_lea.vmem %s16, %s525
      %p527 = scmp.lt.s32.totalorder %s27, 1
      %s528 = scalar_select %p527, %s27, 1
      %s529 = smul.addr %s528, 8
      %s530 = smul.addr %s529, 8
      %s531 = scalar_lea.vmem %s0, %s530
      %p532 = scmp.lt.s32.totalorder %s27, 1
      %s533 = scalar_select %p532, %s27, 1
      %s534 = smul.addr %s533, 8
      %s535 = smul.addr %s534, 8
      %s536 = scalar_lea.vmem %s1, %s535
      %p537 = scmp.lt.s32.totalorder %s27, 1
      %s538 = scalar_select %p537, %s27, 1
      %s539 = smul.addr %s538, 8
      %s540 = smul.addr %s539, 8
      %s541 = scalar_lea.vmem %s16, %s540
      %v543 = vld [vmem:[%s531] sm:$0xff]
      %v544 = vld [vmem:[%s531 + $0x8] sm:$0xff]
      %v545 = vld [vmem:[%s531 + $0x10] sm:$0xff]
      %v546 = vld [vmem:[%s531 + $0x18] sm:$0xff]
      %v547 = vld [vmem:[%s531 + $0x20] sm:$0xff]
      %v548 = vld [vmem:[%s531 + $0x28] sm:$0xff]
      %v549 = vld [vmem:[%s531 + $0x30] sm:$0xff]
      %v550 = vld [vmem:[%s531 + $0x38] sm:$0xff]
      %v551 = vld [vmem:[%s536] sm:$0xff]
      %v552 = vld [vmem:[%s536 + $0x8] sm:$0xff]
      %v553 = vld [vmem:[%s536 + $0x10] sm:$0xff]
      %v554 = vld [vmem:[%s536 + $0x18] sm:$0xff]
      %v555 = vld [vmem:[%s536 + $0x20] sm:$0xff]
      %v556 = vld [vmem:[%s536 + $0x28] sm:$0xff]
      %v557 = vld [vmem:[%s536 + $0x30] sm:$0xff]
      %v558 = vld [vmem:[%s536 + $0x38] sm:$0xff]
      %v559 = vld [vmem:[%s2] sm:$0x1]
      %v560 = vld [vmem:[%s3] sm:$0x1]
      %vm561 = vcmask 261120
      %v562 = vsel %vm561, %v543, 0.0
      %563 = vadd.xlane.f32.xlu0 %v562
      %v564 = vpop.xlane.xlu0 %563
      %v565 = vsel %vm561, %v544, 0.0
      %566 = vadd.xlane.f32.xlu0 %v565
      %v567 = vpop.xlane.xlu0 %566
      %v568 = vsel %vm561, %v545, 0.0
      %569 = vadd.xlane.f32.xlu0 %v568
      %v570 = vpop.xlane.xlu0 %569
      %v571 = vsel %vm561, %v546, 0.0
      %572 = vadd.xlane.f32.xlu0 %v571
      %v573 = vpop.xlane.xlu0 %572
      %v574 = vsel %vm561, %v547, 0.0
      %575 = vadd.xlane.f32.xlu0 %v574
      %v576 = vpop.xlane.xlu0 %575
      %v577 = vsel %vm561, %v548, 0.0
      %578 = vadd.xlane.f32.xlu0 %v577
      %v579 = vpop.xlane.xlu0 %578
      %v580 = vsel %vm561, %v549, 0.0
      %581 = vadd.xlane.f32.xlu0 %v580
      %v582 = vpop.xlane.xlu0 %581
      %v583 = vsel %vm561, %v550, 0.0
      %584 = vadd.xlane.f32.xlu0 %v583
      %v585 = vpop.xlane.xlu0 %584
      %v586 = vrcp.pop 32.0
      %v587 = vmul.f32 %v564, %v586
      %v588 = vmul.f32 %v567, %v586
      %v589 = vmul.f32 %v570, %v586
      %v590 = vmul.f32 %v573, %v586
      %v591 = vmul.f32 %v576, %v586
      %v592 = vmul.f32 %v579, %v586
      %v593 = vmul.f32 %v582, %v586
      %v594 = vmul.f32 %v585, %v586
      %v595 = vsub.f32 %v543, %v587
      %v596 = vsub.f32 %v544, %v588
      %v597 = vsub.f32 %v545, %v589
      %v598 = vsub.f32 %v546, %v590
      %v599 = vsub.f32 %v547, %v591
      %v600 = vsub.f32 %v548, %v592
      %v601 = vsub.f32 %v549, %v593
      %v602 = vsub.f32 %v550, %v594
      %v603 = vmul.f32 %v595, %v595
      %v604 = vmul.f32 %v596, %v596
      %v605 = vmul.f32 %v597, %v597
      %v606 = vmul.f32 %v598, %v598
      %v607 = vmul.f32 %v599, %v599
      %v608 = vmul.f32 %v600, %v600
      %v609 = vmul.f32 %v601, %v601
      %v610 = vmul.f32 %v602, %v602
      %v611 = vsel %vm561, %v603, 0.0
      %612 = vadd.xlane.f32.xlu0 %v611
      %v613 = vpop.xlane.xlu0 %612
      %v614 = vsel %vm561, %v604, 0.0
      %615 = vadd.xlane.f32.xlu0 %v614
      %v616 = vpop.xlane.xlu0 %615
      %v617 = vsel %vm561, %v605, 0.0
      %618 = vadd.xlane.f32.xlu0 %v617
      %v619 = vpop.xlane.xlu0 %618
      %v620 = vsel %vm561, %v606, 0.0
      %621 = vadd.xlane.f32.xlu0 %v620
      %v622 = vpop.xlane.xlu0 %621
      %v623 = vsel %vm561, %v607, 0.0
      %624 = vadd.xlane.f32.xlu0 %v623
      %v625 = vpop.xlane.xlu0 %624
      %v626 = vsel %vm561, %v608, 0.0
      %627 = vadd.xlane.f32.xlu0 %v626
      %v628 = vpop.xlane.xlu0 %627
      %v629 = vsel %vm561, %v609, 0.0
      %630 = vadd.xlane.f32.xlu0 %v629
      %v631 = vpop.xlane.xlu0 %630
      %v632 = vsel %vm561, %v610, 0.0
      %633 = vadd.xlane.f32.xlu0 %v632
      %v634 = vpop.xlane.xlu0 %633
      %v635 = vmul.f32 %v613, %v586
      %v636 = vmul.f32 %v616, %v586
      %v637 = vmul.f32 %v619, %v586
      %v638 = vmul.f32 %v622, %v586
      %v639 = vmul.f32 %v625, %v586
      %v640 = vmul.f32 %v628, %v586
      %v641 = vmul.f32 %v631, %v586
      %v642 = vmul.f32 %v634, %v586
      %v643 = vadd.f32 %v635, 1e-05
      %v644 = vadd.f32 %v636, 1e-05
      %v645 = vadd.f32 %v637, 1e-05
      %v646 = vadd.f32 %v638, 1e-05
      %v647 = vadd.f32 %v639, 1e-05
      %v648 = vadd.f32 %v640, 1e-05
      %v649 = vadd.f32 %v641, 1e-05
      %v650 = vadd.f32 %v642, 1e-05
      %v651 = vrsqrt.pop %v643
      %v652 = vrsqrt.pop %v644
      %v653 = vrsqrt.pop %v645
      %v654 = vrsqrt.pop %v646
      %v655 = vrsqrt.pop %v647
      %v656 = vrsqrt.pop %v648
      %v657 = vrsqrt.pop %v649
      %v658 = vrsqrt.pop %v650
      %v659 = vmul.f32 %v595, %v651
      %v660 = vmul.f32 %v596, %v652
      %v661 = vmul.f32 %v597, %v653
      %v662 = vmul.f32 %v598, %v654
      %v663 = vmul.f32 %v599, %v655
      %v664 = vmul.f32 %v600, %v656
      %v665 = vmul.f32 %v601, %v657
      %v666 = vmul.f32 %v602, %v658
      %v668 = vlaneseq
      %v669 = vshrl.u32 %v668, 7
      %v670 = vsub.s32 0, %v669
      %v671 = vrot.slane %v559, %v670
      %v673 = vmul.f32 %v659, %v671
      %v674 = vmul.f32 %v660, %v671
      %v675 = vmul.f32 %v661, %v671
      %v676 = vmul.f32 %v662, %v671
      %v677 = vmul.f32 %v663, %v671
      %v678 = vmul.f32 %v664, %v671
      %v679 = vmul.f32 %v665, %v671
      %v680 = vmul.f32 %v666, %v671
      %v682 = vlaneseq
      %v683 = vshrl.u32 %v682, 7
      %v684 = vsub.s32 0, %v683
      %v685 = vrot.slane %v560, %v684
      %v687 = vadd.f32 %v673, %v685
      %v688 = vadd.f32 %v674, %v685
      %v689 = vadd.f32 %v675, %v685
      %v690 = vadd.f32 %v676, %v685
      %v691 = vadd.f32 %v677, %v685
      %v692 = vadd.f32 %v678, %v685
      %v693 = vadd.f32 %v679, %v685
      %v694 = vadd.f32 %v680, %v685
      %v695 = vld [vmem:[%s4] sm:$0xff]
      %v696 = vld [vmem:[%s4 + $0x8] sm:$0xff]
      %v697 = vld [vmem:[%s4 + $0x10] sm:$0xff]
      %v698 = vld [vmem:[%s4 + $0x18] sm:$0xff]
      %v699 = vpack.c.bf16 %v688, %v687
      %v700 = vpack.c.bf16 %v690, %v689
      %v701 = vpack.c.bf16 %v692, %v691
      %v702 = vpack.c.bf16 %v694, %v693
      %v703 = vpack.c.bf16 %v696, %v695
      %v704 = vpack.c.bf16 %v698, %v697
      %v706 = vsel %vm561, %v699, 0
      %v709 = vsel %vm561, %v700, 0
      %v712 = vsel %vm561, %v701, 0
      %v715 = vsel %vm561, %v702, 0
      %717 = vmatprep.subr.bf16.mxu0 0
      %718 = vmatpush1.bf16.msra.mxu0 0
      %719 = vmatprep.subr.bf16.mxu0 0
      %720 = vmatpush1.bf16.msra.mxu0 0
      %721 = vmatprep.subr.bf16.mxu0 0
      %722 = vmatpush1.bf16.msra.mxu0 0
      %723 = vmatprep.subr.bf16.mxu0 0
      %724 = vmatpush1.bf16.msra.mxu0 0
      %725 = vmatprep.subr.bf16.mxu0 0
      %726 = vmatpush1.bf16.msra.mxu0 0
      %727 = vmatprep.subr.bf16.mxu0 0
      %728 = vmatpush1.bf16.msra.mxu0 0
      %729 = vmatprep.subr.bf16.mxu0 0
      %730 = vmatpush1.bf16.msra.mxu0 %v704
      %731 = vmatprep.subr.bf16.mxu0 0
      %732 = vmatpush1.bf16.msra.mxu0 %v703
      %733 = vmatprep.subr.bf16.mxu0 0
      %734 = vmatpush2.bf16.msra.mxu0 0
      %735 = vmatprep.subr.bf16.mxu0 0
      %736 = vmatpush2.bf16.msra.mxu0 0
      %737 = vmatprep.subr.bf16.mxu0 0
      %738 = vmatpush2.bf16.msra.mxu0 0
      %739 = vmatprep.subr.bf16.mxu0 0
      %740 = vmatpush2.bf16.msra.mxu0 0
      %741 = vmatprep.subr.bf16.mxu0 0
      %742 = vmatpush2.bf16.msra.mxu0 0
      %743 = vmatprep.subr.bf16.mxu0 0
      %744 = vmatpush2.bf16.msra.mxu0 0
      %745 = vmatprep.subr.bf16.mxu0 0
      %746 = vmatpush2.bf16.msra.mxu0 0
      %747 = vmatprep.subr.bf16.mxu0 0
      %748 = vmatpush2.bf16.msra.mxu0 0
      %749 = vmatprep.mubr.bf16.mxu0 0
      %750 = vmatmul.mubr.bf16.gmra.mxu0 %v706
      %v751 = vpop.f32.mrf.mxu0
      %v752 = vadd.f32 0.0, %v751
      %v753 = vpop.f32.mrf.mxu0
      %v754 = vpop.f32.mrf.mxu0
      %v755 = vadd.f32 0.0, %v754
      %v756 = vpop.f32.mrf.mxu0
      %757 = vmatprep.mubr.bf16.mxu0 0
      %758 = vmatmul.mubr.bf16.gmra.mxu0 %v709
      %v759 = vpop.f32.mrf.mxu0
      %v760 = vadd.f32 0.0, %v759
      %v761 = vpop.f32.mrf.mxu0
      %v762 = vpop.f32.mrf.mxu0
      %v763 = vadd.f32 0.0, %v762
      %v764 = vpop.f32.mrf.mxu0
      %765 = vmatprep.mubr.bf16.mxu0 0
      %766 = vmatmul.mubr.bf16.gmra.mxu0 %v712
      %v767 = vpop.f32.mrf.mxu0
      %v768 = vadd.f32 0.0, %v767
      %v769 = vpop.f32.mrf.mxu0
      %v770 = vpop.f32.mrf.mxu0
      %v771 = vadd.f32 0.0, %v770
      %v772 = vpop.f32.mrf.mxu0
      %773 = vmatprep.mubr.bf16.mxu0 0
      %774 = vmatmul.mubr.bf16.gmra.mxu0 %v715
      %v775 = vpop.f32.mrf.mxu0
      %v776 = vadd.f32 0.0, %v775
      %v777 = vpop.f32.mrf.mxu0
      %v778 = vpop.f32.mrf.mxu0
      %v779 = vadd.f32 0.0, %v778
      %v780 = vpop.f32.mrf.mxu0
      %781 = vdwg.mxu0
      %v782 = vld [vmem:[%s5] sm:$0xff]
      %v783 = vld [vmem:[%s5 + $0x8] sm:$0xff]
      %v784 = vld [vmem:[%s5 + $0x10] sm:$0xff]
      %v785 = vld [vmem:[%s5 + $0x18] sm:$0xff]
      %v786 = vpack.c.bf16 %v552, %v551
      %v787 = vpack.c.bf16 %v554, %v553
      %v788 = vpack.c.bf16 %v556, %v555
      %v789 = vpack.c.bf16 %v558, %v557
      %v790 = vpack.c.bf16 %v783, %v782
      %v791 = vpack.c.bf16 %v785, %v784
      %v793 = vsel %vm561, %v786, 0
      %v796 = vsel %vm561, %v787, 0
      %v799 = vsel %vm561, %v788, 0
      %v802 = vsel %vm561, %v789, 0
      %804 = vmatprep.subr.bf16.mxu0 0
      %805 = vmatpush1.bf16.msra.mxu0 0
      %806 = vmatprep.subr.bf16.mxu0 0
      %807 = vmatpush1.bf16.msra.mxu0 0
      %808 = vmatprep.subr.bf16.mxu0 0
      %809 = vmatpush1.bf16.msra.mxu0 0
      %810 = vmatprep.subr.bf16.mxu0 0
      %811 = vmatpush1.bf16.msra.mxu0 0
      %812 = vmatprep.subr.bf16.mxu0 0
      %813 = vmatpush1.bf16.msra.mxu0 0
      %814 = vmatprep.subr.bf16.mxu0 0
      %815 = vmatpush1.bf16.msra.mxu0 0
      %816 = vmatprep.subr.bf16.mxu0 0
      %817 = vmatpush1.bf16.msra.mxu0 %v791
      %818 = vmatprep.subr.bf16.mxu0 0
      %819 = vmatpush1.bf16.msra.mxu0 %v790
      %820 = vmatprep.subr.bf16.mxu0 0
      %821 = vmatpush2.bf16.msra.mxu0 0
      %822 = vmatprep.subr.bf16.mxu0 0
      %823 = vmatpush2.bf16.msra.mxu0 0
      %824 = vmatprep.subr.bf16.mxu0 0
      %825 = vmatpush2.bf16.msra.mxu0 0
      %826 = vmatprep.subr.bf16.mxu0 0
      %827 = vmatpush2.bf16.msra.mxu0 0
      %828 = vmatprep.subr.bf16.mxu0 0
      %829 = vmatpush2.bf16.msra.mxu0 0
      %830 = vmatprep.subr.bf16.mxu0 0
      %831 = vmatpush2.bf16.msra.mxu0 0
      %832 = vmatprep.subr.bf16.mxu0 0
      %833 = vmatpush2.bf16.msra.mxu0 0
      %834 = vmatprep.subr.bf16.mxu0 0
      %835 = vmatpush2.bf16.msra.mxu0 0
      %836 = vmatprep.mubr.bf16.mxu0 0
      %837 = vmatmul.mubr.bf16.gmra.mxu0 %v793
      %v838 = vpop.f32.mrf.mxu0
      %v839 = vadd.f32 0.0, %v838
      %v840 = vpop.f32.mrf.mxu0
      %v841 = vpop.f32.mrf.mxu0
      %v842 = vadd.f32 0.0, %v841
      %v843 = vpop.f32.mrf.mxu0
      %844 = vmatprep.mubr.bf16.mxu0 0
      %845 = vmatmul.mubr.bf16.gmra.mxu0 %v796
      %v846 = vpop.f32.mrf.mxu0
      %v847 = vadd.f32 0.0, %v846
      %v848 = vpop.f32.mrf.mxu0
      %v849 = vpop.f32.mrf.mxu0
      %v850 = vadd.f32 0.0, %v849
      %v851 = vpop.f32.mrf.mxu0
      %852 = vmatprep.mubr.bf16.mxu0 0
      %853 = vmatmul.mubr.bf16.gmra.mxu0 %v799
      %v854 = vpop.f32.mrf.mxu0
      %v855 = vadd.f32 0.0, %v854
      %v856 = vpop.f32.mrf.mxu0
      %v857 = vpop.f32.mrf.mxu0
      %v858 = vadd.f32 0.0, %v857
      %v859 = vpop.f32.mrf.mxu0
      %860 = vmatprep.mubr.bf16.mxu0 0
      %861 = vmatmul.mubr.bf16.gmra.mxu0 %v802
      %v862 = vpop.f32.mrf.mxu0
      %v863 = vadd.f32 0.0, %v862
      %v864 = vpop.f32.mrf.mxu0
      %v865 = vpop.f32.mrf.mxu0
      %v866 = vadd.f32 0.0, %v865
      %v867 = vpop.f32.mrf.mxu0
      %868 = vdwg.mxu0
      %v869 = vld [vmem:[%s6] sm:$0xff]
      %v870 = vld [vmem:[%s6 + $0x8] sm:$0xff]
      %v871 = vpack.c.bf16 %v755, %v752
      %v872 = vpack.c.bf16 %v763, %v760
      %v873 = vpack.c.bf16 %v771, %v768
      %v874 = vpack.c.bf16 %v779, %v776
      %v875 = vpack.c.bf16 %v842, %v839
      %v876 = vpack.c.bf16 %v850, %v847
      %v877 = vpack.c.bf16 %v858, %v855
      %v878 = vpack.c.bf16 %v866, %v863
      %vm879 = vcmask 64512
      %v881 = vsel %vm879, %v871, 0
      %v884 = vsel %vm879, %v872, 0
      %v887 = vsel %vm879, %v873, 0
      %v890 = vsel %vm879, %v874, 0
      %v893 = vsel %vm879, %v875, 0
      %v896 = vsel %vm879, %v876, 0
      %v899 = vsel %vm879, %v877, 0
      %v902 = vsel %vm879, %v878, 0
      %904 = vmatprep.subr.bf16.mxu0 0
      %905 = vmatpush1.bf16.xpose.msra.mxu0 0
      %906 = vmatprep.subr.bf16.mxu0 0
      %907 = vmatpush1.bf16.xpose.msra.mxu0 0
      %908 = vmatprep.subr.bf16.mxu0 0
      %909 = vmatpush1.bf16.xpose.msra.mxu0 0
      %910 = vmatprep.subr.bf16.mxu0 0
      %911 = vmatpush1.bf16.xpose.msra.mxu0 0
      %912 = vmatprep.subr.bf16.mxu0 0
      %913 = vmatpush1.bf16.xpose.msra.mxu0 %v902
      %914 = vmatprep.subr.bf16.mxu0 0
      %915 = vmatpush1.bf16.xpose.msra.mxu0 %v899
      %916 = vmatprep.subr.bf16.mxu0 0
      %917 = vmatpush1.bf16.xpose.msra.mxu0 %v896
      %918 = vmatprep.subr.bf16.mxu0 0
      %919 = vmatpush1.bf16.xpose.msra.mxu0 %v893
      %920 = vmatprep.subr.bf16.mxu0 0
      %921 = vmatpush2.bf16.xpose.msra.mxu0 0
      %922 = vmatprep.subr.bf16.mxu0 0
      %923 = vmatpush2.bf16.xpose.msra.mxu0 0
      %924 = vmatprep.subr.bf16.mxu0 0
      %925 = vmatpush2.bf16.xpose.msra.mxu0 0
      %926 = vmatprep.subr.bf16.mxu0 0
      %927 = vmatpush2.bf16.xpose.msra.mxu0 0
      %928 = vmatprep.subr.bf16.mxu0 0
      %929 = vmatpush2.bf16.xpose.msra.mxu0 0
      %930 = vmatprep.subr.bf16.mxu0 0
      %931 = vmatpush2.bf16.xpose.msra.mxu0 0
      %932 = vmatprep.subr.bf16.mxu0 0
      %933 = vmatpush2.bf16.xpose.msra.mxu0 0
      %934 = vmatprep.subr.bf16.mxu0 0
      %935 = vmatpush2.bf16.xpose.msra.mxu0 0
      %936 = vmatprep.mubr.bf16.mxu0 0
      %937 = vmatmul.mubr.bf16.gmra.mxu0 %v881
      %v938 = vpop.f32.mrf.mxu0
      %v939 = vadd.f32 0.0, %v938
      %v940 = vpop.f32.mrf.mxu0
      %v941 = vpop.f32.mrf.mxu0
      %v942 = vadd.f32 0.0, %v941
      %v943 = vpop.f32.mrf.mxu0
      %944 = vmatprep.mubr.bf16.mxu0 0
      %945 = vmatmul.mubr.bf16.gmra.mxu0 %v884
      %v946 = vpop.f32.mrf.mxu0
      %v947 = vadd.f32 0.0, %v946
      %v948 = vpop.f32.mrf.mxu0
      %v949 = vpop.f32.mrf.mxu0
      %v950 = vadd.f32 0.0, %v949
      %v951 = vpop.f32.mrf.mxu0
      %952 = vmatprep.mubr.bf16.mxu0 0
      %953 = vmatmul.mubr.bf16.gmra.mxu0 %v887
      %v954 = vpop.f32.mrf.mxu0
      %v955 = vadd.f32 0.0, %v954
      %v956 = vpop.f32.mrf.mxu0
      %v957 = vpop.f32.mrf.mxu0
      %v958 = vadd.f32 0.0, %v957
      %v959 = vpop.f32.mrf.mxu0
      %960 = vmatprep.mubr.bf16.mxu0 0
      %961 = vmatmul.mubr.bf16.gmra.mxu0 %v890
      %v962 = vpop.f32.mrf.mxu0
      %v963 = vadd.f32 0.0, %v962
      %v964 = vpop.f32.mrf.mxu0
      %v965 = vpop.f32.mrf.mxu0
      %v966 = vadd.f32 0.0, %v965
      %v967 = vpop.f32.mrf.mxu0
      %968 = vdwg.mxu0
      %vm969 = vcmask 523264
      %v970 = vsel %vm969, %v939, -inf
      %971 = vmax.xlane.f32.xlu0 %v970
      %v972 = vpop.xlane.xlu0 %971
      %v973 = vsel %vm969, %v942, -inf
      %974 = vmax.xlane.f32.xlu0 %v973
      %v975 = vpop.xlane.xlu0 %974
      %v976 = vsel %vm969, %v947, -inf
      %977 = vmax.xlane.f32.xlu0 %v976
      %v978 = vpop.xlane.xlu0 %977
      %v979 = vsel %vm969, %v950, -inf
      %980 = vmax.xlane.f32.xlu0 %v979
      %v981 = vpop.xlane.xlu0 %980
      %v982 = vsel %vm969, %v955, -inf
      %983 = vmax.xlane.f32.xlu0 %v982
      %v984 = vpop.xlane.xlu0 %983
      %v985 = vsel %vm969, %v958, -inf
      %986 = vmax.xlane.f32.xlu0 %v985
      %v987 = vpop.xlane.xlu0 %986
      %v988 = vsel %vm969, %v963, -inf
      %989 = vmax.xlane.f32.xlu0 %v988
      %v990 = vpop.xlane.xlu0 %989
      %v991 = vsel %vm969, %v966, -inf
      %992 = vmax.xlane.f32.xlu0 %v991
      %v993 = vpop.xlane.xlu0 %992
      %v994 = vsub.f32 %v939, %v972
      %v995 = vsub.f32 %v942, %v975
      %v996 = vsub.f32 %v947, %v978
      %v997 = vsub.f32 %v950, %v981
      %v998 = vsub.f32 %v955, %v984
      %v999 = vsub.f32 %v958, %v987
      %v1000 = vsub.f32 %v963, %v990
      %v1001 = vsub.f32 %v966, %v993
      %v1002 = vmul.f32 %v994, 1.442695
      %v1003 = vpow.pop %v1002
      %v1004 = vmul.f32 %v995, 1.442695
      %v1005 = vpow.pop %v1004
      %v1006 = vmul.f32 %v996, 1.442695
      %v1007 = vpow.pop %v1006
      %v1008 = vmul.f32 %v997, 1.442695
      %v1009 = vpow.pop %v1008
      %v1010 = vmul.f32 %v998, 1.442695
      %v1011 = vpow.pop %v1010
      %v1012 = vmul.f32 %v999, 1.442695
      %v1013 = vpow.pop %v1012
      %v1014 = vmul.f32 %v1000, 1.442695
      %v1015 = vpow.pop %v1014
      %v1016 = vmul.f32 %v1001, 1.442695
      %v1017 = vpow.pop %v1016
      %v1018 = vsel %vm969, %v1003, 0.0
      %1019 = vadd.xlane.f32.xlu0 %v1018
      %v1020 = vpop.xlane.xlu0 %1019
      %v1021 = vsel %vm969, %v1005, 0.0
      %1022 = vadd.xlane.f32.xlu0 %v1021
      %v1023 = vpop.xlane.xlu0 %1022
      %v1024 = vsel %vm969, %v1007, 0.0
      %1025 = vadd.xlane.f32.xlu0 %v1024
      %v1026 = vpop.xlane.xlu0 %1025
      %v1027 = vsel %vm969, %v1009, 0.0
      %1028 = vadd.xlane.f32.xlu0 %v1027
      %v1029 = vpop.xlane.xlu0 %1028
      %v1030 = vsel %vm969, %v1011, 0.0
      %1031 = vadd.xlane.f32.xlu0 %v1030
      %v1032 = vpop.xlane.xlu0 %1031
      %v1033 = vsel %vm969, %v1013, 0.0
      %1034 = vadd.xlane.f32.xlu0 %v1033
      %v1035 = vpop.xlane.xlu0 %1034
      %v1036 = vsel %vm969, %v1015, 0.0
      %1037 = vadd.xlane.f32.xlu0 %v1036
      %v1038 = vpop.xlane.xlu0 %1037
      %v1039 = vsel %vm969, %v1017, 0.0
      %1040 = vadd.xlane.f32.xlu0 %v1039
      %v1041 = vpop.xlane.xlu0 %1040
      %v1042 = vrcp.pop %v1020
      %v1043 = vrcp.pop %v1023
      %v1044 = vrcp.pop %v1026
      %v1045 = vrcp.pop %v1029
      %v1046 = vrcp.pop %v1032
      %v1047 = vrcp.pop %v1035
      %v1048 = vrcp.pop %v1038
      %v1049 = vrcp.pop %v1041
      %v1050 = vmul.f32 %v1003, %v1042
      %v1051 = vmul.f32 %v1005, %v1043
      %v1052 = vmul.f32 %v1007, %v1044
      %v1053 = vmul.f32 %v1009, %v1045
      %v1054 = vmul.f32 %v1011, %v1046
      %v1055 = vmul.f32 %v1013, %v1047
      %v1056 = vmul.f32 %v1015, %v1048
      %v1057 = vmul.f32 %v1017, %v1049
      %v1058 = vpack.c.bf16 %v1051, %v1050
      %v1059 = vpack.c.bf16 %v1053, %v1052
      %v1060 = vpack.c.bf16 %v1055, %v1054
      %v1061 = vpack.c.bf16 %v1057, %v1056
      %1066 = vrot.lane.b32.xlu0 %v875, 112
      %v1067 = vpop.permute.xlu0 %1066
      %1068 = vrot.lane.b32.xlu0 %v876, 112
      %v1069 = vpop.permute.xlu0 %1068
      %1070 = vrot.lane.b32.xlu0 %v877, 112
      %v1071 = vpop.permute.xlu0 %1070
      %1072 = vrot.lane.b32.xlu0 %v878, 112
      %v1073 = vpop.permute.xlu0 %1072
      %v1079 = vsel %vm969, %v1058, 0
      %v1082 = vsel %vm969, %v1059, 0
      %v1085 = vsel %vm969, %v1060, 0
      %v1088 = vsel %vm969, %v1061, 0
      %1090 = vmatprep.subr.bf16.mxu0 0
      %1091 = vmatpush1.bf16.msra.mxu0 0
      %1092 = vmatprep.subr.bf16.mxu0 0
      %1093 = vmatpush1.bf16.msra.mxu0 0
      %1094 = vmatprep.subr.bf16.mxu0 0
      %1095 = vmatpush1.bf16.msra.mxu0 0
      %1096 = vmatprep.subr.bf16.mxu0 0
      %1097 = vmatpush1.bf16.msra.mxu0 0
      %1098 = vmatprep.subr.bf16.mxu0 0
      %1099 = vmatpush1.bf16.msra.mxu0 %v1073
      %1100 = vmatprep.subr.bf16.mxu0 0
      %1101 = vmatpush1.bf16.msra.mxu0 %v1071
      %1102 = vmatprep.subr.bf16.mxu0 0
      %1103 = vmatpush1.bf16.msra.mxu0 %v1069
      %1104 = vmatprep.subr.bf16.mxu0 0
      %1105 = vmatpush1.bf16.msra.mxu0 %v1067
      %1106 = vmatprep.subr.bf16.mxu0 0
      %1107 = vmatpush2.bf16.msra.mxu0 0
      %1108 = vmatprep.subr.bf16.mxu0 0
      %1109 = vmatpush2.bf16.msra.mxu0 0
      %1110 = vmatprep.subr.bf16.mxu0 0
      %1111 = vmatpush2.bf16.msra.mxu0 0
      %1112 = vmatprep.subr.bf16.mxu0 0
      %1113 = vmatpush2.bf16.msra.mxu0 0
      %1114 = vmatprep.subr.bf16.mxu0 0
      %1115 = vmatpush2.bf16.msra.mxu0 0
      %1116 = vmatprep.subr.bf16.mxu0 0
      %1117 = vmatpush2.bf16.msra.mxu0 0
      %1118 = vmatprep.subr.bf16.mxu0 0
      %1119 = vmatpush2.bf16.msra.mxu0 0
      %1120 = vmatprep.subr.bf16.mxu0 0
      %1121 = vmatpush2.bf16.msra.mxu0 0
      %1122 = vmatprep.mubr.bf16.mxu0 0
      %1123 = vmatmul.mubr.bf16.gmra.mxu0 %v1079
      %v1124 = vpop.f32.mrf.mxu0
      %v1125 = vadd.f32 0.0, %v1124
      %v1126 = vpop.f32.mrf.mxu0
      %v1127 = vpop.f32.mrf.mxu0
      %v1128 = vadd.f32 0.0, %v1127
      %v1129 = vpop.f32.mrf.mxu0
      %1130 = vmatprep.mubr.bf16.mxu0 0
      %1131 = vmatmul.mubr.bf16.gmra.mxu0 %v1082
      %v1132 = vpop.f32.mrf.mxu0
      %v1133 = vadd.f32 0.0, %v1132
      %v1134 = vpop.f32.mrf.mxu0
      %v1135 = vpop.f32.mrf.mxu0
      %v1136 = vadd.f32 0.0, %v1135
      %v1137 = vpop.f32.mrf.mxu0
      %1138 = vmatprep.mubr.bf16.mxu0 0
      %1139 = vmatmul.mubr.bf16.gmra.mxu0 %v1085
      %v1140 = vpop.f32.mrf.mxu0
      %v1141 = vadd.f32 0.0, %v1140
      %v1142 = vpop.f32.mrf.mxu0
      %v1143 = vpop.f32.mrf.mxu0
      %v1144 = vadd.f32 0.0, %v1143
      %v1145 = vpop.f32.mrf.mxu0
      %1146 = vmatprep.mubr.bf16.mxu0 0
      %1147 = vmatmul.mubr.bf16.gmra.mxu0 %v1088
      %v1148 = vpop.f32.mrf.mxu0
      %v1149 = vadd.f32 0.0, %v1148
      %v1150 = vpop.f32.mrf.mxu0
      %v1151 = vpop.f32.mrf.mxu0
      %v1152 = vadd.f32 0.0, %v1151
      %v1153 = vpop.f32.mrf.mxu0
      %1154 = vdwg.mxu0
      %v1155 = vpack.c.bf16 %v1128, %v1125
      %v1156 = vpack.c.bf16 %v1136, %v1133
      %v1157 = vpack.c.bf16 %v1144, %v1141
      %v1158 = vpack.c.bf16 %v1152, %v1149
      %v1159 = vpack.c.bf16 %v869, %v869
      %v1161 = vsel %vm879, %v1155, 0
      %v1164 = vsel %vm879, %v1156, 0
      %v1167 = vsel %vm879, %v1157, 0
      %v1170 = vsel %vm879, %v1158, 0
      %vm1172 = vcmask 1043456
      %v1174 = vsel %vm1172, %v1159, 0
      %1176 = vmatprep.subr.bf16.mxu0 0
      %1177 = vmatpush1.bf16.msra.mxu0 0
      %1178 = vmatprep.subr.bf16.mxu0 0
      %1179 = vmatpush1.bf16.msra.mxu0 0
      %1180 = vmatprep.subr.bf16.mxu0 0
      %1181 = vmatpush1.bf16.msra.mxu0 0
      %1182 = vmatprep.subr.bf16.mxu0 0
      %1183 = vmatpush1.bf16.msra.mxu0 0
      %1184 = vmatprep.subr.bf16.mxu0 0
      %1185 = vmatpush1.bf16.msra.mxu0 0
      %1186 = vmatprep.subr.bf16.mxu0 0
      %1187 = vmatpush1.bf16.msra.mxu0 0
      %1188 = vmatprep.subr.bf16.mxu0 0
      %1189 = vmatpush1.bf16.msra.mxu0 0
      %1190 = vmatprep.subr.bf16.mxu0 0
      %1191 = vmatpush1.bf16.msra.mxu0 %v1174
      %1192 = vmatprep.subr.bf16.mxu0 0
      %1193 = vmatpush2.bf16.msra.mxu0 0
      %1194 = vmatprep.subr.bf16.mxu0 0
      %1195 = vmatpush2.bf16.msra.mxu0 0
      %1196 = vmatprep.subr.bf16.mxu0 0
      %1197 = vmatpush2.bf16.msra.mxu0 0
      %1198 = vmatprep.subr.bf16.mxu0 0
      %1199 = vmatpush2.bf16.msra.mxu0 0
      %1200 = vmatprep.subr.bf16.mxu0 0
      %1201 = vmatpush2.bf16.msra.mxu0 0
      %1202 = vmatprep.subr.bf16.mxu0 0
      %1203 = vmatpush2.bf16.msra.mxu0 0
      %1204 = vmatprep.subr.bf16.mxu0 0
      %1205 = vmatpush2.bf16.msra.mxu0 0
      %1206 = vmatprep.subr.bf16.mxu0 0
      %1207 = vmatpush2.bf16.msra.mxu0 0
      %1208 = vmatprep.mubr.bf16.mxu0 0
      %1209 = vmatmul.mubr.bf16.gmra.mxu0 %v1161
      %v1210 = vpop.f32.mrf.mxu0
      %v1211 = vadd.f32 0.0, %v1210
      %v1212 = vpop.f32.mrf.mxu0
      %v1213 = vpop.f32.mrf.mxu0
      %v1214 = vadd.f32 0.0, %v1213
      %v1215 = vpop.f32.mrf.mxu0
      %1216 = vmatprep.mubr.bf16.mxu0 0
      %1217 = vmatmul.mubr.bf16.gmra.mxu0 %v1164
      %v1218 = vpop.f32.mrf.mxu0
      %v1219 = vadd.f32 0.0, %v1218
      %v1220 = vpop.f32.mrf.mxu0
      %v1221 = vpop.f32.mrf.mxu0
      %v1222 = vadd.f32 0.0, %v1221
      %v1223 = vpop.f32.mrf.mxu0
      %1224 = vmatprep.mubr.bf16.mxu0 0
      %1225 = vmatmul.mubr.bf16.gmra.mxu0 %v1167
      %v1226 = vpop.f32.mrf.mxu0
      %v1227 = vadd.f32 0.0, %v1226
      %v1228 = vpop.f32.mrf.mxu0
      %v1229 = vpop.f32.mrf.mxu0
      %v1230 = vadd.f32 0.0, %v1229
      %v1231 = vpop.f32.mrf.mxu0
      %1232 = vmatprep.mubr.bf16.mxu0 0
      %1233 = vmatmul.mubr.bf16.gmra.mxu0 %v1170
      %v1234 = vpop.f32.mrf.mxu0
      %v1235 = vadd.f32 0.0, %v1234
      %v1236 = vpop.f32.mrf.mxu0
      %v1237 = vpop.f32.mrf.mxu0
      %v1238 = vadd.f32 0.0, %v1237
      %v1239 = vpop.f32.mrf.mxu0
      %1240 = vdwg.mxu0
      %v1241 = vadd.f32 %v543, %v1211
      %v1242 = vadd.f32 %v544, %v1214
      %v1243 = vadd.f32 %v545, %v1219
      %v1244 = vadd.f32 %v546, %v1222
      %v1245 = vadd.f32 %v547, %v1227
      %v1246 = vadd.f32 %v548, %v1230
      %v1247 = vadd.f32 %v549, %v1235
      %v1248 = vadd.f32 %v550, %v1238
      %1253 = vrot.lane.b32.xlu0 %v871, 120
      %v1254 = vpop.permute.xlu0 %1253
      %1255 = vrot.lane.b32.xlu0 %v872, 120
      %v1256 = vpop.permute.xlu0 %1255
      %1257 = vrot.lane.b32.xlu0 %v873, 120
      %v1258 = vpop.permute.xlu0 %1257
      %1259 = vrot.lane.b32.xlu0 %v874, 120
      %v1260 = vpop.permute.xlu0 %1259
      %1261 = vrot.lane.b32.xlu0 %v875, 120
      %v1262 = vpop.permute.xlu0 %1261
      %1263 = vrot.lane.b32.xlu0 %v876, 120
      %v1264 = vpop.permute.xlu0 %1263
      %1265 = vrot.lane.b32.xlu0 %v877, 120
      %v1266 = vpop.permute.xlu0 %1265
      %1267 = vrot.lane.b32.xlu0 %v878, 120
      %v1268 = vpop.permute.xlu0 %1267
      %v1270 = vsel %vm879, %v1254, 0
      %v1273 = vsel %vm879, %v1256, 0
      %v1276 = vsel %vm879, %v1258, 0
      %v1279 = vsel %vm879, %v1260, 0
      %v1282 = vsel %vm879, %v1262, 0
      %v1285 = vsel %vm879, %v1264, 0
      %v1288 = vsel %vm879, %v1266, 0
      %v1291 = vsel %vm879, %v1268, 0
      %1293 = vmatprep.subr.bf16.mxu0 0
      %1294 = vmatpush1.bf16.xpose.msra.mxu0 0
      %1295 = vmatprep.subr.bf16.mxu0 0
      %1296 = vmatpush1.bf16.xpose.msra.mxu0 0
      %1297 = vmatprep.subr.bf16.mxu0 0
      %1298 = vmatpush1.bf16.xpose.msra.mxu0 0
      %1299 = vmatprep.subr.bf16.mxu0 0
      %1300 = vmatpush1.bf16.xpose.msra.mxu0 0
      %1301 = vmatprep.subr.bf16.mxu0 0
      %1302 = vmatpush1.bf16.xpose.msra.mxu0 %v1291
      %1303 = vmatprep.subr.bf16.mxu0 0
      %1304 = vmatpush1.bf16.xpose.msra.mxu0 %v1288
      %1305 = vmatprep.subr.bf16.mxu0 0
      %1306 = vmatpush1.bf16.xpose.msra.mxu0 %v1285
      %1307 = vmatprep.subr.bf16.mxu0 0
      %1308 = vmatpush1.bf16.xpose.msra.mxu0 %v1282
      %1309 = vmatprep.subr.bf16.mxu0 0
      %1310 = vmatpush2.bf16.xpose.msra.mxu0 0
      %1311 = vmatprep.subr.bf16.mxu0 0
      %1312 = vmatpush2.bf16.xpose.msra.mxu0 0
      %1313 = vmatprep.subr.bf16.mxu0 0
      %1314 = vmatpush2.bf16.xpose.msra.mxu0 0
      %1315 = vmatprep.subr.bf16.mxu0 0
      %1316 = vmatpush2.bf16.xpose.msra.mxu0 0
      %1317 = vmatprep.subr.bf16.mxu0 0
      %1318 = vmatpush2.bf16.xpose.msra.mxu0 0
      %1319 = vmatprep.subr.bf16.mxu0 0
      %1320 = vmatpush2.bf16.xpose.msra.mxu0 0
      %1321 = vmatprep.subr.bf16.mxu0 0
      %1322 = vmatpush2.bf16.xpose.msra.mxu0 0
      %1323 = vmatprep.subr.bf16.mxu0 0
      %1324 = vmatpush2.bf16.xpose.msra.mxu0 0
      %1325 = vmatprep.mubr.bf16.mxu0 0
      %1326 = vmatmul.mubr.bf16.gmra.mxu0 %v1270
      %v1327 = vpop.f32.mrf.mxu0
      %v1328 = vadd.f32 0.0, %v1327
      %v1329 = vpop.f32.mrf.mxu0
      %v1330 = vpop.f32.mrf.mxu0
      %v1331 = vadd.f32 0.0, %v1330
      %v1332 = vpop.f32.mrf.mxu0
      %1333 = vmatprep.mubr.bf16.mxu0 0
      %1334 = vmatmul.mubr.bf16.gmra.mxu0 %v1273
      %v1335 = vpop.f32.mrf.mxu0
      %v1336 = vadd.f32 0.0, %v1335
      %v1337 = vpop.f32.mrf.mxu0
      %v1338 = vpop.f32.mrf.mxu0
      %v1339 = vadd.f32 0.0, %v1338
      %v1340 = vpop.f32.mrf.mxu0
      %1341 = vmatprep.mubr.bf16.mxu0 0
      %1342 = vmatmul.mubr.bf16.gmra.mxu0 %v1276
      %v1343 = vpop.f32.mrf.mxu0
      %v1344 = vadd.f32 0.0, %v1343
      %v1345 = vpop.f32.mrf.mxu0
      %v1346 = vpop.f32.mrf.mxu0
      %v1347 = vadd.f32 0.0, %v1346
      %v1348 = vpop.f32.mrf.mxu0
      %1349 = vmatprep.mubr.bf16.mxu0 0
      %1350 = vmatmul.mubr.bf16.gmra.mxu0 %v1279
      %v1351 = vpop.f32.mrf.mxu0
      %v1352 = vadd.f32 0.0, %v1351
      %v1353 = vpop.f32.mrf.mxu0
      %v1354 = vpop.f32.mrf.mxu0
      %v1355 = vadd.f32 0.0, %v1354
      %v1356 = vpop.f32.mrf.mxu0
      %1357 = vdwg.mxu0
      %v1358 = vsel %vm969, %v1328, -inf
      %1359 = vmax.xlane.f32.xlu0 %v1358
      %v1360 = vpop.xlane.xlu0 %1359
      %v1361 = vsel %vm969, %v1331, -inf
      %1362 = vmax.xlane.f32.xlu0 %v1361
      %v1363 = vpop.xlane.xlu0 %1362
      %v1364 = vsel %vm969, %v1336, -inf
      %1365 = vmax.xlane.f32.xlu0 %v1364
      %v1366 = vpop.xlane.xlu0 %1365
      %v1367 = vsel %vm969, %v1339, -inf
      %1368 = vmax.xlane.f32.xlu0 %v1367
      %v1369 = vpop.xlane.xlu0 %1368
      %v1370 = vsel %vm969, %v1344, -inf
      %1371 = vmax.xlane.f32.xlu0 %v1370
      %v1372 = vpop.xlane.xlu0 %1371
      %v1373 = vsel %vm969, %v1347, -inf
      %1374 = vmax.xlane.f32.xlu0 %v1373
      %v1375 = vpop.xlane.xlu0 %1374
      %v1376 = vsel %vm969, %v1352, -inf
      %1377 = vmax.xlane.f32.xlu0 %v1376
      %v1378 = vpop.xlane.xlu0 %1377
      %v1379 = vsel %vm969, %v1355, -inf
      %1380 = vmax.xlane.f32.xlu0 %v1379
      %v1381 = vpop.xlane.xlu0 %1380
      %v1382 = vsub.f32 %v1328, %v1360
      %v1383 = vsub.f32 %v1331, %v1363
      %v1384 = vsub.f32 %v1336, %v1366
      %v1385 = vsub.f32 %v1339, %v1369
      %v1386 = vsub.f32 %v1344, %v1372
      %v1387 = vsub.f32 %v1347, %v1375
      %v1388 = vsub.f32 %v1352, %v1378
      %v1389 = vsub.f32 %v1355, %v1381
      %v1390 = vmul.f32 %v1382, 1.442695
      %v1391 = vpow.pop %v1390
      %v1392 = vmul.f32 %v1383, 1.442695
      %v1393 = vpow.pop %v1392
      %v1394 = vmul.f32 %v1384, 1.442695
      %v1395 = vpow.pop %v1394
      %v1396 = vmul.f32 %v1385, 1.442695
      %v1397 = vpow.pop %v1396
      %v1398 = vmul.f32 %v1386, 1.442695
      %v1399 = vpow.pop %v1398
      %v1400 = vmul.f32 %v1387, 1.442695
      %v1401 = vpow.pop %v1400
      %v1402 = vmul.f32 %v1388, 1.442695
      %v1403 = vpow.pop %v1402
      %v1404 = vmul.f32 %v1389, 1.442695
      %v1405 = vpow.pop %v1404
      %v1406 = vsel %vm969, %v1391, 0.0
      %1407 = vadd.xlane.f32.xlu0 %v1406
      %v1408 = vpop.xlane.xlu0 %1407
      %v1409 = vsel %vm969, %v1393, 0.0
      %1410 = vadd.xlane.f32.xlu0 %v1409
      %v1411 = vpop.xlane.xlu0 %1410
      %v1412 = vsel %vm969, %v1395, 0.0
      %1413 = vadd.xlane.f32.xlu0 %v1412
      %v1414 = vpop.xlane.xlu0 %1413
      %v1415 = vsel %vm969, %v1397, 0.0
      %1416 = vadd.xlane.f32.xlu0 %v1415
      %v1417 = vpop.xlane.xlu0 %1416
      %v1418 = vsel %vm969, %v1399, 0.0
      %1419 = vadd.xlane.f32.xlu0 %v1418
      %v1420 = vpop.xlane.xlu0 %1419
      %v1421 = vsel %vm969, %v1401, 0.0
      %1422 = vadd.xlane.f32.xlu0 %v1421
      %v1423 = vpop.xlane.xlu0 %1422
      %v1424 = vsel %vm969, %v1403, 0.0
      %1425 = vadd.xlane.f32.xlu0 %v1424
      %v1426 = vpop.xlane.xlu0 %1425
      %v1427 = vsel %vm969, %v1405, 0.0
      %1428 = vadd.xlane.f32.xlu0 %v1427
      %v1429 = vpop.xlane.xlu0 %1428
      %v1430 = vrcp.pop %v1408
      %v1431 = vrcp.pop %v1411
      %v1432 = vrcp.pop %v1414
      %v1433 = vrcp.pop %v1417
      %v1434 = vrcp.pop %v1420
      %v1435 = vrcp.pop %v1423
      %v1436 = vrcp.pop %v1426
      %v1437 = vrcp.pop %v1429
      %v1438 = vmul.f32 %v1391, %v1430
      %v1439 = vmul.f32 %v1393, %v1431
      %v1440 = vmul.f32 %v1395, %v1432
      %v1441 = vmul.f32 %v1397, %v1433
      %v1442 = vmul.f32 %v1399, %v1434
      %v1443 = vmul.f32 %v1401, %v1435
      %v1444 = vmul.f32 %v1403, %v1436
      %v1445 = vmul.f32 %v1405, %v1437
      %v1446 = vpack.c.bf16 %v1439, %v1438
      %v1447 = vpack.c.bf16 %v1441, %v1440
      %v1448 = vpack.c.bf16 %v1443, %v1442
      %v1449 = vpack.c.bf16 %v1445, %v1444
      %1450 = vrot.lane.b32.xlu0 %v875, 104
      %v1451 = vpop.permute.xlu0 %1450
      %1452 = vrot.lane.b32.xlu0 %v876, 104
      %v1453 = vpop.permute.xlu0 %1452
      %1454 = vrot.lane.b32.xlu0 %v877, 104
      %v1455 = vpop.permute.xlu0 %1454
      %1456 = vrot.lane.b32.xlu0 %v878, 104
      %v1457 = vpop.permute.xlu0 %1456
      %v1463 = vsel %vm969, %v1446, 0
      %v1466 = vsel %vm969, %v1447, 0
      %v1469 = vsel %vm969, %v1448, 0
      %v1472 = vsel %vm969, %v1449, 0
      %1474 = vmatprep.subr.bf16.mxu0 0
      %1475 = vmatpush1.bf16.msra.mxu0 0
      %1476 = vmatprep.subr.bf16.mxu0 0
      %1477 = vmatpush1.bf16.msra.mxu0 0
      %1478 = vmatprep.subr.bf16.mxu0 0
      %1479 = vmatpush1.bf16.msra.mxu0 0
      %1480 = vmatprep.subr.bf16.mxu0 0
      %1481 = vmatpush1.bf16.msra.mxu0 0
      %1482 = vmatprep.subr.bf16.mxu0 0
      %1483 = vmatpush1.bf16.msra.mxu0 %v1457
      %1484 = vmatprep.subr.bf16.mxu0 0
      %1485 = vmatpush1.bf16.msra.mxu0 %v1455
      %1486 = vmatprep.subr.bf16.mxu0 0
      %1487 = vmatpush1.bf16.msra.mxu0 %v1453
      %1488 = vmatprep.subr.bf16.mxu0 0
      %1489 = vmatpush1.bf16.msra.mxu0 %v1451
      %1490 = vmatprep.subr.bf16.mxu0 0
      %1491 = vmatpush2.bf16.msra.mxu0 0
      %1492 = vmatprep.subr.bf16.mxu0 0
      %1493 = vmatpush2.bf16.msra.mxu0 0
      %1494 = vmatprep.subr.bf16.mxu0 0
      %1495 = vmatpush2.bf16.msra.mxu0 0
      %1496 = vmatprep.subr.bf16.mxu0 0
      %1497 = vmatpush2.bf16.msra.mxu0 0
      %1498 = vmatprep.subr.bf16.mxu0 0
      %1499 = vmatpush2.bf16.msra.mxu0 0
      %1500 = vmatprep.subr.bf16.mxu0 0
      %1501 = vmatpush2.bf16.msra.mxu0 0
      %1502 = vmatprep.subr.bf16.mxu0 0
      %1503 = vmatpush2.bf16.msra.mxu0 0
      %1504 = vmatprep.subr.bf16.mxu0 0
      %1505 = vmatpush2.bf16.msra.mxu0 0
      %1506 = vmatprep.mubr.bf16.mxu0 0
      %1507 = vmatmul.mubr.bf16.gmra.mxu0 %v1463
      %v1508 = vpop.f32.mrf.mxu0
      %v1509 = vadd.f32 0.0, %v1508
      %v1510 = vpop.f32.mrf.mxu0
      %v1511 = vpop.f32.mrf.mxu0
      %v1512 = vadd.f32 0.0, %v1511
      %v1513 = vpop.f32.mrf.mxu0
      %1514 = vmatprep.mubr.bf16.mxu0 0
      %1515 = vmatmul.mubr.bf16.gmra.mxu0 %v1466
      %v1516 = vpop.f32.mrf.mxu0
      %v1517 = vadd.f32 0.0, %v1516
      %v1518 = vpop.f32.mrf.mxu0
      %v1519 = vpop.f32.mrf.mxu0
      %v1520 = vadd.f32 0.0, %v1519
      %v1521 = vpop.f32.mrf.mxu0
      %1522 = vmatprep.mubr.bf16.mxu0 0
      %1523 = vmatmul.mubr.bf16.gmra.mxu0 %v1469
      %v1524 = vpop.f32.mrf.mxu0
      %v1525 = vadd.f32 0.0, %v1524
      %v1526 = vpop.f32.mrf.mxu0
      %v1527 = vpop.f32.mrf.mxu0
      %v1528 = vadd.f32 0.0, %v1527
      %v1529 = vpop.f32.mrf.mxu0
      %1530 = vmatprep.mubr.bf16.mxu0 0
      %1531 = vmatmul.mubr.bf16.gmra.mxu0 %v1472
      %v1532 = vpop.f32.mrf.mxu0
      %v1533 = vadd.f32 0.0, %v1532
      %v1534 = vpop.f32.mrf.mxu0
      %v1535 = vpop.f32.mrf.mxu0
      %v1536 = vadd.f32 0.0, %v1535
      %v1537 = vpop.f32.mrf.mxu0
      %1538 = vdwg.mxu0
      %v1539 = vpack.c.bf16 %v1512, %v1509
      %v1540 = vpack.c.bf16 %v1520, %v1517
      %v1541 = vpack.c.bf16 %v1528, %v1525
      %v1542 = vpack.c.bf16 %v1536, %v1533
      %v1543 = vpack.c.bf16 %v870, %v870
      %v1545 = vsel %vm879, %v1539, 0
      %v1548 = vsel %vm879, %v1540, 0
      %v1551 = vsel %vm879, %v1541, 0
      %v1554 = vsel %vm879, %v1542, 0
      %v1557 = vsel %vm1172, %v1543, 0
      %1559 = vmatprep.subr.bf16.mxu0 0
      %1560 = vmatpush1.bf16.msra.mxu0 0
      %1561 = vmatprep.subr.bf16.mxu0 0
      %1562 = vmatpush1.bf16.msra.mxu0 0
      %1563 = vmatprep.subr.bf16.mxu0 0
      %1564 = vmatpush1.bf16.msra.mxu0 0
      %1565 = vmatprep.subr.bf16.mxu0 0
      %1566 = vmatpush1.bf16.msra.mxu0 0
      %1567 = vmatprep.subr.bf16.mxu0 0
      %1568 = vmatpush1.bf16.msra.mxu0 0
      %1569 = vmatprep.subr.bf16.mxu0 0
      %1570 = vmatpush1.bf16.msra.mxu0 0
      %1571 = vmatprep.subr.bf16.mxu0 0
      %1572 = vmatpush1.bf16.msra.mxu0 0
      %1573 = vmatprep.subr.bf16.mxu0 0
      %1574 = vmatpush1.bf16.msra.mxu0 %v1557
      %1575 = vmatprep.subr.bf16.mxu0 0
      %1576 = vmatpush2.bf16.msra.mxu0 0
      %1577 = vmatprep.subr.bf16.mxu0 0
      %1578 = vmatpush2.bf16.msra.mxu0 0
      %1579 = vmatprep.subr.bf16.mxu0 0
      %1580 = vmatpush2.bf16.msra.mxu0 0
      %1581 = vmatprep.subr.bf16.mxu0 0
      %1582 = vmatpush2.bf16.msra.mxu0 0
      %1583 = vmatprep.subr.bf16.mxu0 0
      %1584 = vmatpush2.bf16.msra.mxu0 0
      %1585 = vmatprep.subr.bf16.mxu0 0
      %1586 = vmatpush2.bf16.msra.mxu0 0
      %1587 = vmatprep.subr.bf16.mxu0 0
      %1588 = vmatpush2.bf16.msra.mxu0 0
      %1589 = vmatprep.subr.bf16.mxu0 0
      %1590 = vmatpush2.bf16.msra.mxu0 0
      %1591 = vmatprep.mubr.bf16.mxu0 0
      %1592 = vmatmul.mubr.bf16.gmra.mxu0 %v1545
      %v1593 = vpop.f32.mrf.mxu0
      %v1594 = vadd.f32 0.0, %v1593
      %v1595 = vpop.f32.mrf.mxu0
      %v1596 = vpop.f32.mrf.mxu0
      %v1597 = vadd.f32 0.0, %v1596
      %v1598 = vpop.f32.mrf.mxu0
      %1599 = vmatprep.mubr.bf16.mxu0 0
      %1600 = vmatmul.mubr.bf16.gmra.mxu0 %v1548
      %v1601 = vpop.f32.mrf.mxu0
      %v1602 = vadd.f32 0.0, %v1601
      %v1603 = vpop.f32.mrf.mxu0
      %v1604 = vpop.f32.mrf.mxu0
      %v1605 = vadd.f32 0.0, %v1604
      %v1606 = vpop.f32.mrf.mxu0
      %1607 = vmatprep.mubr.bf16.mxu0 0
      %1608 = vmatmul.mubr.bf16.gmra.mxu0 %v1551
      %v1609 = vpop.f32.mrf.mxu0
      %v1610 = vadd.f32 0.0, %v1609
      %v1611 = vpop.f32.mrf.mxu0
      %v1612 = vpop.f32.mrf.mxu0
      %v1613 = vadd.f32 0.0, %v1612
      %v1614 = vpop.f32.mrf.mxu0
      %1615 = vmatprep.mubr.bf16.mxu0 0
      %1616 = vmatmul.mubr.bf16.gmra.mxu0 %v1554
      %v1617 = vpop.f32.mrf.mxu0
      %v1618 = vadd.f32 0.0, %v1617
      %v1619 = vpop.f32.mrf.mxu0
      %v1620 = vpop.f32.mrf.mxu0
      %v1621 = vadd.f32 0.0, %v1620
      %v1622 = vpop.f32.mrf.mxu0
      %1623 = vdwg.mxu0
      %v1624 = vadd.f32 %v1241, %v1594
      %v1625 = vadd.f32 %v1242, %v1597
      %v1626 = vadd.f32 %v1243, %v1602
      %v1627 = vadd.f32 %v1244, %v1605
      %v1628 = vadd.f32 %v1245, %v1610
      %v1629 = vadd.f32 %v1246, %v1613
      %v1630 = vadd.f32 %v1247, %v1618
      %v1631 = vadd.f32 %v1248, %v1621
      %v1632 = vld [vmem:[%s7] sm:$0x1]
      %v1633 = vld [vmem:[%s8] sm:$0x1]
      %v1634 = vsel %vm561, %v1624, 0.0
      %1635 = vadd.xlane.f32.xlu0 %v1634
      %v1636 = vpop.xlane.xlu0 %1635
      %v1637 = vsel %vm561, %v1625, 0.0
      %1638 = vadd.xlane.f32.xlu0 %v1637
      %v1639 = vpop.xlane.xlu0 %1638
      %v1640 = vsel %vm561, %v1626, 0.0
      %1641 = vadd.xlane.f32.xlu0 %v1640
      %v1642 = vpop.xlane.xlu0 %1641
      %v1643 = vsel %vm561, %v1627, 0.0
      %1644 = vadd.xlane.f32.xlu0 %v1643
      %v1645 = vpop.xlane.xlu0 %1644
      %v1646 = vsel %vm561, %v1628, 0.0
      %1647 = vadd.xlane.f32.xlu0 %v1646
      %v1648 = vpop.xlane.xlu0 %1647
      %v1649 = vsel %vm561, %v1629, 0.0
      %1650 = vadd.xlane.f32.xlu0 %v1649
      %v1651 = vpop.xlane.xlu0 %1650
      %v1652 = vsel %vm561, %v1630, 0.0
      %1653 = vadd.xlane.f32.xlu0 %v1652
      %v1654 = vpop.xlane.xlu0 %1653
      %v1655 = vsel %vm561, %v1631, 0.0
      %1656 = vadd.xlane.f32.xlu0 %v1655
      %v1657 = vpop.xlane.xlu0 %1656
      %v1658 = vmul.f32 %v1636, %v586
      %v1659 = vmul.f32 %v1639, %v586
      %v1660 = vmul.f32 %v1642, %v586
      %v1661 = vmul.f32 %v1645, %v586
      %v1662 = vmul.f32 %v1648, %v586
      %v1663 = vmul.f32 %v1651, %v586
      %v1664 = vmul.f32 %v1654, %v586
      %v1665 = vmul.f32 %v1657, %v586
      %v1666 = vsub.f32 %v1624, %v1658
      %v1667 = vsub.f32 %v1625, %v1659
      %v1668 = vsub.f32 %v1626, %v1660
      %v1669 = vsub.f32 %v1627, %v1661
      %v1670 = vsub.f32 %v1628, %v1662
      %v1671 = vsub.f32 %v1629, %v1663
      %v1672 = vsub.f32 %v1630, %v1664
      %v1673 = vsub.f32 %v1631, %v1665
      %v1674 = vmul.f32 %v1666, %v1666
      %v1675 = vmul.f32 %v1667, %v1667
      %v1676 = vmul.f32 %v1668, %v1668
      %v1677 = vmul.f32 %v1669, %v1669
      %v1678 = vmul.f32 %v1670, %v1670
      %v1679 = vmul.f32 %v1671, %v1671
      %v1680 = vmul.f32 %v1672, %v1672
      %v1681 = vmul.f32 %v1673, %v1673
      %v1682 = vsel %vm561, %v1674, 0.0
      %1683 = vadd.xlane.f32.xlu0 %v1682
      %v1684 = vpop.xlane.xlu0 %1683
      %v1685 = vsel %vm561, %v1675, 0.0
      %1686 = vadd.xlane.f32.xlu0 %v1685
      %v1687 = vpop.xlane.xlu0 %1686
      %v1688 = vsel %vm561, %v1676, 0.0
      %1689 = vadd.xlane.f32.xlu0 %v1688
      %v1690 = vpop.xlane.xlu0 %1689
      %v1691 = vsel %vm561, %v1677, 0.0
      %1692 = vadd.xlane.f32.xlu0 %v1691
      %v1693 = vpop.xlane.xlu0 %1692
      %v1694 = vsel %vm561, %v1678, 0.0
      %1695 = vadd.xlane.f32.xlu0 %v1694
      %v1696 = vpop.xlane.xlu0 %1695
      %v1697 = vsel %vm561, %v1679, 0.0
      %1698 = vadd.xlane.f32.xlu0 %v1697
      %v1699 = vpop.xlane.xlu0 %1698
      %v1700 = vsel %vm561, %v1680, 0.0
      %1701 = vadd.xlane.f32.xlu0 %v1700
      %v1702 = vpop.xlane.xlu0 %1701
      %v1703 = vsel %vm561, %v1681, 0.0
      %1704 = vadd.xlane.f32.xlu0 %v1703
      %v1705 = vpop.xlane.xlu0 %1704
      %v1706 = vmul.f32 %v1684, %v586
      %v1707 = vmul.f32 %v1687, %v586
      %v1708 = vmul.f32 %v1690, %v586
      %v1709 = vmul.f32 %v1693, %v586
      %v1710 = vmul.f32 %v1696, %v586
      %v1711 = vmul.f32 %v1699, %v586
      %v1712 = vmul.f32 %v1702, %v586
      %v1713 = vmul.f32 %v1705, %v586
      %v1714 = vadd.f32 %v1706, 1e-05
      %v1715 = vadd.f32 %v1707, 1e-05
      %v1716 = vadd.f32 %v1708, 1e-05
      %v1717 = vadd.f32 %v1709, 1e-05
      %v1718 = vadd.f32 %v1710, 1e-05
      %v1719 = vadd.f32 %v1711, 1e-05
      %v1720 = vadd.f32 %v1712, 1e-05
      %v1721 = vadd.f32 %v1713, 1e-05
      %v1722 = vrsqrt.pop %v1714
      %v1723 = vrsqrt.pop %v1715
      %v1724 = vrsqrt.pop %v1716
      %v1725 = vrsqrt.pop %v1717
      %v1726 = vrsqrt.pop %v1718
      %v1727 = vrsqrt.pop %v1719
      %v1728 = vrsqrt.pop %v1720
      %v1729 = vrsqrt.pop %v1721
      %v1730 = vmul.f32 %v1666, %v1722
      %v1731 = vmul.f32 %v1667, %v1723
      %v1732 = vmul.f32 %v1668, %v1724
      %v1733 = vmul.f32 %v1669, %v1725
      %v1734 = vmul.f32 %v1670, %v1726
      %v1735 = vmul.f32 %v1671, %v1727
      %v1736 = vmul.f32 %v1672, %v1728
      %v1737 = vmul.f32 %v1673, %v1729
      %v1739 = vlaneseq
      %v1740 = vshrl.u32 %v1739, 7
      %v1741 = vsub.s32 0, %v1740
      %v1742 = vrot.slane %v1632, %v1741
      %v1744 = vmul.f32 %v1730, %v1742
      %v1745 = vmul.f32 %v1731, %v1742
      %v1746 = vmul.f32 %v1732, %v1742
      %v1747 = vmul.f32 %v1733, %v1742
      %v1748 = vmul.f32 %v1734, %v1742
      %v1749 = vmul.f32 %v1735, %v1742
      %v1750 = vmul.f32 %v1736, %v1742
      %v1751 = vmul.f32 %v1737, %v1742
      %v1753 = vlaneseq
      %v1754 = vshrl.u32 %v1753, 7
      %v1755 = vsub.s32 0, %v1754
      %v1756 = vrot.slane %v1633, %v1755
      %v1758 = vadd.f32 %v1744, %v1756
      %v1759 = vadd.f32 %v1745, %v1756
      %v1760 = vadd.f32 %v1746, %v1756
      %v1761 = vadd.f32 %v1747, %v1756
      %v1762 = vadd.f32 %v1748, %v1756
      %v1763 = vadd.f32 %v1749, %v1756
      %v1764 = vadd.f32 %v1750, %v1756
      %v1765 = vadd.f32 %v1751, %v1756
      %v1766 = vld [vmem:[%s9] sm:$0xff]
      %v1767 = vld [vmem:[%s9 + $0x8] sm:$0xff]
      %v1768 = vld [vmem:[%s9 + $0x10] sm:$0xff]
      %v1769 = vld [vmem:[%s9 + $0x18] sm:$0xff]
      %v1770 = vpack.c.bf16 %v1759, %v1758
      %v1771 = vpack.c.bf16 %v1761, %v1760
      %v1772 = vpack.c.bf16 %v1763, %v1762
      %v1773 = vpack.c.bf16 %v1765, %v1764
      %v1774 = vpack.c.bf16 %v1767, %v1766
      %v1775 = vpack.c.bf16 %v1769, %v1768
      %v1776 = vld [vmem:[%s10] sm:$0x1]
      %v1778 = vlaneseq
      %v1779 = vshrl.u32 %v1778, 7
      %v1780 = vsub.s32 0, %v1779
      %v1781 = vrot.slane %v1776, %v1780
      %v1784 = vsel %vm561, %v1770, 0
      %v1787 = vsel %vm561, %v1771, 0
      %v1790 = vsel %vm561, %v1772, 0
      %v1793 = vsel %vm561, %v1773, 0
      %1795 = vmatprep.subr.bf16.mxu0 0
      %1796 = vmatpush1.bf16.msra.mxu0 0
      %1797 = vmatprep.subr.bf16.mxu0 0
      %1798 = vmatpush1.bf16.msra.mxu0 0
      %1799 = vmatprep.subr.bf16.mxu0 0
      %1800 = vmatpush1.bf16.msra.mxu0 0
      %1801 = vmatprep.subr.bf16.mxu0 0
      %1802 = vmatpush1.bf16.msra.mxu0 0
      %1803 = vmatprep.subr.bf16.mxu0 0
      %1804 = vmatpush1.bf16.msra.mxu0 0
      %1805 = vmatprep.subr.bf16.mxu0 0
      %1806 = vmatpush1.bf16.msra.mxu0 0
      %1807 = vmatprep.subr.bf16.mxu0 0
      %1808 = vmatpush1.bf16.msra.mxu0 %v1775
      %1809 = vmatprep.subr.bf16.mxu0 0
      %1810 = vmatpush1.bf16.msra.mxu0 %v1774
      %1811 = vmatprep.subr.bf16.mxu0 0
      %1812 = vmatpush2.bf16.msra.mxu0 0
      %1813 = vmatprep.subr.bf16.mxu0 0
      %1814 = vmatpush2.bf16.msra.mxu0 0
      %1815 = vmatprep.subr.bf16.mxu0 0
      %1816 = vmatpush2.bf16.msra.mxu0 0
      %1817 = vmatprep.subr.bf16.mxu0 0
      %1818 = vmatpush2.bf16.msra.mxu0 0
      %1819 = vmatprep.subr.bf16.mxu0 0
      %1820 = vmatpush2.bf16.msra.mxu0 0
      %1821 = vmatprep.subr.bf16.mxu0 0
      %1822 = vmatpush2.bf16.msra.mxu0 0
      %1823 = vmatprep.subr.bf16.mxu0 0
      %1824 = vmatpush2.bf16.msra.mxu0 0
      %1825 = vmatprep.subr.bf16.mxu0 0
      %1826 = vmatpush2.bf16.msra.mxu0 0
      %1827 = vmatprep.mubr.bf16.mxu0 0
      %1828 = vmatmul.mubr.bf16.gmra.mxu0 %v1784
      %v1829 = vpop.f32.mrf.mxu0
      %v1830 = vadd.f32 %v1781, %v1829
      %v1831 = vpop.f32.mrf.mxu0
      %v1832 = vpop.f32.mrf.mxu0
      %v1833 = vadd.f32 %v1781, %v1832
      %v1834 = vpop.f32.mrf.mxu0
      %1835 = vmatprep.mubr.bf16.mxu0 0
      %1836 = vmatmul.mubr.bf16.gmra.mxu0 %v1787
      %v1837 = vpop.f32.mrf.mxu0
      %v1838 = vadd.f32 %v1781, %v1837
      %v1839 = vpop.f32.mrf.mxu0
      %v1840 = vpop.f32.mrf.mxu0
      %v1841 = vadd.f32 %v1781, %v1840
      %v1842 = vpop.f32.mrf.mxu0
      %1843 = vmatprep.mubr.bf16.mxu0 0
      %1844 = vmatmul.mubr.bf16.gmra.mxu0 %v1790
      %v1845 = vpop.f32.mrf.mxu0
      %v1846 = vadd.f32 %v1781, %v1845
      %v1847 = vpop.f32.mrf.mxu0
      %v1848 = vpop.f32.mrf.mxu0
      %v1849 = vadd.f32 %v1781, %v1848
      %v1850 = vpop.f32.mrf.mxu0
      %1851 = vmatprep.mubr.bf16.mxu0 0
      %1852 = vmatmul.mubr.bf16.gmra.mxu0 %v1793
      %v1853 = vpop.f32.mrf.mxu0
      %v1854 = vadd.f32 %v1781, %v1853
      %v1855 = vpop.f32.mrf.mxu0
      %v1856 = vpop.f32.mrf.mxu0
      %v1857 = vadd.f32 %v1781, %v1856
      %v1858 = vpop.f32.mrf.mxu0
      %1859 = vdwg.mxu0
      %v1860 = vmax.f32 %v1830, 0.0
      %v1861 = vmax.f32 %v1833, 0.0
      %v1862 = vmax.f32 %v1838, 0.0
      %v1863 = vmax.f32 %v1841, 0.0
      %v1864 = vmax.f32 %v1846, 0.0
      %v1865 = vmax.f32 %v1849, 0.0
      %v1866 = vmax.f32 %v1854, 0.0
      %v1867 = vmax.f32 %v1857, 0.0
      %v1868 = vld [vmem:[%s11] sm:$0xff]
      %v1869 = vld [vmem:[%s11 + $0x8] sm:$0xff]
      %v1870 = vld [vmem:[%s11 + $0x10] sm:$0xff]
      %v1871 = vld [vmem:[%s11 + $0x18] sm:$0xff]
      %v1872 = vld [vmem:[%s11 + $0x20] sm:$0xff]
      %v1873 = vld [vmem:[%s11 + $0x28] sm:$0xff]
      %v1874 = vld [vmem:[%s11 + $0x30] sm:$0xff]
      %v1875 = vld [vmem:[%s11 + $0x38] sm:$0xff]
      %v1876 = vld [vmem:[%s11 + $0x40] sm:$0xff]
      %v1877 = vld [vmem:[%s11 + $0x48] sm:$0xff]
      %v1878 = vld [vmem:[%s11 + $0x50] sm:$0xff]
      %v1879 = vld [vmem:[%s11 + $0x58] sm:$0xff]
      %v1880 = vld [vmem:[%s11 + $0x60] sm:$0xff]
      %v1881 = vld [vmem:[%s11 + $0x68] sm:$0xff]
      %v1882 = vld [vmem:[%s11 + $0x70] sm:$0xff]
      %v1883 = vld [vmem:[%s11 + $0x78] sm:$0xff]
      %v1884 = vld [vmem:[%s11 + $0x80] sm:$0xff]
      %v1885 = vld [vmem:[%s11 + $0x88] sm:$0xff]
      %v1886 = vld [vmem:[%s11 + $0x90] sm:$0xff]
      %v1887 = vld [vmem:[%s11 + $0x98] sm:$0xff]
      %v1888 = vld [vmem:[%s11 + $0xa0] sm:$0xff]
      %v1889 = vld [vmem:[%s11 + $0xa8] sm:$0xff]
      %v1890 = vld [vmem:[%s11 + $0xb0] sm:$0xff]
      %v1891 = vld [vmem:[%s11 + $0xb8] sm:$0xff]
      %v1892 = vld [vmem:[%s11 + $0xc0] sm:$0xff]
      %v1893 = vld [vmem:[%s11 + $0xc8] sm:$0xff]
      %v1894 = vld [vmem:[%s11 + $0xd0] sm:$0xff]
      %v1895 = vld [vmem:[%s11 + $0xd8] sm:$0xff]
      %v1896 = vld [vmem:[%s11 + $0xe0] sm:$0xff]
      %v1897 = vld [vmem:[%s11 + $0xe8] sm:$0xff]
      %v1898 = vld [vmem:[%s11 + $0xf0] sm:$0xff]
      %v1899 = vld [vmem:[%s11 + $0xf8] sm:$0xff]
      %v1900 = vld [vmem:[%s11 + $0x100] sm:$0xff]
      %v1901 = vld [vmem:[%s11 + $0x108] sm:$0xff]
      %v1902 = vld [vmem:[%s11 + $0x110] sm:$0xff]
      %v1903 = vld [vmem:[%s11 + $0x118] sm:$0xff]
      %v1904 = vld [vmem:[%s11 + $0x120] sm:$0xff]
      %v1905 = vld [vmem:[%s11 + $0x128] sm:$0xff]
      %v1906 = vld [vmem:[%s11 + $0x130] sm:$0xff]
      %v1907 = vld [vmem:[%s11 + $0x138] sm:$0xff]
      %v1908 = vld [vmem:[%s11 + $0x140] sm:$0xff]
      %v1909 = vld [vmem:[%s11 + $0x148] sm:$0xff]
      %v1910 = vld [vmem:[%s11 + $0x150] sm:$0xff]
      %v1911 = vld [vmem:[%s11 + $0x158] sm:$0xff]
      %v1912 = vld [vmem:[%s11 + $0x160] sm:$0xff]
      %v1913 = vld [vmem:[%s11 + $0x168] sm:$0xff]
      %v1914 = vld [vmem:[%s11 + $0x170] sm:$0xff]
      %v1915 = vld [vmem:[%s11 + $0x178] sm:$0xff]
      %v1916 = vld [vmem:[%s11 + $0x180] sm:$0xff]
      %v1917 = vld [vmem:[%s11 + $0x188] sm:$0xff]
      %v1918 = vld [vmem:[%s11 + $0x190] sm:$0xff]
      %v1919 = vld [vmem:[%s11 + $0x198] sm:$0xff]
      %v1920 = vld [vmem:[%s11 + $0x1a0] sm:$0xff]
      %v1921 = vld [vmem:[%s11 + $0x1a8] sm:$0xff]
      %v1922 = vld [vmem:[%s11 + $0x1b0] sm:$0xff]
      %v1923 = vld [vmem:[%s11 + $0x1b8] sm:$0xff]
      %v1924 = vld [vmem:[%s11 + $0x1c0] sm:$0xff]
      %v1925 = vld [vmem:[%s11 + $0x1c8] sm:$0xff]
      %v1926 = vld [vmem:[%s11 + $0x1d0] sm:$0xff]
      %v1927 = vld [vmem:[%s11 + $0x1d8] sm:$0xff]
      %v1928 = vld [vmem:[%s11 + $0x1e0] sm:$0xff]
      %v1929 = vld [vmem:[%s11 + $0x1e8] sm:$0xff]
      %v1930 = vld [vmem:[%s11 + $0x1f0] sm:$0xff]
      %v1931 = vld [vmem:[%s11 + $0x1f8] sm:$0xff]
      %v1932 = vld [vmem:[%s11 + $0x200] sm:$0xff]
      %v1933 = vld [vmem:[%s11 + $0x208] sm:$0xff]
      %v1934 = vld [vmem:[%s11 + $0x210] sm:$0xff]
      %v1935 = vld [vmem:[%s11 + $0x218] sm:$0xff]
      %v1936 = vld [vmem:[%s11 + $0x220] sm:$0xff]
      %v1937 = vld [vmem:[%s11 + $0x228] sm:$0xff]
      %v1938 = vld [vmem:[%s11 + $0x230] sm:$0xff]
      %v1939 = vld [vmem:[%s11 + $0x238] sm:$0xff]
      %v1940 = vpack.c.bf16 %v1869, %v1868
      %v1941 = vpack.c.bf16 %v1871, %v1870
      %v1942 = vpack.c.bf16 %v1873, %v1872
      %v1943 = vpack.c.bf16 %v1875, %v1874
      %v1944 = vpack.c.bf16 %v1877, %v1876
      %v1945 = vpack.c.bf16 %v1879, %v1878
      %v1946 = vpack.c.bf16 %v1881, %v1880
      %v1947 = vpack.c.bf16 %v1883, %v1882
      %v1948 = vpack.c.bf16 %v1885, %v1884
      %v1949 = vpack.c.bf16 %v1887, %v1886
      %v1950 = vpack.c.bf16 %v1889, %v1888
      %v1951 = vpack.c.bf16 %v1891, %v1890
      %v1952 = vpack.c.bf16 %v1893, %v1892
      %v1953 = vpack.c.bf16 %v1895, %v1894
      %v1954 = vpack.c.bf16 %v1897, %v1896
      %v1955 = vpack.c.bf16 %v1899, %v1898
      %v1956 = vpack.c.bf16 %v1901, %v1900
      %v1957 = vpack.c.bf16 %v1903, %v1902
      %v1958 = vpack.c.bf16 %v1905, %v1904
      %v1959 = vpack.c.bf16 %v1907, %v1906
      %v1960 = vpack.c.bf16 %v1909, %v1908
      %v1961 = vpack.c.bf16 %v1911, %v1910
      %v1962 = vpack.c.bf16 %v1913, %v1912
      %v1963 = vpack.c.bf16 %v1915, %v1914
      %v1964 = vpack.c.bf16 %v1917, %v1916
      %v1965 = vpack.c.bf16 %v1919, %v1918
      %v1966 = vpack.c.bf16 %v1921, %v1920
      %v1967 = vpack.c.bf16 %v1923, %v1922
      %v1968 = vpack.c.bf16 %v1925, %v1924
      %v1969 = vpack.c.bf16 %v1927, %v1926
      %v1970 = vpack.c.bf16 %v1929, %v1928
      %v1971 = vpack.c.bf16 %v1931, %v1930
      %v1972 = vpack.c.bf16 %v1933, %v1932
      %v1973 = vpack.c.bf16 %v1935, %v1934
      %v1974 = vpack.c.bf16 %v1937, %v1936
      %v1975 = vpack.c.bf16 %v1939, %v1938
      %v1976 = vpack.c.bf16 %v1861, %v1860
      %v1977 = vpack.c.bf16 %v1863, %v1862
      %v1978 = vpack.c.bf16 %v1865, %v1864
      %v1979 = vpack.c.bf16 %v1867, %v1866
      %v1981 = vsel %vm969, %v1940, 0
      %v1984 = vsel %vm969, %v1941, 0
      %v1987 = vsel %vm969, %v1942, 0
      %v1990 = vsel %vm969, %v1943, 0
      %v1993 = vsel %vm969, %v1944, 0
      %v1996 = vsel %vm969, %v1945, 0
      %v1999 = vsel %vm969, %v1946, 0
      %v2002 = vsel %vm969, %v1947, 0
      %v2005 = vsel %vm969, %v1948, 0
      %v2008 = vsel %vm969, %v1949, 0
      %v2011 = vsel %vm969, %v1950, 0
      %v2014 = vsel %vm969, %v1951, 0
      %v2017 = vsel %vm969, %v1952, 0
      %v2020 = vsel %vm969, %v1953, 0
      %v2023 = vsel %vm969, %v1954, 0
      %v2026 = vsel %vm969, %v1955, 0
      %v2029 = vsel %vm969, %v1956, 0
      %v2032 = vsel %vm969, %v1957, 0
      %v2035 = vsel %vm969, %v1958, 0
      %v2038 = vsel %vm969, %v1959, 0
      %v2041 = vsel %vm969, %v1960, 0
      %v2044 = vsel %vm969, %v1961, 0
      %v2047 = vsel %vm969, %v1962, 0
      %v2050 = vsel %vm969, %v1963, 0
      %v2053 = vsel %vm969, %v1964, 0
      %v2056 = vsel %vm969, %v1965, 0
      %v2059 = vsel %vm969, %v1966, 0
      %v2062 = vsel %vm969, %v1967, 0
      %v2065 = vsel %vm969, %v1968, 0
      %v2068 = vsel %vm969, %v1969, 0
      %v2071 = vsel %vm969, %v1970, 0
      %v2074 = vsel %vm969, %v1971, 0
      %v2077 = vsel %vm969, %v1972, 0
      %v2080 = vsel %vm969, %v1973, 0
      %v2083 = vsel %vm969, %v1974, 0
      %v2086 = vsel %vm969, %v1975, 0
      %2088 = vmatprep.subr.bf16.mxu0 0
      %2089 = vmatpush1.bf16.msra.mxu0 0
      %2090 = vmatprep.subr.bf16.mxu0 0
      %2091 = vmatpush1.bf16.msra.mxu0 0
      %2092 = vmatprep.subr.bf16.mxu0 0
      %2093 = vmatpush1.bf16.msra.mxu0 0
      %2094 = vmatprep.subr.bf16.mxu0 0
      %2095 = vmatpush1.bf16.msra.mxu0 0
      %2096 = vmatprep.subr.bf16.mxu0 0
      %2097 = vmatpush1.bf16.msra.mxu0 %v1979
      %2098 = vmatprep.subr.bf16.mxu0 0
      %2099 = vmatpush1.bf16.msra.mxu0 %v1978
      %2100 = vmatprep.subr.bf16.mxu0 0
      %2101 = vmatpush1.bf16.msra.mxu0 %v1977
      %2102 = vmatprep.subr.bf16.mxu0 0
      %2103 = vmatpush1.bf16.msra.mxu0 %v1976
      %2104 = vmatprep.subr.bf16.mxu0 0
      %2105 = vmatpush2.bf16.msra.mxu0 0
      %2106 = vmatprep.subr.bf16.mxu0 0
      %2107 = vmatpush2.bf16.msra.mxu0 0
      %2108 = vmatprep.subr.bf16.mxu0 0
      %2109 = vmatpush2.bf16.msra.mxu0 0
      %2110 = vmatprep.subr.bf16.mxu0 0
      %2111 = vmatpush2.bf16.msra.mxu0 0
      %2112 = vmatprep.subr.bf16.mxu0 0
      %2113 = vmatpush2.bf16.msra.mxu0 0
      %2114 = vmatprep.subr.bf16.mxu0 0
      %2115 = vmatpush2.bf16.msra.mxu0 0
      %2116 = vmatprep.subr.bf16.mxu0 0
      %2117 = vmatpush2.bf16.msra.mxu0 0
      %2118 = vmatprep.subr.bf16.mxu0 0
      %2119 = vmatpush2.bf16.msra.mxu0 0
      %2120 = vmatprep.mubr.bf16.mxu0 0
      %2121 = vmatmul.mubr.bf16.gmra.mxu0 %v1981
      %v2122 = vpop.f32.mrf.mxu0
      %v2123 = vadd.f32 0.0, %v2122
      %v2124 = vpop.f32.mrf.mxu0
      %v2125 = vpop.f32.mrf.mxu0
      %v2126 = vadd.f32 0.0, %v2125
      %v2127 = vpop.f32.mrf.mxu0
      %2128 = vmatprep.mubr.bf16.mxu0 0
      %2129 = vmatmul.mubr.bf16.gmra.mxu0 %v1984
      %v2130 = vpop.f32.mrf.mxu0
      %v2131 = vadd.f32 0.0, %v2130
      %v2132 = vpop.f32.mrf.mxu0
      %v2133 = vpop.f32.mrf.mxu0
      %v2134 = vadd.f32 0.0, %v2133
      %v2135 = vpop.f32.mrf.mxu0
      %2136 = vmatprep.mubr.bf16.mxu0 0
      %2137 = vmatmul.mubr.bf16.gmra.mxu0 %v1987
      %v2138 = vpop.f32.mrf.mxu0
      %v2139 = vadd.f32 0.0, %v2138
      %v2140 = vpop.f32.mrf.mxu0
      %v2141 = vpop.f32.mrf.mxu0
      %v2142 = vadd.f32 0.0, %v2141
      %v2143 = vpop.f32.mrf.mxu0
      %2144 = vmatprep.mubr.bf16.mxu0 0
      %2145 = vmatmul.mubr.bf16.gmra.mxu0 %v1990
      %v2146 = vpop.f32.mrf.mxu0
      %v2147 = vadd.f32 0.0, %v2146
      %v2148 = vpop.f32.mrf.mxu0
      %v2149 = vpop.f32.mrf.mxu0
      %v2150 = vadd.f32 0.0, %v2149
      %v2151 = vpop.f32.mrf.mxu0
      %2152 = vmatprep.mubr.bf16.mxu0 0
      %2153 = vmatmul.mubr.bf16.gmra.mxu0 %v1993
      %v2154 = vpop.f32.mrf.mxu0
      %v2155 = vadd.f32 0.0, %v2154
      %v2156 = vpop.f32.mrf.mxu0
      %v2157 = vpop.f32.mrf.mxu0
      %v2158 = vadd.f32 0.0, %v2157
      %v2159 = vpop.f32.mrf.mxu0
      %2160 = vmatprep.mubr.bf16.mxu0 0
      %2161 = vmatmul.mubr.bf16.gmra.mxu0 %v1996
      %v2162 = vpop.f32.mrf.mxu0
      %v2163 = vadd.f32 0.0, %v2162
      %v2164 = vpop.f32.mrf.mxu0
      %v2165 = vpop.f32.mrf.mxu0
      %v2166 = vadd.f32 0.0, %v2165
      %v2167 = vpop.f32.mrf.mxu0
      %2168 = vmatprep.mubr.bf16.mxu0 0
      %2169 = vmatmul.mubr.bf16.gmra.mxu0 %v1999
      %v2170 = vpop.f32.mrf.mxu0
      %v2171 = vadd.f32 0.0, %v2170
      %v2172 = vpop.f32.mrf.mxu0
      %v2173 = vpop.f32.mrf.mxu0
      %v2174 = vadd.f32 0.0, %v2173
      %v2175 = vpop.f32.mrf.mxu0
      %2176 = vmatprep.mubr.bf16.mxu0 0
      %2177 = vmatmul.mubr.bf16.gmra.mxu0 %v2002
      %v2178 = vpop.f32.mrf.mxu0
      %v2179 = vadd.f32 0.0, %v2178
      %v2180 = vpop.f32.mrf.mxu0
      %v2181 = vpop.f32.mrf.mxu0
      %v2182 = vadd.f32 0.0, %v2181
      %v2183 = vpop.f32.mrf.mxu0
      %2184 = vmatprep.mubr.bf16.mxu0 0
      %2185 = vmatmul.mubr.bf16.gmra.mxu0 %v2005
      %v2186 = vpop.f32.mrf.mxu0
      %v2187 = vadd.f32 0.0, %v2186
      %v2188 = vpop.f32.mrf.mxu0
      %v2189 = vpop.f32.mrf.mxu0
      %v2190 = vadd.f32 0.0, %v2189
      %v2191 = vpop.f32.mrf.mxu0
      %2192 = vmatprep.mubr.bf16.mxu0 0
      %2193 = vmatmul.mubr.bf16.gmra.mxu0 %v2008
      %v2194 = vpop.f32.mrf.mxu0
      %v2195 = vadd.f32 0.0, %v2194
      %v2196 = vpop.f32.mrf.mxu0
      %v2197 = vpop.f32.mrf.mxu0
      %v2198 = vadd.f32 0.0, %v2197
      %v2199 = vpop.f32.mrf.mxu0
      %2200 = vmatprep.mubr.bf16.mxu0 0
      %2201 = vmatmul.mubr.bf16.gmra.mxu0 %v2011
      %v2202 = vpop.f32.mrf.mxu0
      %v2203 = vadd.f32 0.0, %v2202
      %v2204 = vpop.f32.mrf.mxu0
      %v2205 = vpop.f32.mrf.mxu0
      %v2206 = vadd.f32 0.0, %v2205
      %v2207 = vpop.f32.mrf.mxu0
      %2208 = vmatprep.mubr.bf16.mxu0 0
      %2209 = vmatmul.mubr.bf16.gmra.mxu0 %v2014
      %v2210 = vpop.f32.mrf.mxu0
      %v2211 = vadd.f32 0.0, %v2210
      %v2212 = vpop.f32.mrf.mxu0
      %v2213 = vpop.f32.mrf.mxu0
      %v2214 = vadd.f32 0.0, %v2213
      %v2215 = vpop.f32.mrf.mxu0
      %2216 = vmatprep.mubr.bf16.mxu0 0
      %2217 = vmatmul.mubr.bf16.gmra.mxu0 %v2017
      %v2218 = vpop.f32.mrf.mxu0
      %v2219 = vadd.f32 0.0, %v2218
      %v2220 = vpop.f32.mrf.mxu0
      %v2221 = vpop.f32.mrf.mxu0
      %v2222 = vadd.f32 0.0, %v2221
      %v2223 = vpop.f32.mrf.mxu0
      %2224 = vmatprep.mubr.bf16.mxu0 0
      %2225 = vmatmul.mubr.bf16.gmra.mxu0 %v2020
      %v2226 = vpop.f32.mrf.mxu0
      %v2227 = vadd.f32 0.0, %v2226
      %v2228 = vpop.f32.mrf.mxu0
      %v2229 = vpop.f32.mrf.mxu0
      %v2230 = vadd.f32 0.0, %v2229
      %v2231 = vpop.f32.mrf.mxu0
      %2232 = vmatprep.mubr.bf16.mxu0 0
      %2233 = vmatmul.mubr.bf16.gmra.mxu0 %v2023
      %v2234 = vpop.f32.mrf.mxu0
      %v2235 = vadd.f32 0.0, %v2234
      %v2236 = vpop.f32.mrf.mxu0
      %v2237 = vpop.f32.mrf.mxu0
      %v2238 = vadd.f32 0.0, %v2237
      %v2239 = vpop.f32.mrf.mxu0
      %2240 = vmatprep.mubr.bf16.mxu0 0
      %2241 = vmatmul.mubr.bf16.gmra.mxu0 %v2026
      %v2242 = vpop.f32.mrf.mxu0
      %v2243 = vadd.f32 0.0, %v2242
      %v2244 = vpop.f32.mrf.mxu0
      %v2245 = vpop.f32.mrf.mxu0
      %v2246 = vadd.f32 0.0, %v2245
      %v2247 = vpop.f32.mrf.mxu0
      %2248 = vmatprep.mubr.bf16.mxu0 0
      %2249 = vmatmul.mubr.bf16.gmra.mxu0 %v2029
      %v2250 = vpop.f32.mrf.mxu0
      %v2251 = vadd.f32 0.0, %v2250
      %v2252 = vpop.f32.mrf.mxu0
      %v2253 = vpop.f32.mrf.mxu0
      %v2254 = vadd.f32 0.0, %v2253
      %v2255 = vpop.f32.mrf.mxu0
      %2256 = vmatprep.mubr.bf16.mxu0 0
      %2257 = vmatmul.mubr.bf16.gmra.mxu0 %v2032
      %v2258 = vpop.f32.mrf.mxu0
      %v2259 = vadd.f32 0.0, %v2258
      %v2260 = vpop.f32.mrf.mxu0
      %v2261 = vpop.f32.mrf.mxu0
      %v2262 = vadd.f32 0.0, %v2261
      %v2263 = vpop.f32.mrf.mxu0
      %2264 = vmatprep.mubr.bf16.mxu0 0
      %2265 = vmatmul.mubr.bf16.gmra.mxu0 %v2035
      %v2266 = vpop.f32.mrf.mxu0
      %v2267 = vadd.f32 0.0, %v2266
      %v2268 = vpop.f32.mrf.mxu0
      %v2269 = vpop.f32.mrf.mxu0
      %v2270 = vadd.f32 0.0, %v2269
      %v2271 = vpop.f32.mrf.mxu0
      %2272 = vmatprep.mubr.bf16.mxu0 0
      %2273 = vmatmul.mubr.bf16.gmra.mxu0 %v2038
      %v2274 = vpop.f32.mrf.mxu0
      %v2275 = vadd.f32 0.0, %v2274
      %v2276 = vpop.f32.mrf.mxu0
      %v2277 = vpop.f32.mrf.mxu0
      %v2278 = vadd.f32 0.0, %v2277
      %v2279 = vpop.f32.mrf.mxu0
      %2280 = vmatprep.mubr.bf16.mxu0 0
      %2281 = vmatmul.mubr.bf16.gmra.mxu0 %v2041
      %v2282 = vpop.f32.mrf.mxu0
      %v2283 = vadd.f32 0.0, %v2282
      %v2284 = vpop.f32.mrf.mxu0
      %v2285 = vpop.f32.mrf.mxu0
      %v2286 = vadd.f32 0.0, %v2285
      %v2287 = vpop.f32.mrf.mxu0
      %2288 = vmatprep.mubr.bf16.mxu0 0
      %2289 = vmatmul.mubr.bf16.gmra.mxu0 %v2044
      %v2290 = vpop.f32.mrf.mxu0
      %v2291 = vadd.f32 0.0, %v2290
      %v2292 = vpop.f32.mrf.mxu0
      %v2293 = vpop.f32.mrf.mxu0
      %v2294 = vadd.f32 0.0, %v2293
      %v2295 = vpop.f32.mrf.mxu0
      %2296 = vmatprep.mubr.bf16.mxu0 0
      %2297 = vmatmul.mubr.bf16.gmra.mxu0 %v2047
      %v2298 = vpop.f32.mrf.mxu0
      %v2299 = vadd.f32 0.0, %v2298
      %v2300 = vpop.f32.mrf.mxu0
      %v2301 = vpop.f32.mrf.mxu0
      %v2302 = vadd.f32 0.0, %v2301
      %v2303 = vpop.f32.mrf.mxu0
      %2304 = vmatprep.mubr.bf16.mxu0 0
      %2305 = vmatmul.mubr.bf16.gmra.mxu0 %v2050
      %v2306 = vpop.f32.mrf.mxu0
      %v2307 = vadd.f32 0.0, %v2306
      %v2308 = vpop.f32.mrf.mxu0
      %v2309 = vpop.f32.mrf.mxu0
      %v2310 = vadd.f32 0.0, %v2309
      %v2311 = vpop.f32.mrf.mxu0
      %2312 = vmatprep.mubr.bf16.mxu0 0
      %2313 = vmatmul.mubr.bf16.gmra.mxu0 %v2053
      %v2314 = vpop.f32.mrf.mxu0
      %v2315 = vadd.f32 0.0, %v2314
      %v2316 = vpop.f32.mrf.mxu0
      %v2317 = vpop.f32.mrf.mxu0
      %v2318 = vadd.f32 0.0, %v2317
      %v2319 = vpop.f32.mrf.mxu0
      %2320 = vmatprep.mubr.bf16.mxu0 0
      %2321 = vmatmul.mubr.bf16.gmra.mxu0 %v2056
      %v2322 = vpop.f32.mrf.mxu0
      %v2323 = vadd.f32 0.0, %v2322
      %v2324 = vpop.f32.mrf.mxu0
      %v2325 = vpop.f32.mrf.mxu0
      %v2326 = vadd.f32 0.0, %v2325
      %v2327 = vpop.f32.mrf.mxu0
      %2328 = vmatprep.mubr.bf16.mxu0 0
      %2329 = vmatmul.mubr.bf16.gmra.mxu0 %v2059
      %v2330 = vpop.f32.mrf.mxu0
      %v2331 = vadd.f32 0.0, %v2330
      %v2332 = vpop.f32.mrf.mxu0
      %v2333 = vpop.f32.mrf.mxu0
      %v2334 = vadd.f32 0.0, %v2333
      %v2335 = vpop.f32.mrf.mxu0
      %2336 = vmatprep.mubr.bf16.mxu0 0
      %2337 = vmatmul.mubr.bf16.gmra.mxu0 %v2062
      %v2338 = vpop.f32.mrf.mxu0
      %v2339 = vadd.f32 0.0, %v2338
      %v2340 = vpop.f32.mrf.mxu0
      %v2341 = vpop.f32.mrf.mxu0
      %v2342 = vadd.f32 0.0, %v2341
      %v2343 = vpop.f32.mrf.mxu0
      %2344 = vmatprep.mubr.bf16.mxu0 0
      %2345 = vmatmul.mubr.bf16.gmra.mxu0 %v2065
      %v2346 = vpop.f32.mrf.mxu0
      %v2347 = vadd.f32 0.0, %v2346
      %v2348 = vpop.f32.mrf.mxu0
      %v2349 = vpop.f32.mrf.mxu0
      %v2350 = vadd.f32 0.0, %v2349
      %v2351 = vpop.f32.mrf.mxu0
      %2352 = vmatprep.mubr.bf16.mxu0 0
      %2353 = vmatmul.mubr.bf16.gmra.mxu0 %v2068
      %v2354 = vpop.f32.mrf.mxu0
      %v2355 = vadd.f32 0.0, %v2354
      %v2356 = vpop.f32.mrf.mxu0
      %v2357 = vpop.f32.mrf.mxu0
      %v2358 = vadd.f32 0.0, %v2357
      %v2359 = vpop.f32.mrf.mxu0
      %2360 = vmatprep.mubr.bf16.mxu0 0
      %2361 = vmatmul.mubr.bf16.gmra.mxu0 %v2071
      %v2362 = vpop.f32.mrf.mxu0
      %v2363 = vadd.f32 0.0, %v2362
      %v2364 = vpop.f32.mrf.mxu0
      %v2365 = vpop.f32.mrf.mxu0
      %v2366 = vadd.f32 0.0, %v2365
      %v2367 = vpop.f32.mrf.mxu0
      %2368 = vmatprep.mubr.bf16.mxu0 0
      %2369 = vmatmul.mubr.bf16.gmra.mxu0 %v2074
      %v2370 = vpop.f32.mrf.mxu0
      %v2371 = vadd.f32 0.0, %v2370
      %v2372 = vpop.f32.mrf.mxu0
      %v2373 = vpop.f32.mrf.mxu0
      %v2374 = vadd.f32 0.0, %v2373
      %v2375 = vpop.f32.mrf.mxu0
      %2376 = vmatprep.mubr.bf16.mxu0 0
      %2377 = vmatmul.mubr.bf16.gmra.mxu0 %v2077
      %v2378 = vpop.f32.mrf.mxu0
      %v2379 = vadd.f32 0.0, %v2378
      %v2380 = vpop.f32.mrf.mxu0
      %v2381 = vpop.f32.mrf.mxu0
      %v2382 = vadd.f32 0.0, %v2381
      %v2383 = vpop.f32.mrf.mxu0
      %2384 = vmatprep.mubr.bf16.mxu0 0
      %2385 = vmatmul.mubr.bf16.gmra.mxu0 %v2080
      %v2386 = vpop.f32.mrf.mxu0
      %v2387 = vadd.f32 0.0, %v2386
      %v2388 = vpop.f32.mrf.mxu0
      %v2389 = vpop.f32.mrf.mxu0
      %v2390 = vadd.f32 0.0, %v2389
      %v2391 = vpop.f32.mrf.mxu0
      %2392 = vmatprep.mubr.bf16.mxu0 0
      %2393 = vmatmul.mubr.bf16.gmra.mxu0 %v2083
      %v2394 = vpop.f32.mrf.mxu0
      %v2395 = vadd.f32 0.0, %v2394
      %v2396 = vpop.f32.mrf.mxu0
      %v2397 = vpop.f32.mrf.mxu0
      %v2398 = vadd.f32 0.0, %v2397
      %v2399 = vpop.f32.mrf.mxu0
      %2400 = vmatprep.mubr.bf16.mxu0 0
      %2401 = vmatmul.mubr.bf16.gmra.mxu0 %v2086
      %v2402 = vpop.f32.mrf.mxu0
      %v2403 = vadd.f32 0.0, %v2402
      %v2404 = vpop.f32.mrf.mxu0
      %v2405 = vpop.f32.mrf.mxu0
      %v2406 = vadd.f32 0.0, %v2405
      %v2407 = vpop.f32.mrf.mxu0
      %2408 = vdwg.mxu0
      %v2409 = vld [vmem:[%s12] sm:$0xff]
      %v2410 = vld [vmem:[%s12 + $0x8] sm:$0x1]
      %v2411 = vlaneseq
      %v2412 = vshrl.u32 %v2411, 7
      %v2413 = vsub.s32 0, %v2412
      %v2414 = vrot.slane %v2409, %v2413
      %v2415 = vmul.f32 %v2123, %v2414
      %v2416 = vmul.f32 %v2126, %v2414
      %v2417 = vmul.f32 %v2131, %v2414
      %v2418 = vmul.f32 %v2134, %v2414
      %v2419 = vmul.f32 %v2139, %v2414
      %v2420 = vmul.f32 %v2142, %v2414
      %v2421 = vmul.f32 %v2147, %v2414
      %v2422 = vmul.f32 %v2150, %v2414
      %v2423 = vlaneseq
      %v2424 = vshrl.u32 %v2423, 7
      %v2425 = vsub.s32 1, %v2424
      %v2426 = vrot.slane %v2409, %v2425
      %v2427 = vmul.f32 %v2155, %v2426
      %v2428 = vmul.f32 %v2158, %v2426
      %v2429 = vmul.f32 %v2163, %v2426
      %v2430 = vmul.f32 %v2166, %v2426
      %v2431 = vmul.f32 %v2171, %v2426
      %v2432 = vmul.f32 %v2174, %v2426
      %v2433 = vmul.f32 %v2179, %v2426
      %v2434 = vmul.f32 %v2182, %v2426
      %v2435 = vadd.f32 %v2415, %v2427
      %v2436 = vadd.f32 %v2416, %v2428
      %v2437 = vadd.f32 %v2417, %v2429
      %v2438 = vadd.f32 %v2418, %v2430
      %v2439 = vadd.f32 %v2419, %v2431
      %v2440 = vadd.f32 %v2420, %v2432
      %v2441 = vadd.f32 %v2421, %v2433
      %v2442 = vadd.f32 %v2422, %v2434
      %v2443 = vlaneseq
      %v2444 = vshrl.u32 %v2443, 7
      %v2445 = vsub.s32 2, %v2444
      %v2446 = vrot.slane %v2409, %v2445
      %v2447 = vmul.f32 %v2187, %v2446
      %v2448 = vmul.f32 %v2190, %v2446
      %v2449 = vmul.f32 %v2195, %v2446
      %v2450 = vmul.f32 %v2198, %v2446
      %v2451 = vmul.f32 %v2203, %v2446
      %v2452 = vmul.f32 %v2206, %v2446
      %v2453 = vmul.f32 %v2211, %v2446
      %v2454 = vmul.f32 %v2214, %v2446
      %v2455 = vadd.f32 %v2435, %v2447
      %v2456 = vadd.f32 %v2436, %v2448
      %v2457 = vadd.f32 %v2437, %v2449
      %v2458 = vadd.f32 %v2438, %v2450
      %v2459 = vadd.f32 %v2439, %v2451
      %v2460 = vadd.f32 %v2440, %v2452
      %v2461 = vadd.f32 %v2441, %v2453
      %v2462 = vadd.f32 %v2442, %v2454
      %v2463 = vlaneseq
      %v2464 = vshrl.u32 %v2463, 7
      %v2465 = vsub.s32 3, %v2464
      %v2466 = vrot.slane %v2409, %v2465
      %v2467 = vmul.f32 %v2219, %v2466
      %v2468 = vmul.f32 %v2222, %v2466
      %v2469 = vmul.f32 %v2227, %v2466
      %v2470 = vmul.f32 %v2230, %v2466
      %v2471 = vmul.f32 %v2235, %v2466
      %v2472 = vmul.f32 %v2238, %v2466
      %v2473 = vmul.f32 %v2243, %v2466
      %v2474 = vmul.f32 %v2246, %v2466
      %v2475 = vadd.f32 %v2455, %v2467
      %v2476 = vadd.f32 %v2456, %v2468
      %v2477 = vadd.f32 %v2457, %v2469
      %v2478 = vadd.f32 %v2458, %v2470
      %v2479 = vadd.f32 %v2459, %v2471
      %v2480 = vadd.f32 %v2460, %v2472
      %v2481 = vadd.f32 %v2461, %v2473
      %v2482 = vadd.f32 %v2462, %v2474
      %v2483 = vlaneseq
      %v2484 = vshrl.u32 %v2483, 7
      %v2485 = vsub.s32 4, %v2484
      %v2486 = vrot.slane %v2409, %v2485
      %v2487 = vmul.f32 %v2251, %v2486
      %v2488 = vmul.f32 %v2254, %v2486
      %v2489 = vmul.f32 %v2259, %v2486
      %v2490 = vmul.f32 %v2262, %v2486
      %v2491 = vmul.f32 %v2267, %v2486
      %v2492 = vmul.f32 %v2270, %v2486
      %v2493 = vmul.f32 %v2275, %v2486
      %v2494 = vmul.f32 %v2278, %v2486
      %v2495 = vadd.f32 %v2475, %v2487
      %v2496 = vadd.f32 %v2476, %v2488
      %v2497 = vadd.f32 %v2477, %v2489
      %v2498 = vadd.f32 %v2478, %v2490
      %v2499 = vadd.f32 %v2479, %v2491
      %v2500 = vadd.f32 %v2480, %v2492
      %v2501 = vadd.f32 %v2481, %v2493
      %v2502 = vadd.f32 %v2482, %v2494
      %v2503 = vlaneseq
      %v2504 = vshrl.u32 %v2503, 7
      %v2505 = vsub.s32 5, %v2504
      %v2506 = vrot.slane %v2409, %v2505
      %v2507 = vmul.f32 %v2283, %v2506
      %v2508 = vmul.f32 %v2286, %v2506
      %v2509 = vmul.f32 %v2291, %v2506
      %v2510 = vmul.f32 %v2294, %v2506
      %v2511 = vmul.f32 %v2299, %v2506
      %v2512 = vmul.f32 %v2302, %v2506
      %v2513 = vmul.f32 %v2307, %v2506
      %v2514 = vmul.f32 %v2310, %v2506
      %v2515 = vadd.f32 %v2495, %v2507
      %v2516 = vadd.f32 %v2496, %v2508
      %v2517 = vadd.f32 %v2497, %v2509
      %v2518 = vadd.f32 %v2498, %v2510
      %v2519 = vadd.f32 %v2499, %v2511
      %v2520 = vadd.f32 %v2500, %v2512
      %v2521 = vadd.f32 %v2501, %v2513
      %v2522 = vadd.f32 %v2502, %v2514
      %v2523 = vlaneseq
      %v2524 = vshrl.u32 %v2523, 7
      %v2525 = vsub.s32 6, %v2524
      %v2526 = vrot.slane %v2409, %v2525
      %v2527 = vmul.f32 %v2315, %v2526
      %v2528 = vmul.f32 %v2318, %v2526
      %v2529 = vmul.f32 %v2323, %v2526
      %v2530 = vmul.f32 %v2326, %v2526
      %v2531 = vmul.f32 %v2331, %v2526
      %v2532 = vmul.f32 %v2334, %v2526
      %v2533 = vmul.f32 %v2339, %v2526
      %v2534 = vmul.f32 %v2342, %v2526
      %v2535 = vadd.f32 %v2515, %v2527
      %v2536 = vadd.f32 %v2516, %v2528
      %v2537 = vadd.f32 %v2517, %v2529
      %v2538 = vadd.f32 %v2518, %v2530
      %v2539 = vadd.f32 %v2519, %v2531
      %v2540 = vadd.f32 %v2520, %v2532
      %v2541 = vadd.f32 %v2521, %v2533
      %v2542 = vadd.f32 %v2522, %v2534
      %v2543 = vlaneseq
      %v2544 = vshrl.u32 %v2543, 7
      %v2545 = vsub.s32 7, %v2544
      %v2546 = vrot.slane %v2409, %v2545
      %v2547 = vmul.f32 %v2347, %v2546
      %v2548 = vmul.f32 %v2350, %v2546
      %v2549 = vmul.f32 %v2355, %v2546
      %v2550 = vmul.f32 %v2358, %v2546
      %v2551 = vmul.f32 %v2363, %v2546
      %v2552 = vmul.f32 %v2366, %v2546
      %v2553 = vmul.f32 %v2371, %v2546
      %v2554 = vmul.f32 %v2374, %v2546
      %v2555 = vadd.f32 %v2535, %v2547
      %v2556 = vadd.f32 %v2536, %v2548
      %v2557 = vadd.f32 %v2537, %v2549
      %v2558 = vadd.f32 %v2538, %v2550
      %v2559 = vadd.f32 %v2539, %v2551
      %v2560 = vadd.f32 %v2540, %v2552
      %v2561 = vadd.f32 %v2541, %v2553
      %v2562 = vadd.f32 %v2542, %v2554
      %v2563 = vlaneseq
      %v2564 = vshrl.u32 %v2563, 7
      %v2565 = vsub.s32 0, %v2564
      %v2566 = vrot.slane %v2410, %v2565
      %v2567 = vmul.f32 %v2379, %v2566
      %v2568 = vmul.f32 %v2382, %v2566
      %v2569 = vmul.f32 %v2387, %v2566
      %v2570 = vmul.f32 %v2390, %v2566
      %v2571 = vmul.f32 %v2395, %v2566
      %v2572 = vmul.f32 %v2398, %v2566
      %v2573 = vmul.f32 %v2403, %v2566
      %v2574 = vmul.f32 %v2406, %v2566
      %v2575 = vadd.f32 %v2555, %v2567
      %v2576 = vadd.f32 %v2556, %v2568
      %v2577 = vadd.f32 %v2557, %v2569
      %v2578 = vadd.f32 %v2558, %v2570
      %v2579 = vadd.f32 %v2559, %v2571
      %v2580 = vadd.f32 %v2560, %v2572
      %v2581 = vadd.f32 %v2561, %v2573
      %v2582 = vadd.f32 %v2562, %v2574
      %v2583 = vld [vmem:[%s13] sm:$0x1]
      %v2585 = vlaneseq
      %v2586 = vshrl.u32 %v2585, 7
      %v2587 = vsub.s32 0, %v2586
      %v2588 = vrot.slane %v2583, %v2587
      %v2590 = vadd.f32 %v2575, %v2588
      %v2591 = vadd.f32 %v2576, %v2588
      %v2592 = vadd.f32 %v2577, %v2588
      %v2593 = vadd.f32 %v2578, %v2588
      %v2594 = vadd.f32 %v2579, %v2588
      %v2595 = vadd.f32 %v2580, %v2588
      %v2596 = vadd.f32 %v2581, %v2588
      %v2597 = vadd.f32 %v2582, %v2588
      %v2598 = vmax.f32 %v2590, 0.0
      %v2599 = vmax.f32 %v2591, 0.0
      %v2600 = vmax.f32 %v2592, 0.0
      %v2601 = vmax.f32 %v2593, 0.0
      %v2602 = vmax.f32 %v2594, 0.0
      %v2603 = vmax.f32 %v2595, 0.0
      %v2604 = vmax.f32 %v2596, 0.0
      %v2605 = vmax.f32 %v2597, 0.0
      %v2606 = vld [vmem:[%s14] sm:$0xff]
      %v2607 = vld [vmem:[%s14 + $0x8] sm:$0xff]
      %v2608 = vld [vmem:[%s14 + $0x10] sm:$0xff]
      %v2609 = vld [vmem:[%s14 + $0x18] sm:$0xff]
      %v2610 = vld [vmem:[%s14 + $0x20] sm:$0xff]
      %v2611 = vld [vmem:[%s14 + $0x28] sm:$0xff]
      %v2612 = vld [vmem:[%s14 + $0x30] sm:$0xff]
      %v2613 = vld [vmem:[%s14 + $0x38] sm:$0xff]
      %v2614 = vpack.c.bf16 %v2599, %v2598
      %v2615 = vpack.c.bf16 %v2601, %v2600
      %v2616 = vpack.c.bf16 %v2603, %v2602
      %v2617 = vpack.c.bf16 %v2605, %v2604
      %v2618 = vpack.c.bf16 %v2607, %v2606
      %v2619 = vpack.c.bf16 %v2609, %v2608
      %v2620 = vpack.c.bf16 %v2611, %v2610
      %v2621 = vpack.c.bf16 %v2613, %v2612
      %v2622 = vld [vmem:[%s15] sm:$0x1]
      %v2624 = vlaneseq
      %v2625 = vshrl.u32 %v2624, 7
      %v2626 = vsub.s32 0, %v2625
      %v2627 = vrot.slane %v2622, %v2626
      %v2630 = vsel %vm969, %v2614, 0
      %v2633 = vsel %vm969, %v2615, 0
      %v2636 = vsel %vm969, %v2616, 0
      %v2639 = vsel %vm969, %v2617, 0
      %2641 = vmatprep.subr.bf16.mxu0 0
      %2642 = vmatpush1.bf16.msra.mxu0 0
      %2643 = vmatprep.subr.bf16.mxu0 0
      %2644 = vmatpush1.bf16.msra.mxu0 0
      %2645 = vmatprep.subr.bf16.mxu0 0
      %2646 = vmatpush1.bf16.msra.mxu0 0
      %2647 = vmatprep.subr.bf16.mxu0 0
      %2648 = vmatpush1.bf16.msra.mxu0 0
      %2649 = vmatprep.subr.bf16.mxu0 0
      %2650 = vmatpush1.bf16.msra.mxu0 %v2621
      %2651 = vmatprep.subr.bf16.mxu0 0
      %2652 = vmatpush1.bf16.msra.mxu0 %v2620
      %2653 = vmatprep.subr.bf16.mxu0 0
      %2654 = vmatpush1.bf16.msra.mxu0 %v2619
      %2655 = vmatprep.subr.bf16.mxu0 0
      %2656 = vmatpush1.bf16.msra.mxu0 %v2618
      %2657 = vmatprep.subr.bf16.mxu0 0
      %2658 = vmatpush2.bf16.msra.mxu0 0
      %2659 = vmatprep.subr.bf16.mxu0 0
      %2660 = vmatpush2.bf16.msra.mxu0 0
      %2661 = vmatprep.subr.bf16.mxu0 0
      %2662 = vmatpush2.bf16.msra.mxu0 0
      %2663 = vmatprep.subr.bf16.mxu0 0
      %2664 = vmatpush2.bf16.msra.mxu0 0
      %2665 = vmatprep.subr.bf16.mxu0 0
      %2666 = vmatpush2.bf16.msra.mxu0 0
      %2667 = vmatprep.subr.bf16.mxu0 0
      %2668 = vmatpush2.bf16.msra.mxu0 0
      %2669 = vmatprep.subr.bf16.mxu0 0
      %2670 = vmatpush2.bf16.msra.mxu0 0
      %2671 = vmatprep.subr.bf16.mxu0 0
      %2672 = vmatpush2.bf16.msra.mxu0 0
      %2673 = vmatprep.mubr.bf16.mxu0 0
      %2674 = vmatmul.mubr.bf16.gmra.mxu0 %v2630
      %v2675 = vpop.f32.mrf.mxu0
      %v2676 = vadd.f32 %v2627, %v2675
      %v2677 = vpop.f32.mrf.mxu0
      %v2678 = vpop.f32.mrf.mxu0
      %v2679 = vadd.f32 %v2627, %v2678
      %v2680 = vpop.f32.mrf.mxu0
      %2681 = vmatprep.mubr.bf16.mxu0 0
      %2682 = vmatmul.mubr.bf16.gmra.mxu0 %v2633
      %v2683 = vpop.f32.mrf.mxu0
      %v2684 = vadd.f32 %v2627, %v2683
      %v2685 = vpop.f32.mrf.mxu0
      %v2686 = vpop.f32.mrf.mxu0
      %v2687 = vadd.f32 %v2627, %v2686
      %v2688 = vpop.f32.mrf.mxu0
      %2689 = vmatprep.mubr.bf16.mxu0 0
      %2690 = vmatmul.mubr.bf16.gmra.mxu0 %v2636
      %v2691 = vpop.f32.mrf.mxu0
      %v2692 = vadd.f32 %v2627, %v2691
      %v2693 = vpop.f32.mrf.mxu0
      %v2694 = vpop.f32.mrf.mxu0
      %v2695 = vadd.f32 %v2627, %v2694
      %v2696 = vpop.f32.mrf.mxu0
      %2697 = vmatprep.mubr.bf16.mxu0 0
      %2698 = vmatmul.mubr.bf16.gmra.mxu0 %v2639
      %v2699 = vpop.f32.mrf.mxu0
      %v2700 = vadd.f32 %v2627, %v2699
      %v2701 = vpop.f32.mrf.mxu0
      %v2702 = vpop.f32.mrf.mxu0
      %v2703 = vadd.f32 %v2627, %v2702
      %v2704 = vpop.f32.mrf.mxu0
      %2705 = vdwg.mxu0
      %v2706 = vmax.f32 %v2676, 0.0
      %v2707 = vmax.f32 %v2679, 0.0
      %v2708 = vmax.f32 %v2684, 0.0
      %v2709 = vmax.f32 %v2687, 0.0
      %v2710 = vmax.f32 %v2692, 0.0
      %v2711 = vmax.f32 %v2695, 0.0
      %v2712 = vmax.f32 %v2700, 0.0
      %v2713 = vmax.f32 %v2703, 0.0
      %v2714 = vadd.f32 %v1624, %v2706
      %v2715 = vadd.f32 %v1625, %v2707
      %v2716 = vadd.f32 %v1626, %v2708
      %v2717 = vadd.f32 %v1627, %v2709
      %v2718 = vadd.f32 %v1628, %v2710
      %v2719 = vadd.f32 %v1629, %v2711
      %v2720 = vadd.f32 %v1630, %v2712
      %v2721 = vadd.f32 %v1631, %v2713
      %2722 = vst.msk [vmem:[%s541] sm:$0xff] %vm561, %v2714
      %2723 = vst.msk [vmem:[%s541 + $0x8] sm:$0xff] %vm561, %v2715
      %2724 = vst.msk [vmem:[%s541 + $0x10] sm:$0xff] %vm561, %v2716
      %2725 = vst.msk [vmem:[%s541 + $0x18] sm:$0xff] %vm561, %v2717
      %2726 = vst.msk [vmem:[%s541 + $0x20] sm:$0xff] %vm561, %v2718
      %2727 = vst.msk [vmem:[%s541 + $0x28] sm:$0xff] %vm561, %v2719
      %2728 = vst.msk [vmem:[%s541 + $0x30] sm:$0xff] %vm561, %v2720
      %2729 = vst.msk [vmem:[%s541 + $0x38] sm:$0xff] %vm561, %v2721
      %p2730 = scmp.lt.s32.totalorder %s27, 1
      %s2731 = scalar_select %p2730, %s27, 1
      %s2732 = smul.addr %s2731, 8
      %s2733 = smul.addr %s2732, 8
      %s2734 = scalar_lea.vmem %s16, %s2733
      // Predicated region
      $region85: #{corner_encoder_forward.7} parent=83 // pred_check
        %p2735 = pneg %p391
      $region86: #{corner_encoder_forward.7} parent=83 // pred_check_branch
        %2737 = sbr.rel (%p2735) target = $region88
      $region87: #{corner_encoder_forward.7} parent=83 // pred_region
        _
      $region88: #{corner_encoder_forward.7} parent=83 // pred_fallthru
        _
    $region84: #{corner_encoder_forward.7} parent=5 // pred_fallthru
      _
    %p2738 = scmp.le.s32.totalorder 2, %s22
    // Predicated region
    $region89: #{corner_encoder_forward.7} parent=5 // pred_check
      %p2739 = pneg %p2738
    $region90: #{corner_encoder_forward.7} parent=5 // pred_check_branch
      %2741 = sbr.rel (%p2739) target = $region92
    $region91: #{corner_encoder_forward.7} parent=5 // pred_region
      %s2742 = ssub.s32 %s22, 2
      // Predicated region
      $region93: #{corner_encoder_forward.7} parent=91 // pred_check
        %p2743 = pneg %p397
      $region94: #{corner_encoder_forward.7} parent=91 // pred_check_branch
        %2745 = sbr.rel (%p2743) target = $region96
      $region95: #{corner_encoder_forward.7} parent=91 // pred_region
        %p2746 = scmp.lt.s32.totalorder %s28, 1
        %s2747 = scalar_select %p2746, %s28, 1
        %s2748 = smul.addr %s2747, 8
        %s2749 = smul.addr %s2748, 8
        %s2750 = scalar_lea.vmem %s16, %s2749
      $region96: #{corner_encoder_forward.7} parent=91 // pred_fallthru
        _
    $region92: #{corner_encoder_forward.7} parent=5 // pred_fallthru
      _
  $region6: #{corner_encoder_forward.7} parent=0 // loop_footer
    %s26 = sadd.s32 1, %s22
  $region7: #{corner_encoder_forward.7} parent=0 // loop_footer_branch
    %21 = sbr.rel target = $region3
  $region8: #{corner_encoder_forward.7} parent=0 // loop_exit
    _

</llo_original>
